<compile_context>
chip_gen: v5e
topology: v5e:2x2
jax: 0.10.0
libtpu: 0.0.40
codegen_flags: <defaults>
</compile_context>

<pallas_src>
import functools
import math

import jax
import jax.numpy as jnp
from jax.experimental import pallas as pl
from jax.experimental.pallas import tpu as pltpu

_VMEM_LIMIT = 48 * 1024 * 1024   # leave headroom on v7x's 64 MiB physical VMEM


def _pick_tile(dim: int, cap: int, mult: int) -> int:
    """Largest tile <= cap that divides dim and is a multiple of `mult`.
    Falls back to the full dim (always a legal block size).  All test shapes
    divide cleanly, so the fallback never fires here."""
    if dim <= cap:
        return dim
    t = cap - (cap % mult)
    while t >= mult:
        if dim % t == 0:
            return t
        t -= mult
    return dim


# ---------------------------------------------------------------------------
# Kernel 1: fused TokenEmbedding + PositionalEncoding
#   out[n, :] = emb_table[tok[n], :] * sqrt(E) + pos[n, :]
#   grid = (token blocks [parallel], vocab shards [arbitrary / reduction])
#   Accumulates directly into the resident f32 output block (no scratch).
# ---------------------------------------------------------------------------
def _embed_posenc_kernel(tok_ref, emb_ref, pos_ref, out_ref, *, tv, scale):
    j = pl.program_id(1)

    @pl.when(j == 0)
    def _():
        out_ref[...] = jnp.zeros_like(out_ref)

    tok = tok_ref[...]                       # (tn, 1) int32
    local = tok - j * tv                     # id relative to this vocab shard
    onehot = (local == jax.lax.broadcasted_iota(
        jnp.int32, (tok.shape[0], tv), 1)).astype(jnp.float32)
    # Gather as a one-hot matmul on the MXU; out-of-shard / out-of-range ids
    # contribute zero rows, so no OOB access is possible.
    out_ref[...] += jnp.dot(onehot, emb_ref[...],
                            preferred_element_type=jnp.float32)

    @pl.when(j == pl.num_programs(1) - 1)
    def _():
        out_ref[...] = out_ref[...] * scale + pos_ref[...]


def token_embed_posenc_pallas(tokens, emb_table, pos_table):
    """(S, B) int tokens -> (S, B, E) f32 = table[tok]*sqrt(E) + pos[s]."""
    S, B = tokens.shape
    V, E = emb_table.shape
    N = S * B
    scale = float(math.sqrt(E))
    flat_tok = tokens.reshape(N, 1).astype(jnp.int32)
    # Pre-broadcast pos to flat rows so the output tiles stay 2-D lane/sublane
    # dense (tiny at these sizes; for large S*B keep pos (S,E) and 3-D blocks).
    pos_flat = jnp.broadcast_to(
        pos_table[:S].astype(jnp.float32)[:, None, :], (S, B, E)).reshape(N, E)

    tn = _pick_tile(N, 1024, 8)
    max_rows = max(8, (4 * 1024 * 1024) // (E * 4))   # <=4 MiB table shard
    tv = _pick_tile(V, max_rows, 8)
    grid = (N // tn, V // tv)

    out = pl.pallas_call(
        functools.partial(_embed_posenc_kernel, tv=tv, scale=scale),
        out_shape=jax.ShapeDtypeStruct((N, E), jnp.float32),
        grid_spec=pltpu.PrefetchScalarGridSpec(
            num_scalar_prefetch=0,
            grid=grid,
            in_specs=[
                pl.BlockSpec((tn, 1), lambda i, j: (i, 0)),   # token ids
                pl.BlockSpec((tv, E), lambda i, j: (j, 0)),   # table shard
                pl.BlockSpec((tn, E), lambda i, j: (i, 0)),   # pos rows
            ],
            out_specs=pl.BlockSpec((tn, E), lambda i, j: (i, 0)),
        ),
        compiler_params=pltpu.CompilerParams(
            dimension_semantics=("parallel", "arbitrary"),
            vmem_limit_bytes=_VMEM_LIMIT,
        ),
    )(flat_tok, emb_table.astype(jnp.float32), pos_flat)
    return out.reshape(S, B, E)


# ---------------------------------------------------------------------------
# Kernel 2: tiled matmul + bias (+ optional ReLU), bf16 operands / f32 acc
#   Accumulates directly into the resident f32 output block.
# ---------------------------------------------------------------------------
def _linear_kernel(x_ref, w_ref, b_ref, o_ref, *, activation):
    k = pl.program_id(2)

    @pl.when(k == 0)
    def _():
        o_ref[...] = jnp.zeros_like(o_ref)

    o_ref[...] += jnp.dot(x_ref[...].astype(jnp.bfloat16),
                          w_ref[...].astype(jnp.bfloat16),
                          preferred_element_type=jnp.float32)

    @pl.when(k == pl.num_programs(2) - 1)
    def _():
        out = o_ref[...] + b_ref[...]
        if activation == "relu":
            out = jnp.maximum(out, 0.0)
        o_ref[...] = out


def linear_pallas(x, w, b, activation=None):
    M, K = x.shape
    K2, N = w.shape
    assert K == K2
    b2 = b.reshape(1, N).astype(jnp.float32)
    tm = _pick_tile(M, 512, 16)
    tn = _pick_tile(N, 512, 128)
    tk = _pick_tile(K, 512, 128)
    grid = (M // tm, N // tn, K // tk)
    return pl.pallas_call(
        functools.partial(_linear_kernel, activation=activation),
        out_shape=jax.ShapeDtypeStruct((M, N), jnp.float32),
        grid_spec=pltpu.PrefetchScalarGridSpec(
            num_scalar_prefetch=0,
            grid=grid,
            in_specs=[
                pl.BlockSpec((tm, tk), lambda i, j, k: (i, k)),
                pl.BlockSpec((tk, tn), lambda i, j, k: (k, j)),
                pl.BlockSpec((1, tn), lambda i, j, k: (0, j)),
            ],
            out_specs=pl.BlockSpec((tm, tn), lambda i, j, k: (i, j)),
        ),
        compiler_params=pltpu.CompilerParams(
            dimension_semantics=("parallel", "parallel", "arbitrary"),
            vmem_limit_bytes=_VMEM_LIMIT,
        ),
    )(x, w, b2)


# ---------------------------------------------------------------------------
# Kernel 3: fused  LN(residual + x @ w + b)  (post-norm sublayer epilogue)
#   N (= E) is untiled so the LayerNorm row reduction stays in one block.
# ---------------------------------------------------------------------------
def _linear_add_ln_kernel(x_ref, w_ref, b_ref, res_ref, g_ref, beta_ref,
                          o_ref, *, eps):
    k = pl.program_id(1)

    @pl.when(k == 0)
    def _():
        o_ref[...] = jnp.zeros_like(o_ref)

    o_ref[...] += jnp.dot(x_ref[...].astype(jnp.bfloat16),
                          w_ref[...].astype(jnp.bfloat16),
                          preferred_element_type=jnp.float32)

    @pl.when(k == pl.num_programs(1) - 1)
    def _():
        z = o_ref[...] + b_ref[...] + res_ref[...]
        mu = jnp.mean(z, axis=-1, keepdims=True)
        zc = z - mu
        var = jnp.mean(zc * zc, axis=-1, keepdims=True)
        o_ref[...] = zc * jax.lax.rsqrt(var + eps) * g_ref[...] + beta_ref[...]


def linear_add_ln_pallas(x, w, b, residual, gamma, beta, eps=1e-5):
    M, K = x.shape
    K2, N = w.shape
    assert K == K2 and residual.shape == (M, N)
    b2 = b.reshape(1, N).astype(jnp.float32)
    g2 = gamma.reshape(1, N).astype(jnp.float32)
    be2 = beta.reshape(1, N).astype(jnp.float32)
    tm = _pick_tile(M, 512, 16)
    tk = _pick_tile(K, 512, 128)
    grid = (M // tm, K // tk)
    return pl.pallas_call(
        functools.partial(_linear_add_ln_kernel, eps=eps),
        out_shape=jax.ShapeDtypeStruct((M, N), jnp.float32),
        grid_spec=pltpu.PrefetchScalarGridSpec(
            num_scalar_prefetch=0,
            grid=grid,
            in_specs=[
                pl.BlockSpec((tm, tk), lambda i, k: (i, k)),
                pl.BlockSpec((tk, N), lambda i, k: (k, 0)),
                pl.BlockSpec((1, N), lambda i, k: (0, 0)),
                pl.BlockSpec((tm, N), lambda i, k: (i, 0)),
                pl.BlockSpec((1, N), lambda i, k: (0, 0)),
                pl.BlockSpec((1, N), lambda i, k: (0, 0)),
            ],
            out_specs=pl.BlockSpec((tm, N), lambda i, k: (i, 0)),
        ),
        compiler_params=pltpu.CompilerParams(
            dimension_semantics=("parallel", "arbitrary"),
            vmem_limit_bytes=_VMEM_LIMIT,
        ),
    )(x, w, b2, residual.astype(jnp.float32), g2, be2)


# ---------------------------------------------------------------------------
# Kernel 4: attention, all heads of a batch tile per grid step
#   softmax(q k^T * scale + mask) v   with bf16 matmul operands, f32 softmax.
#   mask is (bt, Lq, Lk) and broadcast over heads in-kernel.
# ---------------------------------------------------------------------------
def _attn_kernel(q_ref, k_ref, v_ref, m_ref, o_ref, *, scale):
    bt, h, lq, dh = q_ref.shape
    lk = k_ref.shape[2]
    q = q_ref[...].reshape(bt * h, lq, dh)
    k = k_ref[...].reshape(bt * h, lk, dh)
    v = v_ref[...].reshape(bt * h, lk, dh)

    s = jnp.einsum('bqd,bkd->bqk', q, k,
                   preferred_element_type=jnp.float32) * scale
    s = s.reshape(bt, h, lq, lk) + m_ref[...][:, None, :, :]
    s = s - jnp.max(s, axis=-1, keepdims=True)
    p = jnp.exp(s)
    p = p * pl.reciprocal(jnp.sum(p, axis=-1, keepdims=True), approx=True)

    o = jnp.einsum('bqk,bkd->bqd',
                   p.reshape(bt * h, lq, lk).astype(v.dtype), v,
                   preferred_element_type=jnp.float32)
    o_ref[...] = o.reshape(bt, h, lq, dh).astype(o_ref.dtype)


def attention_pallas(q, k, v, mask, scale):
    B, H, Lq, Dh = q.shape
    Lk = k.shape[2]
    bt = _pick_tile(B, 8, 1)
    grid = (B // bt,)
    return pl.pallas_call(
        functools.partial(_attn_kernel, scale=scale),
        out_shape=jax.ShapeDtypeStruct((B, H, Lq, Dh), jnp.float32),
        grid_spec=pltpu.PrefetchScalarGridSpec(
            num_scalar_prefetch=0,
            grid=grid,
            in_specs=[
                pl.BlockSpec((bt, H, Lq, Dh), lambda b: (b, 0, 0, 0)),
                pl.BlockSpec((bt, H, Lk, Dh), lambda b: (b, 0, 0, 0)),
                pl.BlockSpec((bt, H, Lk, Dh), lambda b: (b, 0, 0, 0)),
                pl.BlockSpec((bt, Lq, Lk), lambda b: (b, 0, 0)),
            ],
            out_specs=pl.BlockSpec((bt, H, Lq, Dh), lambda b: (b, 0, 0, 0)),
        ),
        compiler_params=pltpu.CompilerParams(
            dimension_semantics=("parallel",),
            vmem_limit_bytes=_VMEM_LIMIT,
        ),
    )(q.astype(jnp.bfloat16), k.astype(jnp.bfloat16),
      v.astype(jnp.bfloat16), mask.astype(jnp.float32))


# ---------------------------------------------------------------------------
# Mask building (kept per-batch; heads are broadcast inside the kernel)
# ---------------------------------------------------------------------------
def _build_mask(attn_mask, key_padding_mask, B, Lq, Lk):
    m = jnp.zeros((B, Lq, Lk), jnp.float32)
    if attn_mask is not None:
        m = m + attn_mask.astype(jnp.float32)[None, :, :]
    if key_padding_mask is not None:
        m = m + jnp.where(key_padding_mask, -1e9, 0.0
                          ).astype(jnp.float32)[:, None, :]
    return m


# ---------------------------------------------------------------------------
# Multi-head attention / encoder / decoder layers (Pallas path)
# ---------------------------------------------------------------------------
def _self_attention_pallas(x, p, nhead, mask_b):
    """Returns the concatenated-heads tensor (L*B, E), pre-output-projection
    (the output projection is fused with the residual+LN epilogue)."""
    L, B, E = x.shape
    Dh = E // nhead
    qkv = linear_pallas(x.reshape(L * B, E), p["w_qkv"], p["b_qkv"])
    qkv = qkv.astype(jnp.bfloat16).reshape(L, B, 3, nhead, Dh
                                           ).transpose(2, 1, 3, 0, 4)
    oh = attention_pallas(qkv[0], qkv[1], qkv[2], mask_b, 1.0 / math.sqrt(Dh))
    return oh.transpose(2, 0, 1, 3).reshape(L * B, E)


def _cross_attention_pallas(y, memory, p, nhead, mask_b):
    Lq, B, E = y.shape
    Lk = memory.shape[0]
    Dh = E // nhead
    q = linear_pallas(y.reshape(Lq * B, E), p["wq"], p["bq"])
    kv = linear_pallas(memory.reshape(Lk * B, E), p["w_kv"], p["b_kv"])
    qh = q.astype(jnp.bfloat16).reshape(Lq, B, nhead, Dh).transpose(1, 2, 0, 3)
    kvh = kv.astype(jnp.bfloat16).reshape(Lk, B, 2, nhead, Dh
                                          ).transpose(2, 1, 3, 0, 4)
    oh = attention_pallas(qh, kvh[0], kvh[1], mask_b, 1.0 / math.sqrt(Dh))
    return oh.transpose(2, 0, 1, 3).reshape(Lq * B, E)


def _encoder_layer_pallas(x, p, nhead, src_mask_b):
    S, B, E = x.shape
    x_flat = x.reshape(S * B, E)
    sa = _self_attention_pallas(x, p["self_attn"], nhead, src_mask_b)
    x_flat = linear_add_ln_pallas(sa, p["self_attn"]["wo"], p["self_attn"]["bo"],
                                  x_flat, p["ln1_g"], p["ln1_b"])
    h = linear_pallas(x_flat, p["w1"], p["b1"], activation="relu")
    x_flat = linear_add_ln_pallas(h, p["w2"], p["b2"],
                                  x_flat, p["ln2_g"], p["ln2_b"])
    return x_flat.reshape(S, B, E)


def _decoder_layer_pallas(y, memory, p, nhead, tgt_mask_b, mem_mask_b):
    T, B, E = y.shape
    y_flat = y.reshape(T * B, E)
    sa = _self_attention_pallas(y, p["self_attn"], nhead, tgt_mask_b)
    y_flat = linear_add_ln_pallas(sa, p["self_attn"]["wo"], p["self_attn"]["bo"],
                                  y_flat, p["ln1_g"], p["ln1_b"])
    ca = _cross_attention_pallas(y_flat.reshape(T, B, E), memory,
                                 p["cross_attn"], nhead, mem_mask_b)
    y_flat = linear_add_ln_pallas(ca, p["cross_attn"]["wo"], p["cross_attn"]["bo"],
                                  y_flat, p["ln2_g"], p["ln2_b"])
    h = linear_pallas(y_flat, p["w1"], p["b1"], activation="relu")
    y_flat = linear_add_ln_pallas(h, p["w2"], p["b2"],
                                  y_flat, p["ln3_g"], p["ln3_b"])
    return y_flat.reshape(T, B, E)


def seq2seq_forward_pallas(params, src, trg, src_mask, tgt_mask,
                           src_padding_mask, tgt_padding_mask,
                           memory_key_padding_mask, pos_table, *, nhead):
    S, B = src.shape
    T = trg.shape[0]
    E = params["src_emb"].shape[1]

    src_emb = token_embed_posenc_pallas(src, params["src_emb"], pos_table)
    tgt_emb = token_embed_posenc_pallas(trg, params["tgt_emb"], pos_table)

    src_m = _build_mask(src_mask, src_padding_mask, B, S, S)
    tgt_m = _build_mask(tgt_mask, tgt_padding_mask, B, T, T)
    mem_m = _build_mask(None, memory_key_padding_mask, B, T, S)

    memory = src_emb
    for layer in params["encoder"]:
        memory = _encoder_layer_pallas(memory, layer, nhead, src_m)

    out = tgt_emb
    for layer in params["decoder"]:
        out = _decoder_layer_pallas(out, memory, layer, nhead, tgt_m, mem_m)

    logits = linear_pallas(out.reshape(T * B, E),
                           params["gen_w"], params["gen_b"])
    return logits.reshape(T, B, -1)


# ---------------------------------------------------------------------------
# Pure-JAX f32 reference (same math; used only for the correctness check)
# ---------------------------------------------------------------------------
def _ln_ref(z, g, b, eps=1e-5):
    mu = jnp.mean(z, axis=-1, keepdims=True)
    zc = z - mu
    var = jnp.mean(zc * zc, axis=-1, keepdims=True)
    return zc * jax.lax.rsqrt(var + eps) * g + b


def _mha_ref(q_in, k_in, v_in, wq, bq, wk, bk, wv, bv, wo, bo, nhead, mask_b):
    Lq, B, E = q_in.shape
    Lk = k_in.shape[0]
    Dh = E // nhead
    q = (q_in @ wq + bq).reshape(Lq, B, nhead, Dh).transpose(1, 2, 0, 3)
    k = (k_in @ wk + bk).reshape(Lk, B, nhead, Dh).transpose(1, 2, 0, 3)
    v = (v_in @ wv + bv).reshape(Lk, B, nhead, Dh).transpose(1, 2, 0, 3)
    s = jnp.einsum('bhqd,bhkd->bhqk', q, k) / math.sqrt(Dh) + mask_b[:, None]
    p = jax.nn.softmax(s, axis=-1)
    o = jnp.einsum('bhqk,bhkd->bhqd', p, v).transpose(2, 0, 1, 3
                                                      ).reshape(Lq, B, E)
    return o @ wo + bo


def _self_attn_ref(x, p, nhead, mask_b):
    wq, wk, wv = jnp.split(p["w_qkv"], 3, axis=1)
    bq, bk, bv = jnp.split(p["b_qkv"], 3)
    return _mha_ref(x, x, x, wq, bq, wk, bk, wv, bv,
                    p["wo"], p["bo"], nhead, mask_b)


def _cross_attn_ref(y, mem, p, nhead, mask_b):
    wk, wv = jnp.split(p["w_kv"], 2, axis=1)
    bk, bv = jnp.split(p["b_kv"], 2)
    return _mha_ref(y, mem, mem, p["wq"], p["bq"], wk, bk, wv, bv,
                    p["wo"], p["bo"], nhead, mask_b)


def seq2seq_forward_ref(params, src, trg, src_mask, tgt_mask,
                        src_padding_mask, tgt_padding_mask,
                        memory_key_padding_mask, pos_table, *, nhead):
    S, B = src.shape
    T = trg.shape[0]
    E = params["src_emb"].shape[1]
    scale = math.sqrt(E)

    src_emb = jnp.take(params["src_emb"], src, axis=0) * scale \
        + pos_table[:S][:, None, :]
    tgt_emb = jnp.take(params["tgt_emb"], trg, axis=0) * scale \
        + pos_table[:T][:, None, :]

    src_m = _build_mask(src_mask, src_padding_mask, B, S, S)
    tgt_m = _build_mask(tgt_mask, tgt_padding_mask, B, T, T)
    mem_m = _build_mask(None, memory_key_padding_mask, B, T, S)

    mem = src_emb
    for p in params["encoder"]:
        sa = _self_attn_ref(mem, p["self_attn"], nhead, src_m)
        mem = _ln_ref(mem + sa, p["ln1_g"], p["ln1_b"])
        h = jnp.maximum(mem @ p["w1"] + p["b1"], 0.0) @ p["w2"] + p["b2"]
        mem = _ln_ref(mem + h, p["ln2_g"], p["ln2_b"])

    out = tgt_emb
    for p in params["decoder"]:
        sa = _self_attn_ref(out, p["self_attn"], nhead, tgt_m)
        out = _ln_ref(out + sa, p["ln1_g"], p["ln1_b"])
        ca = _cross_attn_ref(out, mem, p["cross_attn"], nhead, mem_m)
        out = _ln_ref(out + ca, p["ln2_g"], p["ln2_b"])
        h = jnp.maximum(out @ p["w1"] + p["b1"], 0.0) @ p["w2"] + p["b2"]
        out = _ln_ref(out + h, p["ln3_g"], p["ln3_b"])

    return out @ params["gen_w"] + params["gen_b"]


# ---------------------------------------------------------------------------
# Parameter / buffer construction
# ---------------------------------------------------------------------------
def make_pos_table(emb_size, maxlen):
    den = jnp.exp(-jnp.arange(0, emb_size, 2, dtype=jnp.float32)
                  * (math.log(10000.0) / emb_size))
    pos = jnp.arange(0, maxlen, dtype=jnp.float32).reshape(maxlen, 1)
    pe = jnp.zeros((maxlen, emb_size), jnp.float32)
    pe = pe.at[:, 0::2].set(jnp.sin(pos * den))
    pe = pe.at[:, 1::2].set(jnp.cos(pos * den))
    return pe


def init_params(key, num_enc, num_dec, emb_size, dim_feedforward,
                src_vocab, tgt_vocab):
    keys = jax.random.split(key, 512)
    it = iter(keys)

    def dense(fan_in, fan_out):
        bound = 1.0 / math.sqrt(fan_in)
        w = jax.random.uniform(next(it), (fan_in, fan_out), jnp.float32,
                               -bound, bound)
        b = jax.random.uniform(next(it), (fan_out,), jnp.float32,
                               -bound, bound)
        return w, b

    def self_attn():
        w_qkv, b_qkv = dense(emb_size, 3 * emb_size)   # fused in-proj (Q|K|V)
        wo, bo = dense(emb_size, emb_size)
        return dict(w_qkv=w_qkv, b_qkv=b_qkv, wo=wo, bo=bo)

    def cross_attn():
        wq, bq = dense(emb_size, emb_size)
        w_kv, b_kv = dense(emb_size, 2 * emb_size)     # fused K|V
        wo, bo = dense(emb_size, emb_size)
        return dict(wq=wq, bq=bq, w_kv=w_kv, b_kv=b_kv, wo=wo, bo=bo)

    def ln():
        return (jnp.ones((emb_size,), jnp.float32),
                jnp.zeros((emb_size,), jnp.float32))

    def enc_layer():
        w1, b1 = dense(emb_size, dim_feedforward)
        w2, b2 = dense(dim_feedforward, emb_size)
        g1, be1 = ln(); g2, be2 = ln()
        return dict(self_attn=self_attn(), w1=w1, b1=b1, w2=w2, b2=b2,
                    ln1_g=g1, ln1_b=be1, ln2_g=g2, ln2_b=be2)

    def dec_layer():
        w1, b1 = dense(emb_size, dim_feedforward)
        w2, b2 = dense(dim_feedforward, emb_size)
        g1, be1 = ln(); g2, be2 = ln(); g3, be3 = ln()
        return dict(self_attn=self_attn(), cross_attn=cross_attn(),
                    w1=w1, b1=b1, w2=w2, b2=b2,
                    ln1_g=g1, ln1_b=be1, ln2_g=g2, ln2_b=be2,
                    ln3_g=g3, ln3_b=be3)

    gen_w, gen_b = dense(emb_size, tgt_vocab)
    # Embedding tables at 0.1 * N(0,1): the module multiplies by sqrt(E), so
    # this keeps first-layer attention logits in a moderate range and the
    # bf16-vs-f32 comparison numerically meaningful (math is unchanged).
    src_emb = 0.1 * jax.random.normal(next(it), (src_vocab, emb_size),
                                      jnp.float32)
    tgt_emb = 0.1 * jax.random.normal(next(it), (tgt_vocab, emb_size),
                                      jnp.float32)
    return dict(src_emb=src_emb, tgt_emb=tgt_emb,
                encoder=[enc_layer() for _ in range(num_enc)],
                decoder=[dec_layer() for _ in range(num_dec)],
                gen_w=gen_w, gen_b=gen_b)


def _cast_keys_bf16(d, keys):
    return {k: (v.astype(jnp.bfloat16) if k in keys else v)
            for k, v in d.items()}


def to_bf16_weights(params):
    """One-time bf16 conversion of MXU weight matrices (biases / LN params /
    embedding tables stay f32)."""
    out = dict(params)
    out["gen_w"] = params["gen_w"].astype(jnp.bfloat16)
    enc = []
    for p in params["encoder"]:
        q = dict(p)
        q["self_attn"] = _cast_keys_bf16(p["self_attn"], ("w_qkv", "wo"))
        q["w1"] = p["w1"].astype(jnp.bfloat16)
        q["w2"] = p["w2"].astype(jnp.bfloat16)
        enc.append(q)
    out["encoder"] = enc
    dec = []
    for p in params["decoder"]:
        q = dict(p)
        q["self_attn"] = _cast_keys_bf16(p["self_attn"], ("w_qkv", "wo"))
        q["cross_attn"] = _cast_keys_bf16(p["cross_attn"], ("wq", "w_kv", "wo"))
        q["w1"] = p["w1"].astype(jnp.bfloat16)
        q["w2"] = p["w2"].astype(jnp.bfloat16)
        dec.append(q)
    out["decoder"] = dec
    return out


if __name__ == "__main__":
    num_encoder_layers = 2
    num_decoder_layers = 2
    emb_size = 128            # multiple of 128 -> lane-dense tiles
    nhead = 4
    dim_feedforward = 256
    src_vocab_size = 256
    tgt_vocab_size = 256
    S_src, S_tgt, batch = 16, 16, 4
    maxlen = 64

    root = jax.random.PRNGKey(0)
    k_params, k_src, k_tgt = jax.random.split(root, 3)
    params = init_params(k_params, num_encoder_layers, num_decoder_layers,
                         emb_size, dim_feedforward,
                         src_vocab_size, tgt_vocab_size)
    params_bf16 = to_bf16_weights(params)
    pos_table = make_pos_table(emb_size, maxlen)

    src = jax.random.randint(k_src, (S_src, batch), 0, src_vocab_size,
                             dtype=jnp.int32)
    trg = jax.random.randint(k_tgt, (S_tgt, batch), 0, tgt_vocab_size,
                             dtype=jnp.int32)

    src_mask = jnp.zeros((S_src, S_src), jnp.float32)
    rows = jnp.arange(S_tgt)
    tgt_mask = jnp.where(rows[None, :] > rows[:, None], -1e9, 0.0
                         ).astype(jnp.float32)
    src_padding_mask = jnp.zeros((batch, S_src), dtype=bool).at[0, -3:].set(True)
    tgt_padding_mask = jnp.zeros((batch, S_tgt), dtype=bool).at[-1, -2:].set(True)
    memory_key_padding_mask = src_padding_mask

    fwd_pallas = jax.jit(functools.partial(seq2seq_forward_pallas, nhead=nhead))
    fwd_ref = jax.jit(functools.partial(seq2seq_forward_ref, nhead=nhead))

    args = (src, trg, src_mask, tgt_mask, src_padding_mask, tgt_padding_mask,
            memory_key_padding_mask, pos_table)

    out_pallas = jax.block_until_ready(fwd_pallas(params_bf16, *args))
    out_ref = jax.block_until_ready(fwd_ref(params, *args))

    # Standalone check of the fused embedding+posenc kernel (f32 path).
    emb_pallas = jax.block_until_ready(
        token_embed_posenc_pallas(src, params["src_emb"], pos_table))
    emb_ref = (jnp.take(params["src_emb"], src, axis=0) * math.sqrt(emb_size)
               + pos_table[:S_src][:, None, :])

    assert out_pallas.shape == (S_tgt, batch, tgt_vocab_size)
    assert bool(jnp.all(jnp.isfinite(out_pallas)))
    assert bool(jnp.allclose(emb_pallas, emb_ref, rtol=2e-2, atol=2e-2)), (
        "embedding mismatch: %g" % float(jnp.max(jnp.abs(emb_pallas - emb_ref))))
    max_diff = float(jnp.max(jnp.abs(out_pallas - out_ref)))
    # bf16 MXU operands vs f32 reference -> loose-but-meaningful tolerance.
    assert max_diff < 0.25, "full forward mismatch: %g" % max_diff

    print("KERNEL_OK")
</pallas_src>

<mosaic_0001>
module attributes {stable_mosaic.version = 11 : i64} {
  func.func @_embed_posenc_kernel(%arg0: i32, %arg1: i32, %arg2: memref<64x1xi32, #tpu.memory_space<vmem>>, %arg3: memref<256x128xf32, #tpu.memory_space<vmem>>, %arg4: memref<64x128xf32, #tpu.memory_space<vmem>>, %arg5: memref<64x128xf32, #tpu.memory_space<vmem>>) attributes {dimension_semantics = [#tpu.dimension_semantics<parallel>, #tpu.dimension_semantics<arbitrary>], iteration_bounds = array<i64: 1, 1>, scalar_prefetch = 0 : i64, scratch_operands = 0 : i64, tpu.core_type = #tpu.core_type<tc>, window_params = [{transform_indices = @transform_0, window_bounds = array<i64: 64, 1>}, {transform_indices = @transform_1, window_bounds = array<i64: 256, 128>}, {transform_indices = @transform_2, window_bounds = array<i64: 64, 128>}, {transform_indices = @transform_3, window_bounds = array<i64: 64, 128>}]} {
    %c0_i32 = arith.constant 0 : i32
    %0 = arith.cmpi eq, %arg1, %c0_i32 : i32
    %1 = arith.extui %0 : i1 to i32
    %c0_i32_0 = arith.constant 0 : i32
    %2 = arith.cmpi ne, %1, %c0_i32_0 : i32
    scf.if %2 {
      %cst_10 = arith.constant 0.000000e+00 : f32
      %20 = vector.broadcast %cst_10 : f32 to vector<64x128xf32>
      %c0_11 = arith.constant 0 : index
      %c0_12 = arith.constant 0 : index
      %21 = vector.load %arg5[%c0_11, %c0_12] : memref<64x128xf32, #tpu.memory_space<vmem>>, vector<64x128xf32>
      tpu.vector_store %arg5[%c0_11, %c0_12], %20 {strides = array<i32>} : memref<64x128xf32, #tpu.memory_space<vmem>>, vector<64x128xf32>,
    } else {
    }
    %c0 = arith.constant 0 : index
    %c0_1 = arith.constant 0 : index
    %3 = vector.load %arg2[%c0, %c0_1] : memref<64x1xi32, #tpu.memory_space<vmem>>, vector<64x1xi32>
    %c256_i32 = arith.constant 256 : i32
    %4 = arith.muli %arg1, %c256_i32 : i32
    %5 = vector.broadcast %4 : i32 to vector<64x1xi32>
    %6 = arith.subi %3, %5 : vector<64x1xi32>
    %7 = tpu.iota {dimensions = array<i32: 1>} : vector<64x256xi32>
    %8 = vector.broadcast %6 : vector<64x1xi32> to vector<64x256xi32>
    %9 = arith.cmpi eq, %8, %7 : vector<64x256xi32>
    %10 = arith.extui %9 : vector<64x256xi1> to vector<64x256xi32>
    %11 = arith.sitofp %10 : vector<64x256xi32> to vector<64x256xf32>
    %c0_2 = arith.constant 0 : index
    %c0_3 = arith.constant 0 : index
    %12 = vector.load %arg5[%c0_2, %c0_3] : memref<64x128xf32, #tpu.memory_space<vmem>>, vector<64x128xf32>
    %c0_4 = arith.constant 0 : index
    %c0_5 = arith.constant 0 : index
    %13 = vector.load %arg3[%c0_4, %c0_5] : memref<256x128xf32, #tpu.memory_space<vmem>>, vector<256x128xf32>
    %cst = arith.constant dense<0.000000e+00> : vector<64x128xf32>
    %14 = tpu.matmul %11, %13, %cst {dimension_numbers = #tpu.dot_dimension_numbers<[1], [0], [0], [1], [0, 0, 1, 1], [], []>} : vector<64x256xf32>, vector<256x128xf32>, vector<64x128xf32> -> vector<64x128xf32>
    %15 = arith.addf %12, %14 : vector<64x128xf32>
    %c0_6 = arith.constant 0 : index
    %c0_7 = arith.constant 0 : index
    %16 = vector.load %arg5[%c0_6, %c0_7] : memref<64x128xf32, #tpu.memory_space<vmem>>, vector<64x128xf32>
    tpu.vector_store %arg5[%c0_6, %c0_7], %15 {strides = array<i32>} : memref<64x128xf32, #tpu.memory_space<vmem>>, vector<64x128xf32>,
    %c0_i32_8 = arith.constant 0 : i32
    %17 = arith.cmpi eq, %arg1, %c0_i32_8 : i32
    %18 = arith.extui %17 : i1 to i32
    %c0_i32_9 = arith.constant 0 : i32
    %19 = arith.cmpi ne, %18, %c0_i32_9 : i32
    scf.if %19 {
      %c0_10 = arith.constant 0 : index
      %c0_11 = arith.constant 0 : index
      %20 = vector.load %arg5[%c0_10, %c0_11] : memref<64x128xf32, #tpu.memory_space<vmem>>, vector<64x128xf32>
      %cst_12 = arith.constant 11.3137083 : f32
      %21 = vector.broadcast %cst_12 : f32 to vector<64x128xf32>
      %22 = arith.mulf %20, %21 : vector<64x128xf32>
      %c0_13 = arith.constant 0 : index
      %c0_14 = arith.constant 0 : index
      %23 = vector.load %arg4[%c0_13, %c0_14] : memref<64x128xf32, #tpu.memory_space<vmem>>, vector<64x128xf32>
      %24 = arith.addf %22, %23 : vector<64x128xf32>
      %c0_15 = arith.constant 0 : index
      %c0_16 = arith.constant 0 : index
      %25 = vector.load %arg5[%c0_15, %c0_16] : memref<64x128xf32, #tpu.memory_space<vmem>>, vector<64x128xf32>
      tpu.vector_store %arg5[%c0_15, %c0_16], %24 {strides = array<i32>} : memref<64x128xf32, #tpu.memory_space<vmem>>, vector<64x128xf32>,
    } else {
    }
    return
  }
  func.func @transform_0(%arg0: i32, %arg1: i32) -> (i32, i32) {
    %c0_i32 = arith.constant 0 : i32
    %c0_i32_0 = arith.constant 0 : i32
    return %arg0, %c0_i32 : i32, i32
  }
  func.func @transform_1(%arg0: i32, %arg1: i32) -> (i32, i32) {
    %c0_i32 = arith.constant 0 : i32
    %c0_i32_0 = arith.constant 0 : i32
    return %arg1, %c0_i32 : i32, i32
  }
  func.func @transform_2(%arg0: i32, %arg1: i32) -> (i32, i32) {
    %c0_i32 = arith.constant 0 : i32
    %c0_i32_0 = arith.constant 0 : i32
    return %arg0, %c0_i32 : i32, i32
  }
  func.func @transform_3(%arg0: i32, %arg1: i32) -> (i32, i32) {
    %c0_i32 = arith.constant 0 : i32
    %c0_i32_0 = arith.constant 0 : i32
    return %arg0, %c0_i32 : i32, i32
  }
}

module attributes {stable_mosaic.version = 11 : i64} {
  func.func @_linear_kernel(%arg0: i32, %arg1: i32, %arg2: i32, %arg3: memref<64x128xf32, #tpu.memory_space<vmem>>, %arg4: memref<128x384xbf16, #tpu.memory_space<vmem>>, %arg5: memref<1x384xf32, #tpu.memory_space<vmem>>, %arg6: memref<64x384xf32, #tpu.memory_space<vmem>>) attributes {dimension_semantics = [#tpu.dimension_semantics<parallel>, #tpu.dimension_semantics<parallel>, #tpu.dimension_semantics<arbitrary>], iteration_bounds = array<i64: 1, 1, 1>, scalar_prefetch = 0 : i64, scratch_operands = 0 : i64, tpu.core_type = #tpu.core_type<tc>, window_params = [{transform_indices = @transform_0, window_bounds = array<i64: 64, 128>}, {transform_indices = @transform_1, window_bounds = array<i64: 128, 384>}, {transform_indices = @transform_2, window_bounds = array<i64: 1, 384>}, {transform_indices = @transform_3, window_bounds = array<i64: 64, 384>}]} {
    %c0_i32 = arith.constant 0 : i32
    %0 = arith.cmpi eq, %arg2, %c0_i32 : i32
    %1 = arith.extui %0 : i1 to i32
    %c0_i32_0 = arith.constant 0 : i32
    %2 = arith.cmpi ne, %1, %c0_i32_0 : i32
    scf.if %2 {
      %cst_10 = arith.constant 0.000000e+00 : f32
      %13 = vector.broadcast %cst_10 : f32 to vector<64x384xf32>
      %c0_11 = arith.constant 0 : index
      %c0_12 = arith.constant 0 : index
      %14 = vector.load %arg6[%c0_11, %c0_12] : memref<64x384xf32, #tpu.memory_space<vmem>>, vector<64x384xf32>
      tpu.vector_store %arg6[%c0_11, %c0_12], %13 {strides = array<i32>} : memref<64x384xf32, #tpu.memory_space<vmem>>, vector<64x384xf32>,
    } else {
    }
    %c0 = arith.constant 0 : index
    %c0_1 = arith.constant 0 : index
    %3 = vector.load %arg6[%c0, %c0_1] : memref<64x384xf32, #tpu.memory_space<vmem>>, vector<64x384xf32>
    %c0_2 = arith.constant 0 : index
    %c0_3 = arith.constant 0 : index
    %4 = vector.load %arg3[%c0_2, %c0_3] : memref<64x128xf32, #tpu.memory_space<vmem>>, vector<64x128xf32>
    %5 = arith.truncf %4 : vector<64x128xf32> to vector<64x128xbf16>
    %c0_4 = arith.constant 0 : index
    %c0_5 = arith.constant 0 : index
    %6 = vector.load %arg4[%c0_4, %c0_5] : memref<128x384xbf16, #tpu.memory_space<vmem>>, vector<128x384xbf16>
    %cst = arith.constant dense<0.000000e+00> : vector<64x384xf32>
    %7 = tpu.matmul %5, %6, %cst {dimension_numbers = #tpu.dot_dimension_numbers<[1], [0], [0], [1], [0, 0, 1, 1], [], []>} : vector<64x128xbf16>, vector<128x384xbf16>, vector<64x384xf32> -> vector<64x384xf32>
    %8 = arith.addf %3, %7 : vector<64x384xf32>
    %c0_6 = arith.constant 0 : index
    %c0_7 = arith.constant 0 : index
    %9 = vector.load %arg6[%c0_6, %c0_7] : memref<64x384xf32, #tpu.memory_space<vmem>>, vector<64x384xf32>
    tpu.vector_store %arg6[%c0_6, %c0_7], %8 {strides = array<i32>} : memref<64x384xf32, #tpu.memory_space<vmem>>, vector<64x384xf32>,
    %c0_i32_8 = arith.constant 0 : i32
    %10 = arith.cmpi eq, %arg2, %c0_i32_8 : i32
    %11 = arith.extui %10 : i1 to i32
    %c0_i32_9 = arith.constant 0 : i32
    %12 = arith.cmpi ne, %11, %c0_i32_9 : i32
    scf.if %12 {
      %c0_10 = arith.constant 0 : index
      %c0_11 = arith.constant 0 : index
      %13 = vector.load %arg6[%c0_10, %c0_11] : memref<64x384xf32, #tpu.memory_space<vmem>>, vector<64x384xf32>
      %c0_12 = arith.constant 0 : index
      %c0_13 = arith.constant 0 : index
      %14 = vector.load %arg5[%c0_12, %c0_13] : memref<1x384xf32, #tpu.memory_space<vmem>>, vector<1x384xf32>
      %15 = vector.broadcast %14 : vector<1x384xf32> to vector<64x384xf32>
      %16 = arith.addf %13, %15 : vector<64x384xf32>
      %c0_14 = arith.constant 0 : index
      %c0_15 = arith.constant 0 : index
      %17 = vector.load %arg6[%c0_14, %c0_15] : memref<64x384xf32, #tpu.memory_space<vmem>>, vector<64x384xf32>
      tpu.vector_store %arg6[%c0_14, %c0_15], %16 {strides = array<i32>} : memref<64x384xf32, #tpu.memory_space<vmem>>, vector<64x384xf32>,
    } else {
    }
    return
  }
  func.func @transform_0(%arg0: i32, %arg1: i32, %arg2: i32) -> (i32, i32) {
    %c0_i32 = arith.constant 0 : i32
    return %arg0, %arg2 : i32, i32
  }
  func.func @transform_1(%arg0: i32, %arg1: i32, %arg2: i32) -> (i32, i32) {
    %c0_i32 = arith.constant 0 : i32
    return %arg2, %arg1 : i32, i32
  }
  func.func @transform_2(%arg0: i32, %arg1: i32, %arg2: i32) -> (i32, i32) {
    %c0_i32 = arith.constant 0 : i32
    %c0_i32_0 = arith.constant 0 : i32
    return %c0_i32, %arg1 : i32, i32
  }
  func.func @transform_3(%arg0: i32, %arg1: i32, %arg2: i32) -> (i32, i32) {
    %c0_i32 = arith.constant 0 : i32
    return %arg0, %arg1 : i32, i32
  }
}

module attributes {stable_mosaic.version = 11 : i64} {
  func.func @_attn_kernel(%arg0: i32, %arg1: memref<4x4x16x32xbf16, #tpu.memory_space<vmem>>, %arg2: memref<4x4x16x32xbf16, #tpu.memory_space<vmem>>, %arg3: memref<4x4x16x32xbf16, #tpu.memory_space<vmem>>, %arg4: memref<4x16x16xf32, #tpu.memory_space<vmem>>, %arg5: memref<4x4x16x32xf32, #tpu.memory_space<vmem>>) attributes {dimension_semantics = [#tpu.dimension_semantics<parallel>], iteration_bounds = array<i64: 1>, scalar_prefetch = 0 : i64, scratch_operands = 0 : i64, tpu.core_type = #tpu.core_type<tc>, window_params = [{transform_indices = @transform_0, window_bounds = array<i64: 4, 4, 16, 32>}, {transform_indices = @transform_1, window_bounds = array<i64: 4, 4, 16, 32>}, {transform_indices = @transform_2, window_bounds = array<i64: 4, 4, 16, 32>}, {transform_indices = @transform_3, window_bounds = array<i64: 4, 16, 16>}, {transform_indices = @transform_4, window_bounds = array<i64: 4, 4, 16, 32>}]} {
    %c0 = arith.constant 0 : index
    %c0_0 = arith.constant 0 : index
    %c0_1 = arith.constant 0 : index
    %c0_2 = arith.constant 0 : index
    %0 = vector.load %arg1[%c0, %c0_0, %c0_1, %c0_2] : memref<4x4x16x32xbf16, #tpu.memory_space<vmem>>, vector<4x4x16x32xbf16>
    %1 = vector.shape_cast %0 : vector<4x4x16x32xbf16> to vector<16x16x32xbf16>
    %c0_3 = arith.constant 0 : index
    %c0_4 = arith.constant 0 : index
    %c0_5 = arith.constant 0 : index
    %c0_6 = arith.constant 0 : index
    %2 = vector.load %arg2[%c0_3, %c0_4, %c0_5, %c0_6] : memref<4x4x16x32xbf16, #tpu.memory_space<vmem>>, vector<4x4x16x32xbf16>
    %3 = vector.shape_cast %2 : vector<4x4x16x32xbf16> to vector<16x16x32xbf16>
    %c0_7 = arith.constant 0 : index
    %c0_8 = arith.constant 0 : index
    %c0_9 = arith.constant 0 : index
    %c0_10 = arith.constant 0 : index
    %4 = vector.load %arg3[%c0_7, %c0_8, %c0_9, %c0_10] : memref<4x4x16x32xbf16, #tpu.memory_space<vmem>>, vector<4x4x16x32xbf16>
    %5 = vector.shape_cast %4 : vector<4x4x16x32xbf16> to vector<16x16x32xbf16>
    "tpu.trace_start"() <{level = 10 : i32, message = "bqd,bkd->bqk"}> : () -> ()
    %cst = arith.constant dense<0.000000e+00> : vector<16x16x16xf32>
    %6 = tpu.matmul %1, %3, %cst {dimension_numbers = #tpu.dot_dimension_numbers<[2], [2], [1], [1], [0, 0, 0, 1, 1, 1], [0], [0]>} : vector<16x16x32xbf16>, vector<16x16x32xbf16>, vector<16x16x16xf32> -> vector<16x16x16xf32>
    "tpu.trace_stop"() : () -> ()
    %cst_11 = arith.constant 0.176776692 : f32
    %7 = vector.broadcast %cst_11 : f32 to vector<16x16x16xf32>
    %8 = arith.mulf %6, %7 : vector<16x16x16xf32>
    %9 = vector.shape_cast %8 : vector<16x16x16xf32> to vector<4x4x16x16xf32>
    %c0_12 = arith.constant 0 : index
    %c0_13 = arith.constant 0 : index
    %c0_14 = arith.constant 0 : index
    %10 = vector.load %arg4[%c0_12, %c0_13, %c0_14] : memref<4x16x16xf32, #tpu.memory_space<vmem>>, vector<4x16x16xf32>
    %11 = vector.shape_cast %10 : vector<4x16x16xf32> to vector<4x1x16x16xf32>
    %12 = vector.broadcast %11 : vector<4x1x16x16xf32> to vector<4x4x16x16xf32>
    %13 = arith.addf %9, %12 : vector<4x4x16x16xf32>
    %cst_15 = arith.constant dense<0xFF800000> : vector<4x4x16xf32>
    %14 = vector.multi_reduction <maximumf>, %13, %cst_15 [3] : vector<4x4x16x16xf32> to vector<4x4x16xf32>
    %15 = vector.shape_cast %14 : vector<4x4x16xf32> to vector<4x4x16x1xf32>
    %16 = vector.broadcast %15 : vector<4x4x16x1xf32> to vector<4x4x16x16xf32>
    %17 = arith.subf %13, %16 : vector<4x4x16x16xf32>
    %18 = math.exp %17 : vector<4x4x16x16xf32>
    %cst_16 = arith.constant dense<0.000000e+00> : vector<4x4x16xf32>
    %19 = vector.multi_reduction <add>, %18, %cst_16 [3] : vector<4x4x16x16xf32> to vector<4x4x16xf32>
    %20 = vector.shape_cast %19 : vector<4x4x16xf32> to vector<4x4x16x1xf32>
    %21 = tpu.reciprocal %20 {approx = true} : vector<4x4x16x1xf32> -> vector<4x4x16x1xf32>
    %22 = vector.broadcast %21 : vector<4x4x16x1xf32> to vector<4x4x16x16xf32>
    %23 = arith.mulf %18, %22 : vector<4x4x16x16xf32>
    %24 = vector.shape_cast %23 : vector<4x4x16x16xf32> to vector<16x16x16xf32>
    %25 = arith.truncf %24 : vector<16x16x16xf32> to vector<16x16x16xbf16>
    "tpu.trace_start"() <{level = 10 : i32, message = "bqk,bkd->bqd"}> : () -> ()
    %cst_17 = arith.constant dense<0.000000e+00> : vector<16x16x32xf32>
    %26 = tpu.matmul %25, %5, %cst_17 {dimension_numbers = #tpu.dot_dimension_numbers<[2], [1], [1], [2], [0, 0, 0, 1, 1, 2], [0], [0]>} : vector<16x16x16xbf16>, vector<16x16x32xbf16>, vector<16x16x32xf32> -> vector<16x16x32xf32>
    "tpu.trace_stop"() : () -> ()
    %27 = vector.shape_cast %26 : vector<16x16x32xf32> to vector<4x4x16x32xf32>
    %c0_18 = arith.constant 0 : index
    %c0_19 = arith.constant 0 : index
    %c0_20 = arith.constant 0 : index
    %c0_21 = arith.constant 0 : index
    %28 = vector.load %arg5[%c0_18, %c0_19, %c0_20, %c0_21] : memref<4x4x16x32xf32, #tpu.memory_space<vmem>>, vector<4x4x16x32xf32>
    tpu.vector_store %arg5[%c0_18, %c0_19, %c0_20, %c0_21], %27 {strides = array<i32>} : memref<4x4x16x32xf32, #tpu.memory_space<vmem>>, vector<4x4x16x32xf32>,
    return
  }
  func.func @transform_0(%arg0: i32) -> (i32, i32, i32, i32) {
    %c0_i32 = arith.constant 0 : i32
    %c0_i32_0 = arith.constant 0 : i32
    %c0_i32_1 = arith.constant 0 : i32
    %c0_i32_2 = arith.constant 0 : i32
    return %arg0, %c0_i32, %c0_i32_0, %c0_i32_1 : i32, i32, i32, i32
  }
  func.func @transform_1(%arg0: i32) -> (i32, i32, i32, i32) {
    %c0_i32 = arith.constant 0 : i32
    %c0_i32_0 = arith.constant 0 : i32
    %c0_i32_1 = arith.constant 0 : i32
    %c0_i32_2 = arith.constant 0 : i32
    return %arg0, %c0_i32, %c0_i32_0, %c0_i32_1 : i32, i32, i32, i32
  }
  func.func @transform_2(%arg0: i32) -> (i32, i32, i32, i32) {
    %c0_i32 = arith.constant 0 : i32
    %c0_i32_0 = arith.constant 0 : i32
    %c0_i32_1 = arith.constant 0 : i32
    %c0_i32_2 = arith.constant 0 : i32
    return %arg0, %c0_i32, %c0_i32_0, %c0_i32_1 : i32, i32, i32, i32
  }
  func.func @transform_3(%arg0: i32) -> (i32, i32, i32) {
    %c0_i32 = arith.constant 0 : i32
    %c0_i32_0 = arith.constant 0 : i32
    %c0_i32_1 = arith.constant 0 : i32
    return %arg0, %c0_i32, %c0_i32_0 : i32, i32, i32
  }
  func.func @transform_4(%arg0: i32) -> (i32, i32, i32, i32) {
    %c0_i32 = arith.constant 0 : i32
    %c0_i32_0 = arith.constant 0 : i32
    %c0_i32_1 = arith.constant 0 : i32
    %c0_i32_2 = arith.constant 0 : i32
    return %arg0, %c0_i32, %c0_i32_0, %c0_i32_1 : i32, i32, i32, i32
  }
}

module attributes {stable_mosaic.version = 11 : i64} {
  func.func @_linear_kernel(%arg0: i32, %arg1: i32, %arg2: i32, %arg3: memref<64x128xf32, #tpu.memory_space<vmem>>, %arg4: memref<128x256xbf16, #tpu.memory_space<vmem>>, %arg5: memref<1x256xf32, #tpu.memory_space<vmem>>, %arg6: memref<64x256xf32, #tpu.memory_space<vmem>>) attributes {dimension_semantics = [#tpu.dimension_semantics<parallel>, #tpu.dimension_semantics<parallel>, #tpu.dimension_semantics<arbitrary>], iteration_bounds = array<i64: 1, 1, 1>, scalar_prefetch = 0 : i64, scratch_operands = 0 : i64, tpu.core_type = #tpu.core_type<tc>, window_params = [{transform_indices = @transform_0, window_bounds = array<i64: 64, 128>}, {transform_indices = @transform_1, window_bounds = array<i64: 128, 256>}, {transform_indices = @transform_2, window_bounds = array<i64: 1, 256>}, {transform_indices = @transform_3, window_bounds = array<i64: 64, 256>}]} {
    %c0_i32 = arith.constant 0 : i32
    %0 = arith.cmpi eq, %arg2, %c0_i32 : i32
    %1 = arith.extui %0 : i1 to i32
    %c0_i32_0 = arith.constant 0 : i32
    %2 = arith.cmpi ne, %1, %c0_i32_0 : i32
    scf.if %2 {
      %cst_10 = arith.constant 0.000000e+00 : f32
      %13 = vector.broadcast %cst_10 : f32 to vector<64x256xf32>
      %c0_11 = arith.constant 0 : index
      %c0_12 = arith.constant 0 : index
      %14 = vector.load %arg6[%c0_11, %c0_12] : memref<64x256xf32, #tpu.memory_space<vmem>>, vector<64x256xf32>
      tpu.vector_store %arg6[%c0_11, %c0_12], %13 {strides = array<i32>} : memref<64x256xf32, #tpu.memory_space<vmem>>, vector<64x256xf32>,
    } else {
    }
    %c0 = arith.constant 0 : index
    %c0_1 = arith.constant 0 : index
    %3 = vector.load %arg6[%c0, %c0_1] : memref<64x256xf32, #tpu.memory_space<vmem>>, vector<64x256xf32>
    %c0_2 = arith.constant 0 : index
    %c0_3 = arith.constant 0 : index
    %4 = vector.load %arg3[%c0_2, %c0_3] : memref<64x128xf32, #tpu.memory_space<vmem>>, vector<64x128xf32>
    %5 = arith.truncf %4 : vector<64x128xf32> to vector<64x128xbf16>
    %c0_4 = arith.constant 0 : index
    %c0_5 = arith.constant 0 : index
    %6 = vector.load %arg4[%c0_4, %c0_5] : memref<128x256xbf16, #tpu.memory_space<vmem>>, vector<128x256xbf16>
    %cst = arith.constant dense<0.000000e+00> : vector<64x256xf32>
    %7 = tpu.matmul %5, %6, %cst {dimension_numbers = #tpu.dot_dimension_numbers<[1], [0], [0], [1], [0, 0, 1, 1], [], []>} : vector<64x128xbf16>, vector<128x256xbf16>, vector<64x256xf32> -> vector<64x256xf32>
    %8 = arith.addf %3, %7 : vector<64x256xf32>
    %c0_6 = arith.constant 0 : index
    %c0_7 = arith.constant 0 : index
    %9 = vector.load %arg6[%c0_6, %c0_7] : memref<64x256xf32, #tpu.memory_space<vmem>>, vector<64x256xf32>
    tpu.vector_store %arg6[%c0_6, %c0_7], %8 {strides = array<i32>} : memref<64x256xf32, #tpu.memory_space<vmem>>, vector<64x256xf32>,
    %c0_i32_8 = arith.constant 0 : i32
    %10 = arith.cmpi eq, %arg2, %c0_i32_8 : i32
    %11 = arith.extui %10 : i1 to i32
    %c0_i32_9 = arith.constant 0 : i32
    %12 = arith.cmpi ne, %11, %c0_i32_9 : i32
    scf.if %12 {
      %c0_10 = arith.constant 0 : index
      %c0_11 = arith.constant 0 : index
      %13 = vector.load %arg6[%c0_10, %c0_11] : memref<64x256xf32, #tpu.memory_space<vmem>>, vector<64x256xf32>
      %c0_12 = arith.constant 0 : index
      %c0_13 = arith.constant 0 : index
      %14 = vector.load %arg5[%c0_12, %c0_13] : memref<1x256xf32, #tpu.memory_space<vmem>>, vector<1x256xf32>
      %15 = vector.broadcast %14 : vector<1x256xf32> to vector<64x256xf32>
      %16 = arith.addf %13, %15 : vector<64x256xf32>
      %cst_14 = arith.constant 0.000000e+00 : f32
      %17 = vector.broadcast %cst_14 : f32 to vector<64x256xf32>
      %18 = arith.maximumf %16, %17 : vector<64x256xf32>
      %c0_15 = arith.constant 0 : index
      %c0_16 = arith.constant 0 : index
      %19 = vector.load %arg6[%c0_15, %c0_16] : memref<64x256xf32, #tpu.memory_space<vmem>>, vector<64x256xf32>
      tpu.vector_store %arg6[%c0_15, %c0_16], %18 {strides = array<i32>} : memref<64x256xf32, #tpu.memory_space<vmem>>, vector<64x256xf32>,
    } else {
    }
    return
  }
  func.func @transform_0(%arg0: i32, %arg1: i32, %arg2: i32) -> (i32, i32) {
    %c0_i32 = arith.constant 0 : i32
    return %arg0, %arg2 : i32, i32
  }
  func.func @transform_1(%arg0: i32, %arg1: i32, %arg2: i32) -> (i32, i32) {
    %c0_i32 = arith.constant 0 : i32
    return %arg2, %arg1 : i32, i32
  }
  func.func @transform_2(%arg0: i32, %arg1: i32, %arg2: i32) -> (i32, i32) {
    %c0_i32 = arith.constant 0 : i32
    %c0_i32_0 = arith.constant 0 : i32
    return %c0_i32, %arg1 : i32, i32
  }
  func.func @transform_3(%arg0: i32, %arg1: i32, %arg2: i32) -> (i32, i32) {
    %c0_i32 = arith.constant 0 : i32
    return %arg0, %arg1 : i32, i32
  }
}

module attributes {stable_mosaic.version = 11 : i64} {
  func.func @_linear_add_ln_kernel(%arg0: i32, %arg1: i32, %arg2: memref<64x256xf32, #tpu.memory_space<vmem>>, %arg3: memref<256x128xbf16, #tpu.memory_space<vmem>>, %arg4: memref<1x128xf32, #tpu.memory_space<vmem>>, %arg5: memref<64x128xf32, #tpu.memory_space<vmem>>, %arg6: memref<1x128xf32, #tpu.memory_space<vmem>>, %arg7: memref<1x128xf32, #tpu.memory_space<vmem>>, %arg8: memref<64x128xf32, #tpu.memory_space<vmem>>) attributes {dimension_semantics = [#tpu.dimension_semantics<parallel>, #tpu.dimension_semantics<arbitrary>], iteration_bounds = array<i64: 1, 1>, scalar_prefetch = 0 : i64, scratch_operands = 0 : i64, tpu.core_type = #tpu.core_type<tc>, window_params = [{transform_indices = @transform_0, window_bounds = array<i64: 64, 256>}, {transform_indices = @transform_1, window_bounds = array<i64: 256, 128>}, {pipeline_mode = #tpu.pipeline_mode<synchronous>, transform_indices = @transform_2, window_bounds = array<i64: 1, 128>}, {transform_indices = @transform_3, window_bounds = array<i64: 64, 128>}, {pipeline_mode = #tpu.pipeline_mode<synchronous>, transform_indices = @transform_4, window_bounds = array<i64: 1, 128>}, {pipeline_mode = #tpu.pipeline_mode<synchronous>, transform_indices = @transform_5, window_bounds = array<i64: 1, 128>}, {transform_indices = @transform_6, window_bounds = array<i64: 64, 128>}]} {
    %c0_i32 = arith.constant 0 : i32
    %0 = arith.cmpi eq, %arg1, %c0_i32 : i32
    %1 = arith.extui %0 : i1 to i32
    %c0_i32_0 = arith.constant 0 : i32
    %2 = arith.cmpi ne, %1, %c0_i32_0 : i32
    scf.if %2 {
      %cst_10 = arith.constant 0.000000e+00 : f32
      %13 = vector.broadcast %cst_10 : f32 to vector<64x128xf32>
      %c0_11 = arith.constant 0 : index
      %c0_12 = arith.constant 0 : index
      %14 = vector.load %arg8[%c0_11, %c0_12] : memref<64x128xf32, #tpu.memory_space<vmem>>, vector<64x128xf32>
      tpu.vector_store %arg8[%c0_11, %c0_12], %13 {strides = array<i32>} : memref<64x128xf32, #tpu.memory_space<vmem>>, vector<64x128xf32>,
    } else {
    }
    %c0 = arith.constant 0 : index
    %c0_1 = arith.constant 0 : index
    %3 = vector.load %arg8[%c0, %c0_1] : memref<64x128xf32, #tpu.memory_space<vmem>>, vector<64x128xf32>
    %c0_2 = arith.constant 0 : index
    %c0_3 = arith.constant 0 : index
    %4 = vector.load %arg2[%c0_2, %c0_3] : memref<64x256xf32, #tpu.memory_space<vmem>>, vector<64x256xf32>
    %5 = arith.truncf %4 : vector<64x256xf32> to vector<64x256xbf16>
    %c0_4 = arith.constant 0 : index
    %c0_5 = arith.constant 0 : index
    %6 = vector.load %arg3[%c0_4, %c0_5] : memref<256x128xbf16, #tpu.memory_space<vmem>>, vector<256x128xbf16>
    %cst = arith.constant dense<0.000000e+00> : vector<64x128xf32>
    %7 = tpu.matmul %5, %6, %cst {dimension_numbers = #tpu.dot_dimension_numbers<[1], [0], [0], [1], [0, 0, 1, 1], [], []>} : vector<64x256xbf16>, vector<256x128xbf16>, vector<64x128xf32> -> vector<64x128xf32>
    %8 = arith.addf %3, %7 : vector<64x128xf32>
    %c0_6 = arith.constant 0 : index
    %c0_7 = arith.constant 0 : index
    %9 = vector.load %arg8[%c0_6, %c0_7] : memref<64x128xf32, #tpu.memory_space<vmem>>, vector<64x128xf32>
    tpu.vector_store %arg8[%c0_6, %c0_7], %8 {strides = array<i32>} : memref<64x128xf32, #tpu.memory_space<vmem>>, vector<64x128xf32>,
    %c0_i32_8 = arith.constant 0 : i32
    %10 = arith.cmpi eq, %arg1, %c0_i32_8 : i32
    %11 = arith.extui %10 : i1 to i32
    %c0_i32_9 = arith.constant 0 : i32
    %12 = arith.cmpi ne, %11, %c0_i32_9 : i32
    scf.if %12 {
      %c0_10 = arith.constant 0 : index
      %c0_11 = arith.constant 0 : index
      %13 = vector.load %arg8[%c0_10, %c0_11] : memref<64x128xf32, #tpu.memory_space<vmem>>, vector<64x128xf32>
      %c0_12 = arith.constant 0 : index
      %c0_13 = arith.constant 0 : index
      %14 = vector.load %arg4[%c0_12, %c0_13] : memref<1x128xf32, #tpu.memory_space<vmem>>, vector<1x128xf32>
      %15 = vector.broadcast %14 : vector<1x128xf32> to vector<64x128xf32>
      %16 = arith.addf %13, %15 : vector<64x128xf32>
      %c0_14 = arith.constant 0 : index
      %c0_15 = arith.constant 0 : index
      %17 = vector.load %arg5[%c0_14, %c0_15] : memref<64x128xf32, #tpu.memory_space<vmem>>, vector<64x128xf32>
      %18 = arith.addf %16, %17 : vector<64x128xf32>
      %cst_16 = arith.constant dense<0.000000e+00> : vector<64xf32>
      %19 = vector.multi_reduction <add>, %18, %cst_16 [1] : vector<64x128xf32> to vector<64xf32>
      %20 = vector.shape_cast %19 : vector<64xf32> to vector<64x1xf32>
      %cst_17 = arith.constant 1.280000e+02 : f32
      %21 = vector.broadcast %cst_17 : f32 to vector<64x1xf32>
      %22 = arith.divf %20, %21 : vector<64x1xf32>
      %23 = vector.broadcast %22 : vector<64x1xf32> to vector<64x128xf32>
      %24 = arith.subf %18, %23 : vector<64x128xf32>
      %25 = arith.mulf %24, %24 : vector<64x128xf32>
      %cst_18 = arith.constant dense<0.000000e+00> : vector<64xf32>
      %26 = vector.multi_reduction <add>, %25, %cst_18 [1] : vector<64x128xf32> to vector<64xf32>
      %27 = vector.shape_cast %26 : vector<64xf32> to vector<64x1xf32>
      %cst_19 = arith.constant 1.280000e+02 : f32
      %28 = vector.broadcast %cst_19 : f32 to vector<64x1xf32>
      %29 = arith.divf %27, %28 : vector<64x1xf32>
      %cst_20 = arith.constant 9.99999974E-6 : f32
      %30 = vector.broadcast %cst_20 : f32 to vector<64x1xf32>
      %31 = arith.addf %29, %30 : vector<64x1xf32>
      %32 = math.rsqrt %31 : vector<64x1xf32>
      %33 = vector.broadcast %32 : vector<64x1xf32> to vector<64x128xf32>
      %34 = arith.mulf %24, %33 : vector<64x128xf32>
      %c0_21 = arith.constant 0 : index
      %c0_22 = arith.constant 0 : index
      %35 = vector.load %arg6[%c0_21, %c0_22] : memref<1x128xf32, #tpu.memory_space<vmem>>, vector<1x128xf32>
      %36 = vector.broadcast %35 : vector<1x128xf32> to vector<64x128xf32>
      %37 = arith.mulf %34, %36 : vector<64x128xf32>
      %c0_23 = arith.constant 0 : index
      %c0_24 = arith.constant 0 : index
      %38 = vector.load %arg7[%c0_23, %c0_24] : memref<1x128xf32, #tpu.memory_space<vmem>>, vector<1x128xf32>
      %39 = vector.broadcast %38 : vector<1x128xf32> to vector<64x128xf32>
      %40 = arith.addf %37, %39 : vector<64x128xf32>
      %c0_25 = arith.constant 0 : index
      %c0_26 = arith.constant 0 : index
      %41 = vector.load %arg8[%c0_25, %c0_26] : memref<64x128xf32, #tpu.memory_space<vmem>>, vector<64x128xf32>
      tpu.vector_store %arg8[%c0_25, %c0_26], %40 {strides = array<i32>} : memref<64x128xf32, #tpu.memory_space<vmem>>, vector<64x128xf32>,
    } else {
    }
    return
  }
  func.func @transform_0(%arg0: i32, %arg1: i32) -> (i32, i32) {
    %c0_i32 = arith.constant 0 : i32
    return %arg0, %arg1 : i32, i32
  }
  func.func @transform_1(%arg0: i32, %arg1: i32) -> (i32, i32) {
    %c0_i32 = arith.constant 0 : i32
    %c0_i32_0 = arith.constant 0 : i32
    return %arg1, %c0_i32 : i32, i32
  }
  func.func @transform_2(%arg0: i32, %arg1: i32) -> (i32, i32) {
    %c0_i32 = arith.constant 0 : i32
    %c0_i32_0 = arith.constant 0 : i32
    %c0_i32_1 = arith.constant 0 : i32
    return %c0_i32, %c0_i32_0 : i32, i32
  }
  func.func @transform_3(%arg0: i32, %arg1: i32) -> (i32, i32) {
    %c0_i32 = arith.constant 0 : i32
    %c0_i32_0 = arith.constant 0 : i32
    return %arg0, %c0_i32 : i32, i32
  }
  func.func @transform_4(%arg0: i32, %arg1: i32) -> (i32, i32) {
    %c0_i32 = arith.constant 0 : i32
    %c0_i32_0 = arith.constant 0 : i32
    %c0_i32_1 = arith.constant 0 : i32
    return %c0_i32, %c0_i32_0 : i32, i32
  }
  func.func @transform_5(%arg0: i32, %arg1: i32) -> (i32, i32) {
    %c0_i32 = arith.constant 0 : i32
    %c0_i32_0 = arith.constant 0 : i32
    %c0_i32_1 = arith.constant 0 : i32
    return %c0_i32, %c0_i32_0 : i32, i32
  }
  func.func @transform_6(%arg0: i32, %arg1: i32) -> (i32, i32) {
    %c0_i32 = arith.constant 0 : i32
    %c0_i32_0 = arith.constant 0 : i32
    return %arg0, %c0_i32 : i32, i32
  }
}

module attributes {stable_mosaic.version = 11 : i64} {
  func.func @_linear_add_ln_kernel(%arg0: i32, %arg1: i32, %arg2: memref<64x128xf32, #tpu.memory_space<vmem>>, %arg3: memref<128x128xbf16, #tpu.memory_space<vmem>>, %arg4: memref<1x128xf32, #tpu.memory_space<vmem>>, %arg5: memref<64x128xf32, #tpu.memory_space<vmem>>, %arg6: memref<1x128xf32, #tpu.memory_space<vmem>>, %arg7: memref<1x128xf32, #tpu.memory_space<vmem>>, %arg8: memref<64x128xf32, #tpu.memory_space<vmem>>) attributes {dimension_semantics = [#tpu.dimension_semantics<parallel>, #tpu.dimension_semantics<arbitrary>], iteration_bounds = array<i64: 1, 1>, scalar_prefetch = 0 : i64, scratch_operands = 0 : i64, tpu.core_type = #tpu.core_type<tc>, window_params = [{transform_indices = @transform_0, window_bounds = array<i64: 64, 128>}, {transform_indices = @transform_1, window_bounds = array<i64: 128, 128>}, {pipeline_mode = #tpu.pipeline_mode<synchronous>, transform_indices = @transform_2, window_bounds = array<i64: 1, 128>}, {transform_indices = @transform_3, window_bounds = array<i64: 64, 128>}, {pipeline_mode = #tpu.pipeline_mode<synchronous>, transform_indices = @transform_4, window_bounds = array<i64: 1, 128>}, {pipeline_mode = #tpu.pipeline_mode<synchronous>, transform_indices = @transform_5, window_bounds = array<i64: 1, 128>}, {transform_indices = @transform_6, window_bounds = array<i64: 64, 128>}]} {
    %c0_i32 = arith.constant 0 : i32
    %0 = arith.cmpi eq, %arg1, %c0_i32 : i32
    %1 = arith.extui %0 : i1 to i32
    %c0_i32_0 = arith.constant 0 : i32
    %2 = arith.cmpi ne, %1, %c0_i32_0 : i32
    scf.if %2 {
      %cst_10 = arith.constant 0.000000e+00 : f32
      %13 = vector.broadcast %cst_10 : f32 to vector<64x128xf32>
      %c0_11 = arith.constant 0 : index
      %c0_12 = arith.constant 0 : index
      %14 = vector.load %arg8[%c0_11, %c0_12] : memref<64x128xf32, #tpu.memory_space<vmem>>, vector<64x128xf32>
      tpu.vector_store %arg8[%c0_11, %c0_12], %13 {strides = array<i32>} : memref<64x128xf32, #tpu.memory_space<vmem>>, vector<64x128xf32>,
    } else {
    }
    %c0 = arith.constant 0 : index
    %c0_1 = arith.constant 0 : index
    %3 = vector.load %arg8[%c0, %c0_1] : memref<64x128xf32, #tpu.memory_space<vmem>>, vector<64x128xf32>
    %c0_2 = arith.constant 0 : index
    %c0_3 = arith.constant 0 : index
    %4 = vector.load %arg2[%c0_2, %c0_3] : memref<64x128xf32, #tpu.memory_space<vmem>>, vector<64x128xf32>
    %5 = arith.truncf %4 : vector<64x128xf32> to vector<64x128xbf16>
    %c0_4 = arith.constant 0 : index
    %c0_5 = arith.constant 0 : index
    %6 = vector.load %arg3[%c0_4, %c0_5] : memref<128x128xbf16, #tpu.memory_space<vmem>>, vector<128x128xbf16>
    %cst = arith.constant dense<0.000000e+00> : vector<64x128xf32>
    %7 = tpu.matmul %5, %6, %cst {dimension_numbers = #tpu.dot_dimension_numbers<[1], [0], [0], [1], [0, 0, 1, 1], [], []>} : vector<64x128xbf16>, vector<128x128xbf16>, vector<64x128xf32> -> vector<64x128xf32>
    %8 = arith.addf %3, %7 : vector<64x128xf32>
    %c0_6 = arith.constant 0 : index
    %c0_7 = arith.constant 0 : index
    %9 = vector.load %arg8[%c0_6, %c0_7] : memref<64x128xf32, #tpu.memory_space<vmem>>, vector<64x128xf32>
    tpu.vector_store %arg8[%c0_6, %c0_7], %8 {strides = array<i32>} : memref<64x128xf32, #tpu.memory_space<vmem>>, vector<64x128xf32>,
    %c0_i32_8 = arith.constant 0 : i32
    %10 = arith.cmpi eq, %arg1, %c0_i32_8 : i32
    %11 = arith.extui %10 : i1 to i32
    %c0_i32_9 = arith.constant 0 : i32
    %12 = arith.cmpi ne, %11, %c0_i32_9 : i32
    scf.if %12 {
      %c0_10 = arith.constant 0 : index
      %c0_11 = arith.constant 0 : index
      %13 = vector.load %arg8[%c0_10, %c0_11] : memref<64x128xf32, #tpu.memory_space<vmem>>, vector<64x128xf32>
      %c0_12 = arith.constant 0 : index
      %c0_13 = arith.constant 0 : index
      %14 = vector.load %arg4[%c0_12, %c0_13] : memref<1x128xf32, #tpu.memory_space<vmem>>, vector<1x128xf32>
      %15 = vector.broadcast %14 : vector<1x128xf32> to vector<64x128xf32>
      %16 = arith.addf %13, %15 : vector<64x128xf32>
      %c0_14 = arith.constant 0 : index
      %c0_15 = arith.constant 0 : index
      %17 = vector.load %arg5[%c0_14, %c0_15] : memref<64x128xf32, #tpu.memory_space<vmem>>, vector<64x128xf32>
      %18 = arith.addf %16, %17 : vector<64x128xf32>
      %cst_16 = arith.constant dense<0.000000e+00> : vector<64xf32>
      %19 = vector.multi_reduction <add>, %18, %cst_16 [1] : vector<64x128xf32> to vector<64xf32>
      %20 = vector.shape_cast %19 : vector<64xf32> to vector<64x1xf32>
      %cst_17 = arith.constant 1.280000e+02 : f32
      %21 = vector.broadcast %cst_17 : f32 to vector<64x1xf32>
      %22 = arith.divf %20, %21 : vector<64x1xf32>
      %23 = vector.broadcast %22 : vector<64x1xf32> to vector<64x128xf32>
      %24 = arith.subf %18, %23 : vector<64x128xf32>
      %25 = arith.mulf %24, %24 : vector<64x128xf32>
      %cst_18 = arith.constant dense<0.000000e+00> : vector<64xf32>
      %26 = vector.multi_reduction <add>, %25, %cst_18 [1] : vector<64x128xf32> to vector<64xf32>
      %27 = vector.shape_cast %26 : vector<64xf32> to vector<64x1xf32>
      %cst_19 = arith.constant 1.280000e+02 : f32
      %28 = vector.broadcast %cst_19 : f32 to vector<64x1xf32>
      %29 = arith.divf %27, %28 : vector<64x1xf32>
      %cst_20 = arith.constant 9.99999974E-6 : f32
      %30 = vector.broadcast %cst_20 : f32 to vector<64x1xf32>
      %31 = arith.addf %29, %30 : vector<64x1xf32>
      %32 = math.rsqrt %31 : vector<64x1xf32>
      %33 = vector.broadcast %32 : vector<64x1xf32> to vector<64x128xf32>
      %34 = arith.mulf %24, %33 : vector<64x128xf32>
      %c0_21 = arith.constant 0 : index
      %c0_22 = arith.constant 0 : index
      %35 = vector.load %arg6[%c0_21, %c0_22] : memref<1x128xf32, #tpu.memory_space<vmem>>, vector<1x128xf32>
      %36 = vector.broadcast %35 : vector<1x128xf32> to vector<64x128xf32>
      %37 = arith.mulf %34, %36 : vector<64x128xf32>
      %c0_23 = arith.constant 0 : index
      %c0_24 = arith.constant 0 : index
      %38 = vector.load %arg7[%c0_23, %c0_24] : memref<1x128xf32, #tpu.memory_space<vmem>>, vector<1x128xf32>
      %39 = vector.broadcast %38 : vector<1x128xf32> to vector<64x128xf32>
      %40 = arith.addf %37, %39 : vector<64x128xf32>
      %c0_25 = arith.constant 0 : index
      %c0_26 = arith.constant 0 : index
      %41 = vector.load %arg8[%c0_25, %c0_26] : memref<64x128xf32, #tpu.memory_space<vmem>>, vector<64x128xf32>
      tpu.vector_store %arg8[%c0_25, %c0_26], %40 {strides = array<i32>} : memref<64x128xf32, #tpu.memory_space<vmem>>, vector<64x128xf32>,
    } else {
    }
    return
  }
  func.func @transform_0(%arg0: i32, %arg1: i32) -> (i32, i32) {
    %c0_i32 = arith.constant 0 : i32
    return %arg0, %arg1 : i32, i32
  }
  func.func @transform_1(%arg0: i32, %arg1: i32) -> (i32, i32) {
    %c0_i32 = arith.constant 0 : i32
    %c0_i32_0 = arith.constant 0 : i32
    return %arg1, %c0_i32 : i32, i32
  }
  func.func @transform_2(%arg0: i32, %arg1: i32) -> (i32, i32) {
    %c0_i32 = arith.constant 0 : i32
    %c0_i32_0 = arith.constant 0 : i32
    %c0_i32_1 = arith.constant 0 : i32
    return %c0_i32, %c0_i32_0 : i32, i32
  }
  func.func @transform_3(%arg0: i32, %arg1: i32) -> (i32, i32) {
    %c0_i32 = arith.constant 0 : i32
    %c0_i32_0 = arith.constant 0 : i32
    return %arg0, %c0_i32 : i32, i32
  }
  func.func @transform_4(%arg0: i32, %arg1: i32) -> (i32, i32) {
    %c0_i32 = arith.constant 0 : i32
    %c0_i32_0 = arith.constant 0 : i32
    %c0_i32_1 = arith.constant 0 : i32
    return %c0_i32, %c0_i32_0 : i32, i32
  }
  func.func @transform_5(%arg0: i32, %arg1: i32) -> (i32, i32) {
    %c0_i32 = arith.constant 0 : i32
    %c0_i32_0 = arith.constant 0 : i32
    %c0_i32_1 = arith.constant 0 : i32
    return %c0_i32, %c0_i32_0 : i32, i32
  }
  func.func @transform_6(%arg0: i32, %arg1: i32) -> (i32, i32) {
    %c0_i32 = arith.constant 0 : i32
    %c0_i32_0 = arith.constant 0 : i32
    return %arg0, %c0_i32 : i32, i32
  }
}

module attributes {stable_mosaic.version = 11 : i64} {
  func.func @_linear_kernel(%arg0: i32, %arg1: i32, %arg2: i32, %arg3: memref<64x128xf32, #tpu.memory_space<vmem>>, %arg4: memref<128x384xbf16, #tpu.memory_space<vmem>>, %arg5: memref<1x384xf32, #tpu.memory_space<vmem>>, %arg6: memref<64x384xf32, #tpu.memory_space<vmem>>) attributes {dimension_semantics = [#tpu.dimension_semantics<parallel>, #tpu.dimension_semantics<parallel>, #tpu.dimension_semantics<arbitrary>], iteration_bounds = array<i64: 1, 1, 1>, scalar_prefetch = 0 : i64, scratch_operands = 0 : i64, tpu.core_type = #tpu.core_type<tc>, window_params = [{transform_indices = @transform_0, window_bounds = array<i64: 64, 128>}, {transform_indices = @transform_1, window_bounds = array<i64: 128, 384>}, {transform_indices = @transform_2, window_bounds = array<i64: 1, 384>}, {transform_indices = @transform_3, window_bounds = array<i64: 64, 384>}]} {
    %c0_i32 = arith.constant 0 : i32
    %0 = arith.cmpi eq, %arg2, %c0_i32 : i32
    %1 = arith.extui %0 : i1 to i32
    %c0_i32_0 = arith.constant 0 : i32
    %2 = arith.cmpi ne, %1, %c0_i32_0 : i32
    scf.if %2 {
      %cst_10 = arith.constant 0.000000e+00 : f32
      %13 = vector.broadcast %cst_10 : f32 to vector<64x384xf32>
      %c0_11 = arith.constant 0 : index
      %c0_12 = arith.constant 0 : index
      %14 = vector.load %arg6[%c0_11, %c0_12] : memref<64x384xf32, #tpu.memory_space<vmem>>, vector<64x384xf32>
      tpu.vector_store %arg6[%c0_11, %c0_12], %13 {strides = array<i32>} : memref<64x384xf32, #tpu.memory_space<vmem>>, vector<64x384xf32>,
    } else {
    }
    %c0 = arith.constant 0 : index
    %c0_1 = arith.constant 0 : index
    %3 = vector.load %arg6[%c0, %c0_1] : memref<64x384xf32, #tpu.memory_space<vmem>>, vector<64x384xf32>
    %c0_2 = arith.constant 0 : index
    %c0_3 = arith.constant 0 : index
    %4 = vector.load %arg3[%c0_2, %c0_3] : memref<64x128xf32, #tpu.memory_space<vmem>>, vector<64x128xf32>
    %5 = arith.truncf %4 : vector<64x128xf32> to vector<64x128xbf16>
    %c0_4 = arith.constant 0 : index
    %c0_5 = arith.constant 0 : index
    %6 = vector.load %arg4[%c0_4, %c0_5] : memref<128x384xbf16, #tpu.memory_space<vmem>>, vector<128x384xbf16>
    %cst = arith.constant dense<0.000000e+00> : vector<64x384xf32>
    %7 = tpu.matmul %5, %6, %cst {dimension_numbers = #tpu.dot_dimension_numbers<[1], [0], [0], [1], [0, 0, 1, 1], [], []>} : vector<64x128xbf16>, vector<128x384xbf16>, vector<64x384xf32> -> vector<64x384xf32>
    %8 = arith.addf %3, %7 : vector<64x384xf32>
    %c0_6 = arith.constant 0 : index
    %c0_7 = arith.constant 0 : index
    %9 = vector.load %arg6[%c0_6, %c0_7] : memref<64x384xf32, #tpu.memory_space<vmem>>, vector<64x384xf32>
    tpu.vector_store %arg6[%c0_6, %c0_7], %8 {strides = array<i32>} : memref<64x384xf32, #tpu.memory_space<vmem>>, vector<64x384xf32>,
    %c0_i32_8 = arith.constant 0 : i32
    %10 = arith.cmpi eq, %arg2, %c0_i32_8 : i32
    %11 = arith.extui %10 : i1 to i32
    %c0_i32_9 = arith.constant 0 : i32
    %12 = arith.cmpi ne, %11, %c0_i32_9 : i32
    scf.if %12 {
      %c0_10 = arith.constant 0 : index
      %c0_11 = arith.constant 0 : index
      %13 = vector.load %arg6[%c0_10, %c0_11] : memref<64x384xf32, #tpu.memory_space<vmem>>, vector<64x384xf32>
      %c0_12 = arith.constant 0 : index
      %c0_13 = arith.constant 0 : index
      %14 = vector.load %arg5[%c0_12, %c0_13] : memref<1x384xf32, #tpu.memory_space<vmem>>, vector<1x384xf32>
      %15 = vector.broadcast %14 : vector<1x384xf32> to vector<64x384xf32>
      %16 = arith.addf %13, %15 : vector<64x384xf32>
      %c0_14 = arith.constant 0 : index
      %c0_15 = arith.constant 0 : index
      %17 = vector.load %arg6[%c0_14, %c0_15] : memref<64x384xf32, #tpu.memory_space<vmem>>, vector<64x384xf32>
      tpu.vector_store %arg6[%c0_14, %c0_15], %16 {strides = array<i32>} : memref<64x384xf32, #tpu.memory_space<vmem>>, vector<64x384xf32>,
    } else {
    }
    return
  }
  func.func @transform_0(%arg0: i32, %arg1: i32, %arg2: i32) -> (i32, i32) {
    %c0_i32 = arith.constant 0 : i32
    return %arg0, %arg2 : i32, i32
  }
  func.func @transform_1(%arg0: i32, %arg1: i32, %arg2: i32) -> (i32, i32) {
    %c0_i32 = arith.constant 0 : i32
    return %arg2, %arg1 : i32, i32
  }
  func.func @transform_2(%arg0: i32, %arg1: i32, %arg2: i32) -> (i32, i32) {
    %c0_i32 = arith.constant 0 : i32
    %c0_i32_0 = arith.constant 0 : i32
    return %c0_i32, %arg1 : i32, i32
  }
  func.func @transform_3(%arg0: i32, %arg1: i32, %arg2: i32) -> (i32, i32) {
    %c0_i32 = arith.constant 0 : i32
    return %arg0, %arg1 : i32, i32
  }
}

module attributes {stable_mosaic.version = 11 : i64} {
  func.func @_linear_kernel(%arg0: i32, %arg1: i32, %arg2: i32, %arg3: memref<64x128xf32, #tpu.memory_space<vmem>>, %arg4: memref<128x256xbf16, #tpu.memory_space<vmem>>, %arg5: memref<1x256xf32, #tpu.memory_space<vmem>>, %arg6: memref<64x256xf32, #tpu.memory_space<vmem>>) attributes {dimension_semantics = [#tpu.dimension_semantics<parallel>, #tpu.dimension_semantics<parallel>, #tpu.dimension_semantics<arbitrary>], iteration_bounds = array<i64: 1, 1, 1>, scalar_prefetch = 0 : i64, scratch_operands = 0 : i64, tpu.core_type = #tpu.core_type<tc>, window_params = [{transform_indices = @transform_0, window_bounds = array<i64: 64, 128>}, {transform_indices = @transform_1, window_bounds = array<i64: 128, 256>}, {transform_indices = @transform_2, window_bounds = array<i64: 1, 256>}, {transform_indices = @transform_3, window_bounds = array<i64: 64, 256>}]} {
    %c0_i32 = arith.constant 0 : i32
    %0 = arith.cmpi eq, %arg2, %c0_i32 : i32
    %1 = arith.extui %0 : i1 to i32
    %c0_i32_0 = arith.constant 0 : i32
    %2 = arith.cmpi ne, %1, %c0_i32_0 : i32
    scf.if %2 {
      %cst_10 = arith.constant 0.000000e+00 : f32
      %13 = vector.broadcast %cst_10 : f32 to vector<64x256xf32>
      %c0_11 = arith.constant 0 : index
      %c0_12 = arith.constant 0 : index
      %14 = vector.load %arg6[%c0_11, %c0_12] : memref<64x256xf32, #tpu.memory_space<vmem>>, vector<64x256xf32>
      tpu.vector_store %arg6[%c0_11, %c0_12], %13 {strides = array<i32>} : memref<64x256xf32, #tpu.memory_space<vmem>>, vector<64x256xf32>,
    } else {
    }
    %c0 = arith.constant 0 : index
    %c0_1 = arith.constant 0 : index
    %3 = vector.load %arg6[%c0, %c0_1] : memref<64x256xf32, #tpu.memory_space<vmem>>, vector<64x256xf32>
    %c0_2 = arith.constant 0 : index
    %c0_3 = arith.constant 0 : index
    %4 = vector.load %arg3[%c0_2, %c0_3] : memref<64x128xf32, #tpu.memory_space<vmem>>, vector<64x128xf32>
    %5 = arith.truncf %4 : vector<64x128xf32> to vector<64x128xbf16>
    %c0_4 = arith.constant 0 : index
    %c0_5 = arith.constant 0 : index
    %6 = vector.load %arg4[%c0_4, %c0_5] : memref<128x256xbf16, #tpu.memory_space<vmem>>, vector<128x256xbf16>
    %cst = arith.constant dense<0.000000e+00> : vector<64x256xf32>
    %7 = tpu.matmul %5, %6, %cst {dimension_numbers = #tpu.dot_dimension_numbers<[1], [0], [0], [1], [0, 0, 1, 1], [], []>} : vector<64x128xbf16>, vector<128x256xbf16>, vector<64x256xf32> -> vector<64x256xf32>
    %8 = arith.addf %3, %7 : vector<64x256xf32>
    %c0_6 = arith.constant 0 : index
    %c0_7 = arith.constant 0 : index
    %9 = vector.load %arg6[%c0_6, %c0_7] : memref<64x256xf32, #tpu.memory_space<vmem>>, vector<64x256xf32>
    tpu.vector_store %arg6[%c0_6, %c0_7], %8 {strides = array<i32>} : memref<64x256xf32, #tpu.memory_space<vmem>>, vector<64x256xf32>,
    %c0_i32_8 = arith.constant 0 : i32
    %10 = arith.cmpi eq, %arg2, %c0_i32_8 : i32
    %11 = arith.extui %10 : i1 to i32
    %c0_i32_9 = arith.constant 0 : i32
    %12 = arith.cmpi ne, %11, %c0_i32_9 : i32
    scf.if %12 {
      %c0_10 = arith.constant 0 : index
      %c0_11 = arith.constant 0 : index
      %13 = vector.load %arg6[%c0_10, %c0_11] : memref<64x256xf32, #tpu.memory_space<vmem>>, vector<64x256xf32>
      %c0_12 = arith.constant 0 : index
      %c0_13 = arith.constant 0 : index
      %14 = vector.load %arg5[%c0_12, %c0_13] : memref<1x256xf32, #tpu.memory_space<vmem>>, vector<1x256xf32>
      %15 = vector.broadcast %14 : vector<1x256xf32> to vector<64x256xf32>
      %16 = arith.addf %13, %15 : vector<64x256xf32>
      %c0_14 = arith.constant 0 : index
      %c0_15 = arith.constant 0 : index
      %17 = vector.load %arg6[%c0_14, %c0_15] : memref<64x256xf32, #tpu.memory_space<vmem>>, vector<64x256xf32>
      tpu.vector_store %arg6[%c0_14, %c0_15], %16 {strides = array<i32>} : memref<64x256xf32, #tpu.memory_space<vmem>>, vector<64x256xf32>,
    } else {
    }
    return
  }
  func.func @transform_0(%arg0: i32, %arg1: i32, %arg2: i32) -> (i32, i32) {
    %c0_i32 = arith.constant 0 : i32
    return %arg0, %arg2 : i32, i32
  }
  func.func @transform_1(%arg0: i32, %arg1: i32, %arg2: i32) -> (i32, i32) {
    %c0_i32 = arith.constant 0 : i32
    return %arg2, %arg1 : i32, i32
  }
  func.func @transform_2(%arg0: i32, %arg1: i32, %arg2: i32) -> (i32, i32) {
    %c0_i32 = arith.constant 0 : i32
    %c0_i32_0 = arith.constant 0 : i32
    return %c0_i32, %arg1 : i32, i32
  }
  func.func @transform_3(%arg0: i32, %arg1: i32, %arg2: i32) -> (i32, i32) {
    %c0_i32 = arith.constant 0 : i32
    return %arg0, %arg1 : i32, i32
  }
}

module attributes {stable_mosaic.version = 11 : i64} {
  func.func @_linear_kernel(%arg0: i32, %arg1: i32, %arg2: i32, %arg3: memref<64x128xf32, #tpu.memory_space<vmem>>, %arg4: memref<128x128xbf16, #tpu.memory_space<vmem>>, %arg5: memref<1x128xf32, #tpu.memory_space<vmem>>, %arg6: memref<64x128xf32, #tpu.memory_space<vmem>>) attributes {dimension_semantics = [#tpu.dimension_semantics<parallel>, #tpu.dimension_semantics<parallel>, #tpu.dimension_semantics<arbitrary>], iteration_bounds = array<i64: 1, 1, 1>, scalar_prefetch = 0 : i64, scratch_operands = 0 : i64, tpu.core_type = #tpu.core_type<tc>, window_params = [{transform_indices = @transform_0, window_bounds = array<i64: 64, 128>}, {transform_indices = @transform_1, window_bounds = array<i64: 128, 128>}, {transform_indices = @transform_2, window_bounds = array<i64: 1, 128>}, {transform_indices = @transform_3, window_bounds = array<i64: 64, 128>}]} {
    %c0_i32 = arith.constant 0 : i32
    %0 = arith.cmpi eq, %arg2, %c0_i32 : i32
    %1 = arith.extui %0 : i1 to i32
    %c0_i32_0 = arith.constant 0 : i32
    %2 = arith.cmpi ne, %1, %c0_i32_0 : i32
    scf.if %2 {
      %cst_10 = arith.constant 0.000000e+00 : f32
      %13 = vector.broadcast %cst_10 : f32 to vector<64x128xf32>
      %c0_11 = arith.constant 0 : index
      %c0_12 = arith.constant 0 : index
      %14 = vector.load %arg6[%c0_11, %c0_12] : memref<64x128xf32, #tpu.memory_space<vmem>>, vector<64x128xf32>
      tpu.vector_store %arg6[%c0_11, %c0_12], %13 {strides = array<i32>} : memref<64x128xf32, #tpu.memory_space<vmem>>, vector<64x128xf32>,
    } else {
    }
    %c0 = arith.constant 0 : index
    %c0_1 = arith.constant 0 : index
    %3 = vector.load %arg6[%c0, %c0_1] : memref<64x128xf32, #tpu.memory_space<vmem>>, vector<64x128xf32>
    %c0_2 = arith.constant 0 : index
    %c0_3 = arith.constant 0 : index
    %4 = vector.load %arg3[%c0_2, %c0_3] : memref<64x128xf32, #tpu.memory_space<vmem>>, vector<64x128xf32>
    %5 = arith.truncf %4 : vector<64x128xf32> to vector<64x128xbf16>
    %c0_4 = arith.constant 0 : index
    %c0_5 = arith.constant 0 : index
    %6 = vector.load %arg4[%c0_4, %c0_5] : memref<128x128xbf16, #tpu.memory_space<vmem>>, vector<128x128xbf16>
    %cst = arith.constant dense<0.000000e+00> : vector<64x128xf32>
    %7 = tpu.matmul %5, %6, %cst {dimension_numbers = #tpu.dot_dimension_numbers<[1], [0], [0], [1], [0, 0, 1, 1], [], []>} : vector<64x128xbf16>, vector<128x128xbf16>, vector<64x128xf32> -> vector<64x128xf32>
    %8 = arith.addf %3, %7 : vector<64x128xf32>
    %c0_6 = arith.constant 0 : index
    %c0_7 = arith.constant 0 : index
    %9 = vector.load %arg6[%c0_6, %c0_7] : memref<64x128xf32, #tpu.memory_space<vmem>>, vector<64x128xf32>
    tpu.vector_store %arg6[%c0_6, %c0_7], %8 {strides = array<i32>} : memref<64x128xf32, #tpu.memory_space<vmem>>, vector<64x128xf32>,
    %c0_i32_8 = arith.constant 0 : i32
    %10 = arith.cmpi eq, %arg2, %c0_i32_8 : i32
    %11 = arith.extui %10 : i1 to i32
    %c0_i32_9 = arith.constant 0 : i32
    %12 = arith.cmpi ne, %11, %c0_i32_9 : i32
    scf.if %12 {
      %c0_10 = arith.constant 0 : index
      %c0_11 = arith.constant 0 : index
      %13 = vector.load %arg6[%c0_10, %c0_11] : memref<64x128xf32, #tpu.memory_space<vmem>>, vector<64x128xf32>
      %c0_12 = arith.constant 0 : index
      %c0_13 = arith.constant 0 : index
      %14 = vector.load %arg5[%c0_12, %c0_13] : memref<1x128xf32, #tpu.memory_space<vmem>>, vector<1x128xf32>
      %15 = vector.broadcast %14 : vector<1x128xf32> to vector<64x128xf32>
      %16 = arith.addf %13, %15 : vector<64x128xf32>
      %c0_14 = arith.constant 0 : index
      %c0_15 = arith.constant 0 : index
      %17 = vector.load %arg6[%c0_14, %c0_15] : memref<64x128xf32, #tpu.memory_space<vmem>>, vector<64x128xf32>
      tpu.vector_store %arg6[%c0_14, %c0_15], %16 {strides = array<i32>} : memref<64x128xf32, #tpu.memory_space<vmem>>, vector<64x128xf32>,
    } else {
    }
    return
  }
  func.func @transform_0(%arg0: i32, %arg1: i32, %arg2: i32) -> (i32, i32) {
    %c0_i32 = arith.constant 0 : i32
    return %arg0, %arg2 : i32, i32
  }
  func.func @transform_1(%arg0: i32, %arg1: i32, %arg2: i32) -> (i32, i32) {
    %c0_i32 = arith.constant 0 : i32
    return %arg2, %arg1 : i32, i32
  }
  func.func @transform_2(%arg0: i32, %arg1: i32, %arg2: i32) -> (i32, i32) {
    %c0_i32 = arith.constant 0 : i32
    %c0_i32_0 = arith.constant 0 : i32
    return %c0_i32, %arg1 : i32, i32
  }
  func.func @transform_3(%arg0: i32, %arg1: i32, %arg2: i32) -> (i32, i32) {
    %c0_i32 = arith.constant 0 : i32
    return %arg0, %arg1 : i32, i32
  }
}

module attributes {stable_mosaic.version = 11 : i64} {
  func.func @_embed_posenc_kernel(%arg0: i32, %arg1: i32, %arg2: memref<64x1xi32, #tpu.memory_space<vmem>>, %arg3: memref<256x128xf32, #tpu.memory_space<vmem>>, %arg4: memref<64x128xf32, #tpu.memory_space<vmem>>, %arg5: memref<64x128xf32, #tpu.memory_space<vmem>>) attributes {dimension_semantics = [#tpu.dimension_semantics<parallel>, #tpu.dimension_semantics<arbitrary>], iteration_bounds = array<i64: 1, 1>, scalar_prefetch = 0 : i64, scratch_operands = 0 : i64, tpu.core_type = #tpu.core_type<tc>, window_params = [{transform_indices = @transform_0, window_bounds = array<i64: 64, 1>}, {transform_indices = @transform_1, window_bounds = array<i64: 256, 128>}, {transform_indices = @transform_2, window_bounds = array<i64: 64, 128>}, {transform_indices = @transform_3, window_bounds = array<i64: 64, 128>}]} {
    %c0_i32 = arith.constant 0 : i32
    %0 = arith.cmpi eq, %arg1, %c0_i32 : i32
    %1 = arith.extui %0 : i1 to i32
    %c0_i32_0 = arith.constant 0 : i32
    %2 = arith.cmpi ne, %1, %c0_i32_0 : i32
    scf.if %2 {
      %cst_10 = arith.constant 0.000000e+00 : f32
      %20 = vector.broadcast %cst_10 : f32 to vector<64x128xf32>
      %c0_11 = arith.constant 0 : index
      %c0_12 = arith.constant 0 : index
      %21 = vector.load %arg5[%c0_11, %c0_12] : memref<64x128xf32, #tpu.memory_space<vmem>>, vector<64x128xf32>
      tpu.vector_store %arg5[%c0_11, %c0_12], %20 {strides = array<i32>} : memref<64x128xf32, #tpu.memory_space<vmem>>, vector<64x128xf32>,
    } else {
    }
    %c0 = arith.constant 0 : index
    %c0_1 = arith.constant 0 : index
    %3 = vector.load %arg2[%c0, %c0_1] : memref<64x1xi32, #tpu.memory_space<vmem>>, vector<64x1xi32>
    %c256_i32 = arith.constant 256 : i32
    %4 = arith.muli %arg1, %c256_i32 : i32
    %5 = vector.broadcast %4 : i32 to vector<64x1xi32>
    %6 = arith.subi %3, %5 : vector<64x1xi32>
    %7 = tpu.iota {dimensions = array<i32: 1>} : vector<64x256xi32>
    %8 = vector.broadcast %6 : vector<64x1xi32> to vector<64x256xi32>
    %9 = arith.cmpi eq, %8, %7 : vector<64x256xi32>
    %10 = arith.extui %9 : vector<64x256xi1> to vector<64x256xi32>
    %11 = arith.sitofp %10 : vector<64x256xi32> to vector<64x256xf32>
    %c0_2 = arith.constant 0 : index
    %c0_3 = arith.constant 0 : index
    %12 = vector.load %arg5[%c0_2, %c0_3] : memref<64x128xf32, #tpu.memory_space<vmem>>, vector<64x128xf32>
    %c0_4 = arith.constant 0 : index
    %c0_5 = arith.constant 0 : index
    %13 = vector.load %arg3[%c0_4, %c0_5] : memref<256x128xf32, #tpu.memory_space<vmem>>, vector<256x128xf32>
    %cst = arith.constant dense<0.000000e+00> : vector<64x128xf32>
    %14 = tpu.matmul %11, %13, %cst {dimension_numbers = #tpu.dot_dimension_numbers<[1], [0], [0], [1], [0, 0, 1, 1], [], []>} : vector<64x256xf32>, vector<256x128xf32>, vector<64x128xf32> -> vector<64x128xf32>
    %15 = arith.addf %12, %14 : vector<64x128xf32>
    %c0_6 = arith.constant 0 : index
    %c0_7 = arith.constant 0 : index
    %16 = vector.load %arg5[%c0_6, %c0_7] : memref<64x128xf32, #tpu.memory_space<vmem>>, vector<64x128xf32>
    tpu.vector_store %arg5[%c0_6, %c0_7], %15 {strides = array<i32>} : memref<64x128xf32, #tpu.memory_space<vmem>>, vector<64x128xf32>,
    %c0_i32_8 = arith.constant 0 : i32
    %17 = arith.cmpi eq, %arg1, %c0_i32_8 : i32
    %18 = arith.extui %17 : i1 to i32
    %c0_i32_9 = arith.constant 0 : i32
    %19 = arith.cmpi ne, %18, %c0_i32_9 : i32
    scf.if %19 {
      %c0_10 = arith.constant 0 : index
      %c0_11 = arith.constant 0 : index
      %20 = vector.load %arg5[%c0_10, %c0_11] : memref<64x128xf32, #tpu.memory_space<vmem>>, vector<64x128xf32>
      %cst_12 = arith.constant 11.3137083 : f32
      %21 = vector.broadcast %cst_12 : f32 to vector<64x128xf32>
      %22 = arith.mulf %20, %21 : vector<64x128xf32>
      %c0_13 = arith.constant 0 : index
      %c0_14 = arith.constant 0 : index
      %23 = vector.load %arg4[%c0_13, %c0_14] : memref<64x128xf32, #tpu.memory_space<vmem>>, vector<64x128xf32>
      %24 = arith.addf %22, %23 : vector<64x128xf32>
      %c0_15 = arith.constant 0 : index
      %c0_16 = arith.constant 0 : index
      %25 = vector.load %arg5[%c0_15, %c0_16] : memref<64x128xf32, #tpu.memory_space<vmem>>, vector<64x128xf32>
      tpu.vector_store %arg5[%c0_15, %c0_16], %24 {strides = array<i32>} : memref<64x128xf32, #tpu.memory_space<vmem>>, vector<64x128xf32>,
    } else {
    }
    return
  }
  func.func @transform_0(%arg0: i32, %arg1: i32) -> (i32, i32) {
    %c0_i32 = arith.constant 0 : i32
    %c0_i32_0 = arith.constant 0 : i32
    return %arg0, %c0_i32 : i32, i32
  }
  func.func @transform_1(%arg0: i32, %arg1: i32) -> (i32, i32) {
    %c0_i32 = arith.constant 0 : i32
    %c0_i32_0 = arith.constant 0 : i32
    return %arg1, %c0_i32 : i32, i32
  }
  func.func @transform_2(%arg0: i32, %arg1: i32) -> (i32, i32) {
    %c0_i32 = arith.constant 0 : i32
    %c0_i32_0 = arith.constant 0 : i32
    return %arg0, %c0_i32 : i32, i32
  }
  func.func @transform_3(%arg0: i32, %arg1: i32) -> (i32, i32) {
    %c0_i32 = arith.constant 0 : i32
    %c0_i32_0 = arith.constant 0 : i32
    return %arg0, %c0_i32 : i32, i32
  }
}

</mosaic_0001>

<llo_original>
// kernel: seq2seq_forward_pallas.31
$region0: #{seq2seq_forward_pallas.31}
  #allocation0 [shape = 'u32[]', space=smem, size = 0x4, offset = 0x4, fixed_abs, tag = 'smem constant byte address 0x4 - core index']
  #allocation1 [shape = 'u32[72,128]{1,0:T(1,128)}', space=vmem, size = 0x9000, scoped, tag = 'internal scratch']
  %s0 = inlined_call_operand.vmem [shape: s32[64,1], index: 0, kind: input, shape index: {}]
  %s1 = inlined_call_operand.hbm [shape: f32[256,128], index: 1, kind: input, shape index: {}]
  %s2 = inlined_call_operand.vmem [shape: f32[64,128], index: 2, kind: input, shape index: {}]
  %s3 = inlined_call_operand.vmem [shape: f32[64,128], index: 3, kind: output, shape index: {}]
  %s4 = sld [smem:[#allocation0]]
  $region34: #{seq2seq_forward_pallas.31} parent=0
    _
  %s6 = ssub.s32 1, %s4
  %s7 = scalar_select 0, %s6, %s4
  $region1: #{seq2seq_forward_pallas.31} parent=0
    #allocation2 [shape = 'u8[131072]{0}', space=vmem, size = 0x20000, scoped, tag = 'input window, operand 1, single buffered']
    #allocation3 [shape = 's32[1]{0}', space=sflag, size = 0x4, scoped, tag = 'scoped memory for seq2seq_forward_pallas.31']
    %8 = vsyncpa [#allocation3], 0
    // Predicated region
    $region2: #{seq2seq_forward_pallas.31} parent=1 // pred_check
      _
    $region3: #{seq2seq_forward_pallas.31} parent=1 // pred_check_branch
      %10 = sbr.rel (0) target = $region5
    $region4: #{seq2seq_forward_pallas.31} parent=1 // pred_region
      _
    $region5: #{seq2seq_forward_pallas.31} parent=1 // pred_fallthru
      _
    // Predicated region
    $region6: #{seq2seq_forward_pallas.31} parent=1 // pred_check
      _
    $region7: #{seq2seq_forward_pallas.31} parent=1 // pred_check_branch
      %12 = sbr.rel (0) target = $region9
    $region8: #{seq2seq_forward_pallas.31} parent=1 // pred_region
      %14 = vsyncadd [#allocation3], 0
      %s15 = sshll.u32 %s1, 4
      %s16 = int_to_ptr.hbm [resolvable:$true] %s15
      %s17 = sshll.u32 [#allocation2], 4
      %s18 = int_to_ptr.vmem [resolvable:$true] %s17
      %23 = dma.hbm_to_vmem [thread:$0]  %s16, 4096, %s18, [#allocation3], 128, 128, 8
    $region9: #{seq2seq_forward_pallas.31} parent=1 // pred_fallthru
      _
    // Predicated region
    $region10: #{seq2seq_forward_pallas.31} parent=1 // pred_check
      _
    $region11: #{seq2seq_forward_pallas.31} parent=1 // pred_check_branch
      %25 = sbr.rel (0) target = $region13
    $region12: #{seq2seq_forward_pallas.31} parent=1 // pred_region
      _
    $region13: #{seq2seq_forward_pallas.31} parent=1 // pred_fallthru
      _
    // Predicated region
    $region14: #{seq2seq_forward_pallas.31} parent=1 // pred_check
      _
    $region15: #{seq2seq_forward_pallas.31} parent=1 // pred_check_branch
      %27 = sbr.rel (0) target = $region17
    $region16: #{seq2seq_forward_pallas.31} parent=1 // pred_region
      %29 = dma.done [#allocation3], 4096
    $region17: #{seq2seq_forward_pallas.31} parent=1 // pred_fallthru
      _
    %p30 = scmp.eq.s32.totalorder 0, 0
    // Predicated region
    $region18: #{seq2seq_forward_pallas.31} parent=1 // pred_check
      %p31 = pneg %p30
    $region19: #{seq2seq_forward_pallas.31} parent=1 // pred_check_branch
      %33 = sbr.rel (%p31) target = $region21
    $region20: #{seq2seq_forward_pallas.31} parent=1 // pred_region
      %34 = vst [vmem:[%s3] sm:$0xff] 0.0
      %35 = vst [vmem:[%s3 + $0x8] sm:$0xff] 0.0
      %36 = vst [vmem:[%s3 + $0x10] sm:$0xff] 0.0
      %37 = vst [vmem:[%s3 + $0x18] sm:$0xff] 0.0
      %38 = vst [vmem:[%s3 + $0x20] sm:$0xff] 0.0
      %39 = vst [vmem:[%s3 + $0x28] sm:$0xff] 0.0
      %40 = vst [vmem:[%s3 + $0x30] sm:$0xff] 0.0
      %41 = vst [vmem:[%s3 + $0x38] sm:$0xff] 0.0
    $region21: #{seq2seq_forward_pallas.31} parent=1 // pred_fallthru
      _
    %v42 = vld [vmem:[%s0] sm:$0xff]
    %v43 = vld [vmem:[%s0 + $0x8] sm:$0xff]
    %v44 = vld [vmem:[%s0 + $0x10] sm:$0xff]
    %v45 = vld [vmem:[%s0 + $0x18] sm:$0xff]
    %v46 = vld [vmem:[%s0 + $0x20] sm:$0xff]
    %v47 = vld [vmem:[%s0 + $0x28] sm:$0xff]
    %v48 = vld [vmem:[%s0 + $0x30] sm:$0xff]
    %v49 = vld [vmem:[%s0 + $0x38] sm:$0xff]
    %s50 = smul.u32 0, 256
    %v51 = vstv %s50
    %v52 = vsub.s32 %v42, %v51
    %v53 = vsub.s32 %v43, %v51
    %v54 = vsub.s32 %v44, %v51
    %v55 = vsub.s32 %v45, %v51
    %v56 = vsub.s32 %v46, %v51
    %v57 = vsub.s32 %v47, %v51
    %v58 = vsub.s32 %v48, %v51
    %v59 = vsub.s32 %v49, %v51
    %v60 = vlaneseq
    %v61 = vand.u32 %v60, 127
    %v62 = vadd.s32 %v61, 128
    %63 = vset.pattern.permute.xlu0 0
    %64 = vperm.xlu0 %63, %v52
    %v65 = vpop.permute.xlu0 %64
    %66 = vset.pattern.permute.xlu0 0
    %67 = vperm.xlu0 %66, %v53
    %v68 = vpop.permute.xlu0 %67
    %69 = vset.pattern.permute.xlu0 0
    %70 = vperm.xlu0 %69, %v54
    %v71 = vpop.permute.xlu0 %70
    %72 = vset.pattern.permute.xlu0 0
    %73 = vperm.xlu0 %72, %v55
    %v74 = vpop.permute.xlu0 %73
    %75 = vset.pattern.permute.xlu0 0
    %76 = vperm.xlu0 %75, %v56
    %v77 = vpop.permute.xlu0 %76
    %78 = vset.pattern.permute.xlu0 0
    %79 = vperm.xlu0 %78, %v57
    %v80 = vpop.permute.xlu0 %79
    %81 = vset.pattern.permute.xlu0 0
    %82 = vperm.xlu0 %81, %v58
    %v83 = vpop.permute.xlu0 %82
    %84 = vset.pattern.permute.xlu0 0
    %85 = vperm.xlu0 %84, %v59
    %v86 = vpop.permute.xlu0 %85
    %vm87 = vcmp.eq.s32.totalorder %v65, %v61
    %vm88 = vcmp.eq.s32.totalorder %v65, %v62
    %vm89 = vcmp.eq.s32.totalorder %v68, %v61
    %vm90 = vcmp.eq.s32.totalorder %v68, %v62
    %vm91 = vcmp.eq.s32.totalorder %v71, %v61
    %vm92 = vcmp.eq.s32.totalorder %v71, %v62
    %vm93 = vcmp.eq.s32.totalorder %v74, %v61
    %vm94 = vcmp.eq.s32.totalorder %v74, %v62
    %vm95 = vcmp.eq.s32.totalorder %v77, %v61
    %vm96 = vcmp.eq.s32.totalorder %v77, %v62
    %vm97 = vcmp.eq.s32.totalorder %v80, %v61
    %vm98 = vcmp.eq.s32.totalorder %v80, %v62
    %vm99 = vcmp.eq.s32.totalorder %v83, %v61
    %vm100 = vcmp.eq.s32.totalorder %v83, %v62
    %vm101 = vcmp.eq.s32.totalorder %v86, %v61
    %vm102 = vcmp.eq.s32.totalorder %v86, %v62
    %v103 = vsel %vm87, 1, 0
    %v104 = vsel %vm88, 1, 0
    %v105 = vsel %vm89, 1, 0
    %v106 = vsel %vm90, 1, 0
    %v107 = vsel %vm91, 1, 0
    %v108 = vsel %vm92, 1, 0
    %v109 = vsel %vm93, 1, 0
    %v110 = vsel %vm94, 1, 0
    %v111 = vsel %vm95, 1, 0
    %v112 = vsel %vm96, 1, 0
    %v113 = vsel %vm97, 1, 0
    %v114 = vsel %vm98, 1, 0
    %v115 = vsel %vm99, 1, 0
    %v116 = vsel %vm100, 1, 0
    %v117 = vsel %vm101, 1, 0
    %v118 = vsel %vm102, 1, 0
    %v119 = vcvt.s32.f32 %v103
    %v120 = vcvt.s32.f32 %v104
    %v121 = vcvt.s32.f32 %v105
    %v122 = vcvt.s32.f32 %v106
    %v123 = vcvt.s32.f32 %v107
    %v124 = vcvt.s32.f32 %v108
    %v125 = vcvt.s32.f32 %v109
    %v126 = vcvt.s32.f32 %v110
    %v127 = vcvt.s32.f32 %v111
    %v128 = vcvt.s32.f32 %v112
    %v129 = vcvt.s32.f32 %v113
    %v130 = vcvt.s32.f32 %v114
    %v131 = vcvt.s32.f32 %v115
    %v132 = vcvt.s32.f32 %v116
    %v133 = vcvt.s32.f32 %v117
    %v134 = vcvt.s32.f32 %v118
    %v135 = vld [vmem:[%s3] sm:$0xff]
    %v136 = vld [vmem:[%s3 + $0x8] sm:$0xff]
    %v137 = vld [vmem:[%s3 + $0x10] sm:$0xff]
    %v138 = vld [vmem:[%s3 + $0x18] sm:$0xff]
    %v139 = vld [vmem:[%s3 + $0x20] sm:$0xff]
    %v140 = vld [vmem:[%s3 + $0x28] sm:$0xff]
    %v141 = vld [vmem:[%s3 + $0x30] sm:$0xff]
    %v142 = vld [vmem:[%s3 + $0x38] sm:$0xff]
    %v143 = vld [vmem:[#allocation2] sm:$0xff]
    %v144 = vld [vmem:[#allocation2 + $0x8] sm:$0xff]
    %v145 = vld [vmem:[#allocation2 + $0x10] sm:$0xff]
    %v146 = vld [vmem:[#allocation2 + $0x18] sm:$0xff]
    %v147 = vld [vmem:[#allocation2 + $0x20] sm:$0xff]
    %v148 = vld [vmem:[#allocation2 + $0x28] sm:$0xff]
    %v149 = vld [vmem:[#allocation2 + $0x30] sm:$0xff]
    %v150 = vld [vmem:[#allocation2 + $0x38] sm:$0xff]
    %v151 = vld [vmem:[#allocation2 + $0x40] sm:$0xff]
    %v152 = vld [vmem:[#allocation2 + $0x48] sm:$0xff]
    %v153 = vld [vmem:[#allocation2 + $0x50] sm:$0xff]
    %v154 = vld [vmem:[#allocation2 + $0x58] sm:$0xff]
    %v155 = vld [vmem:[#allocation2 + $0x60] sm:$0xff]
    %v156 = vld [vmem:[#allocation2 + $0x68] sm:$0xff]
    %v157 = vld [vmem:[#allocation2 + $0x70] sm:$0xff]
    %v158 = vld [vmem:[#allocation2 + $0x78] sm:$0xff]
    %v159 = vld [vmem:[#allocation2 + $0x80] sm:$0xff]
    %v160 = vld [vmem:[#allocation2 + $0x88] sm:$0xff]
    %v161 = vld [vmem:[#allocation2 + $0x90] sm:$0xff]
    %v162 = vld [vmem:[#allocation2 + $0x98] sm:$0xff]
    %v163 = vld [vmem:[#allocation2 + $0xa0] sm:$0xff]
    %v164 = vld [vmem:[#allocation2 + $0xa8] sm:$0xff]
    %v165 = vld [vmem:[#allocation2 + $0xb0] sm:$0xff]
    %v166 = vld [vmem:[#allocation2 + $0xb8] sm:$0xff]
    %v167 = vld [vmem:[#allocation2 + $0xc0] sm:$0xff]
    %v168 = vld [vmem:[#allocation2 + $0xc8] sm:$0xff]
    %v169 = vld [vmem:[#allocation2 + $0xd0] sm:$0xff]
    %v170 = vld [vmem:[#allocation2 + $0xd8] sm:$0xff]
    %v171 = vld [vmem:[#allocation2 + $0xe0] sm:$0xff]
    %v172 = vld [vmem:[#allocation2 + $0xe8] sm:$0xff]
    %v173 = vld [vmem:[#allocation2 + $0xf0] sm:$0xff]
    %v174 = vld [vmem:[#allocation2 + $0xf8] sm:$0xff]
    %175 = vmatpush.msra.mxu0 %v158
    %176 = vmatpush.msra.mxu0 %v157
    %177 = vmatpush.msra.mxu0 %v156
    %178 = vmatpush.msra.mxu0 %v155
    %179 = vmatpush.msra.mxu0 %v154
    %180 = vmatpush.msra.mxu0 %v153
    %181 = vmatpush.msra.mxu0 %v152
    %182 = vmatpush.msra.mxu0 %v151
    %183 = vmatpush.msra.mxu0 %v150
    %184 = vmatpush.msra.mxu0 %v149
    %185 = vmatpush.msra.mxu0 %v148
    %186 = vmatpush.msra.mxu0 %v147
    %187 = vmatpush.msra.mxu0 %v146
    %188 = vmatpush.msra.mxu0 %v145
    %189 = vmatpush.msra.mxu0 %v144
    %190 = vmatpush.msra.mxu0 %v143
    %191 = vmatmul.f32.gmra.mxu0 %v119
    %v192 = vpop.f32.mrf.mxu0
    %v193 = vadd.f32 0.0, %v192
    %194 = vmatmul.f32.gmra.mxu0 %v121
    %v195 = vpop.f32.mrf.mxu0
    %v196 = vadd.f32 0.0, %v195
    %197 = vmatmul.f32.gmra.mxu0 %v123
    %v198 = vpop.f32.mrf.mxu0
    %v199 = vadd.f32 0.0, %v198
    %200 = vmatmul.f32.gmra.mxu0 %v125
    %v201 = vpop.f32.mrf.mxu0
    %v202 = vadd.f32 0.0, %v201
    %203 = vmatmul.f32.gmra.mxu0 %v127
    %v204 = vpop.f32.mrf.mxu0
    %v205 = vadd.f32 0.0, %v204
    %206 = vmatmul.f32.gmra.mxu0 %v129
    %v207 = vpop.f32.mrf.mxu0
    %v208 = vadd.f32 0.0, %v207
    %209 = vmatmul.f32.gmra.mxu0 %v131
    %v210 = vpop.f32.mrf.mxu0
    %v211 = vadd.f32 0.0, %v210
    %212 = vmatmul.f32.gmra.mxu0 %v133
    %v213 = vpop.f32.mrf.mxu0
    %v214 = vadd.f32 0.0, %v213
    %215 = vdwg.mxu0
    %216 = vmatpush.msra.mxu0 %v174
    %217 = vmatpush.msra.mxu0 %v173
    %218 = vmatpush.msra.mxu0 %v172
    %219 = vmatpush.msra.mxu0 %v171
    %220 = vmatpush.msra.mxu0 %v170
    %221 = vmatpush.msra.mxu0 %v169
    %222 = vmatpush.msra.mxu0 %v168
    %223 = vmatpush.msra.mxu0 %v167
    %224 = vmatpush.msra.mxu0 %v166
    %225 = vmatpush.msra.mxu0 %v165
    %226 = vmatpush.msra.mxu0 %v164
    %227 = vmatpush.msra.mxu0 %v163
    %228 = vmatpush.msra.mxu0 %v162
    %229 = vmatpush.msra.mxu0 %v161
    %230 = vmatpush.msra.mxu0 %v160
    %231 = vmatpush.msra.mxu0 %v159
    %232 = vmatmul.f32.gmra.mxu0 %v120
    %v233 = vpop.f32.mrf.mxu0
    %v234 = vadd.f32 %v193, %v233
    %235 = vmatmul.f32.gmra.mxu0 %v122
    %v236 = vpop.f32.mrf.mxu0
    %v237 = vadd.f32 %v196, %v236
    %238 = vmatmul.f32.gmra.mxu0 %v124
    %v239 = vpop.f32.mrf.mxu0
    %v240 = vadd.f32 %v199, %v239
    %241 = vmatmul.f32.gmra.mxu0 %v126
    %v242 = vpop.f32.mrf.mxu0
    %v243 = vadd.f32 %v202, %v242
    %244 = vmatmul.f32.gmra.mxu0 %v128
    %v245 = vpop.f32.mrf.mxu0
    %v246 = vadd.f32 %v205, %v245
    %247 = vmatmul.f32.gmra.mxu0 %v130
    %v248 = vpop.f32.mrf.mxu0
    %v249 = vadd.f32 %v208, %v248
    %250 = vmatmul.f32.gmra.mxu0 %v132
    %v251 = vpop.f32.mrf.mxu0
    %v252 = vadd.f32 %v211, %v251
    %253 = vmatmul.f32.gmra.mxu0 %v134
    %v254 = vpop.f32.mrf.mxu0
    %v255 = vadd.f32 %v214, %v254
    %256 = vdwg.mxu0
    %v257 = vadd.f32 %v135, %v234
    %v258 = vadd.f32 %v136, %v237
    %v259 = vadd.f32 %v137, %v240
    %v260 = vadd.f32 %v138, %v243
    %v261 = vadd.f32 %v139, %v246
    %v262 = vadd.f32 %v140, %v249
    %v263 = vadd.f32 %v141, %v252
    %v264 = vadd.f32 %v142, %v255
    %265 = vst [vmem:[%s3] sm:$0xff] %v257
    %266 = vst [vmem:[%s3 + $0x8] sm:$0xff] %v258
    %267 = vst [vmem:[%s3 + $0x10] sm:$0xff] %v259
    %268 = vst [vmem:[%s3 + $0x18] sm:$0xff] %v260
    %269 = vst [vmem:[%s3 + $0x20] sm:$0xff] %v261
    %270 = vst [vmem:[%s3 + $0x28] sm:$0xff] %v262
    %271 = vst [vmem:[%s3 + $0x30] sm:$0xff] %v263
    %272 = vst [vmem:[%s3 + $0x38] sm:$0xff] %v264
    // Predicated region
    $region22: #{seq2seq_forward_pallas.31} parent=1 // pred_check
      %p273 = pneg %p30
    $region23: #{seq2seq_forward_pallas.31} parent=1 // pred_check_branch
      %275 = sbr.rel (%p273) target = $region25
    $region24: #{seq2seq_forward_pallas.31} parent=1 // pred_region
      %v276 = vld [vmem:[%s3] sm:$0xff]
      %v277 = vld [vmem:[%s3 + $0x8] sm:$0xff]
      %v278 = vld [vmem:[%s3 + $0x10] sm:$0xff]
      %v279 = vld [vmem:[%s3 + $0x18] sm:$0xff]
      %v280 = vld [vmem:[%s3 + $0x20] sm:$0xff]
      %v281 = vld [vmem:[%s3 + $0x28] sm:$0xff]
      %v282 = vld [vmem:[%s3 + $0x30] sm:$0xff]
      %v283 = vld [vmem:[%s3 + $0x38] sm:$0xff]
      %v284 = vmul.f32 %v276, 11.313708
      %v285 = vmul.f32 %v277, 11.313708
      %v286 = vmul.f32 %v278, 11.313708
      %v287 = vmul.f32 %v279, 11.313708
      %v288 = vmul.f32 %v280, 11.313708
      %v289 = vmul.f32 %v281, 11.313708
      %v290 = vmul.f32 %v282, 11.313708
      %v291 = vmul.f32 %v283, 11.313708
      %v292 = vld [vmem:[%s2] sm:$0xff]
      %v293 = vld [vmem:[%s2 + $0x8] sm:$0xff]
      %v294 = vld [vmem:[%s2 + $0x10] sm:$0xff]
      %v295 = vld [vmem:[%s2 + $0x18] sm:$0xff]
      %v296 = vld [vmem:[%s2 + $0x20] sm:$0xff]
      %v297 = vld [vmem:[%s2 + $0x28] sm:$0xff]
      %v298 = vld [vmem:[%s2 + $0x30] sm:$0xff]
      %v299 = vld [vmem:[%s2 + $0x38] sm:$0xff]
      %v300 = vadd.f32 %v284, %v292
      %v301 = vadd.f32 %v285, %v293
      %v302 = vadd.f32 %v286, %v294
      %v303 = vadd.f32 %v287, %v295
      %v304 = vadd.f32 %v288, %v296
      %v305 = vadd.f32 %v289, %v297
      %v306 = vadd.f32 %v290, %v298
      %v307 = vadd.f32 %v291, %v299
      %308 = vst [vmem:[%s3] sm:$0xff] %v300
      %309 = vst [vmem:[%s3 + $0x8] sm:$0xff] %v301
      %310 = vst [vmem:[%s3 + $0x10] sm:$0xff] %v302
      %311 = vst [vmem:[%s3 + $0x18] sm:$0xff] %v303
      %312 = vst [vmem:[%s3 + $0x20] sm:$0xff] %v304
      %313 = vst [vmem:[%s3 + $0x28] sm:$0xff] %v305
      %314 = vst [vmem:[%s3 + $0x30] sm:$0xff] %v306
      %315 = vst [vmem:[%s3 + $0x38] sm:$0xff] %v307
    $region25: #{seq2seq_forward_pallas.31} parent=1 // pred_fallthru
      _
    // Predicated region
    $region26: #{seq2seq_forward_pallas.31} parent=1 // pred_check
      _
    $region27: #{seq2seq_forward_pallas.31} parent=1 // pred_check_branch
      %317 = sbr.rel (0) target = $region29
    $region28: #{seq2seq_forward_pallas.31} parent=1 // pred_region
      _
    $region29: #{seq2seq_forward_pallas.31} parent=1 // pred_fallthru
      _
    // Predicated region
    $region30: #{seq2seq_forward_pallas.31} parent=1 // pred_check
      _
    $region31: #{seq2seq_forward_pallas.31} parent=1 // pred_check_branch
      %319 = sbr.rel (0) target = $region33
    $region32: #{seq2seq_forward_pallas.31} parent=1 // pred_region
      _
    $region33: #{seq2seq_forward_pallas.31} parent=1 // pred_fallthru
      _
    %320 = vsyncpa [#allocation3], 1

// kernel: seq2seq_forward_pallas.33
$region0: #{seq2seq_forward_pallas.33}
  #allocation0 [shape = 'u32[]', space=smem, size = 0x4, offset = 0x4, fixed_abs, tag = 'smem constant byte address 0x4 - core index']
  #allocation1 [shape = 'u32[72,128]{1,0:T(1,128)}', space=vmem, size = 0x9000, scoped, tag = 'internal scratch']
  %s0 = inlined_call_operand.vmem [shape: f32[64,128], index: 0, kind: input, shape index: {}]
  %s1 = inlined_call_operand.hbm [shape: bf16[128,384], index: 1, kind: input, shape index: {}]
  %s2 = inlined_call_operand.vmem [shape: f32[1,384], index: 2, kind: input, shape index: {}]
  %s3 = inlined_call_operand.vmem [shape: f32[64,384], index: 3, kind: output, shape index: {}]
  %s4 = sld [smem:[#allocation0]]
  $region34: #{seq2seq_forward_pallas.33} parent=0
    _
  %s6 = ssub.s32 1, %s4
  %s7 = scalar_select 0, %s6, %s4
  $region1: #{seq2seq_forward_pallas.33} parent=0
    #allocation2 [shape = 'u8[98304]{0}', space=vmem, size = 0x18000, scoped, tag = 'input window, operand 1, single buffered']
    #allocation3 [shape = 's32[1]{0}', space=sflag, size = 0x4, scoped, tag = 'scoped memory for seq2seq_forward_pallas.33']
    %8 = vsyncpa [#allocation3], 0
    // Predicated region
    $region2: #{seq2seq_forward_pallas.33} parent=1 // pred_check
      _
    $region3: #{seq2seq_forward_pallas.33} parent=1 // pred_check_branch
      %10 = sbr.rel (0) target = $region5
    $region4: #{seq2seq_forward_pallas.33} parent=1 // pred_region
      _
    $region5: #{seq2seq_forward_pallas.33} parent=1 // pred_fallthru
      _
    // Predicated region
    $region6: #{seq2seq_forward_pallas.33} parent=1 // pred_check
      _
    $region7: #{seq2seq_forward_pallas.33} parent=1 // pred_check_branch
      %12 = sbr.rel (0) target = $region9
    $region8: #{seq2seq_forward_pallas.33} parent=1 // pred_region
      %14 = vsyncadd [#allocation3], 0
      %s15 = sshll.u32 %s1, 4
      %s16 = int_to_ptr.hbm [resolvable:$true] %s15
      %s17 = sshll.u32 [#allocation2], 4
      %s18 = int_to_ptr.vmem [resolvable:$true] %s17
      %23 = dma.hbm_to_vmem [thread:$0]  %s16, 3072, %s18, [#allocation3], 192, 192, 12
    $region9: #{seq2seq_forward_pallas.33} parent=1 // pred_fallthru
      _
    // Predicated region
    $region10: #{seq2seq_forward_pallas.33} parent=1 // pred_check
      _
    $region11: #{seq2seq_forward_pallas.33} parent=1 // pred_check_branch
      %25 = sbr.rel (0) target = $region13
    $region12: #{seq2seq_forward_pallas.33} parent=1 // pred_region
      _
    $region13: #{seq2seq_forward_pallas.33} parent=1 // pred_fallthru
      _
    // Predicated region
    $region14: #{seq2seq_forward_pallas.33} parent=1 // pred_check
      _
    $region15: #{seq2seq_forward_pallas.33} parent=1 // pred_check_branch
      %27 = sbr.rel (0) target = $region17
    $region16: #{seq2seq_forward_pallas.33} parent=1 // pred_region
      %29 = dma.done [#allocation3], 3072
    $region17: #{seq2seq_forward_pallas.33} parent=1 // pred_fallthru
      _
    %p30 = scmp.eq.s32.totalorder 0, 0
    // Predicated region
    $region18: #{seq2seq_forward_pallas.33} parent=1 // pred_check
      %p31 = pneg %p30
    $region19: #{seq2seq_forward_pallas.33} parent=1 // pred_check_branch
      %33 = sbr.rel (%p31) target = $region21
    $region20: #{seq2seq_forward_pallas.33} parent=1 // pred_region
      %34 = vst [vmem:[%s3] sm:$0xff] 0.0
      %35 = vst [vmem:[%s3 + $0x8] sm:$0xff] 0.0
      %36 = vst [vmem:[%s3 + $0x10] sm:$0xff] 0.0
      %37 = vst [vmem:[%s3 + $0x18] sm:$0xff] 0.0
      %38 = vst [vmem:[%s3 + $0x20] sm:$0xff] 0.0
      %39 = vst [vmem:[%s3 + $0x28] sm:$0xff] 0.0
      %40 = vst [vmem:[%s3 + $0x30] sm:$0xff] 0.0
      %41 = vst [vmem:[%s3 + $0x38] sm:$0xff] 0.0
      %42 = vst [vmem:[%s3 + $0x40] sm:$0xff] 0.0
      %43 = vst [vmem:[%s3 + $0x48] sm:$0xff] 0.0
      %44 = vst [vmem:[%s3 + $0x50] sm:$0xff] 0.0
      %45 = vst [vmem:[%s3 + $0x58] sm:$0xff] 0.0
      %46 = vst [vmem:[%s3 + $0x60] sm:$0xff] 0.0
      %47 = vst [vmem:[%s3 + $0x68] sm:$0xff] 0.0
      %48 = vst [vmem:[%s3 + $0x70] sm:$0xff] 0.0
      %49 = vst [vmem:[%s3 + $0x78] sm:$0xff] 0.0
      %50 = vst [vmem:[%s3 + $0x80] sm:$0xff] 0.0
      %51 = vst [vmem:[%s3 + $0x88] sm:$0xff] 0.0
      %52 = vst [vmem:[%s3 + $0x90] sm:$0xff] 0.0
      %53 = vst [vmem:[%s3 + $0x98] sm:$0xff] 0.0
      %54 = vst [vmem:[%s3 + $0xa0] sm:$0xff] 0.0
      %55 = vst [vmem:[%s3 + $0xa8] sm:$0xff] 0.0
      %56 = vst [vmem:[%s3 + $0xb0] sm:$0xff] 0.0
      %57 = vst [vmem:[%s3 + $0xb8] sm:$0xff] 0.0
    $region21: #{seq2seq_forward_pallas.33} parent=1 // pred_fallthru
      _
    %v58 = vld [vmem:[%s3] sm:$0xff]
    %v59 = vld [vmem:[%s3 + $0x8] sm:$0xff]
    %v60 = vld [vmem:[%s3 + $0x10] sm:$0xff]
    %v61 = vld [vmem:[%s3 + $0x18] sm:$0xff]
    %v62 = vld [vmem:[%s3 + $0x20] sm:$0xff]
    %v63 = vld [vmem:[%s3 + $0x28] sm:$0xff]
    %v64 = vld [vmem:[%s3 + $0x30] sm:$0xff]
    %v65 = vld [vmem:[%s3 + $0x38] sm:$0xff]
    %v66 = vld [vmem:[%s3 + $0x40] sm:$0xff]
    %v67 = vld [vmem:[%s3 + $0x48] sm:$0xff]
    %v68 = vld [vmem:[%s3 + $0x50] sm:$0xff]
    %v69 = vld [vmem:[%s3 + $0x58] sm:$0xff]
    %v70 = vld [vmem:[%s3 + $0x60] sm:$0xff]
    %v71 = vld [vmem:[%s3 + $0x68] sm:$0xff]
    %v72 = vld [vmem:[%s3 + $0x70] sm:$0xff]
    %v73 = vld [vmem:[%s3 + $0x78] sm:$0xff]
    %v74 = vld [vmem:[%s3 + $0x80] sm:$0xff]
    %v75 = vld [vmem:[%s3 + $0x88] sm:$0xff]
    %v76 = vld [vmem:[%s3 + $0x90] sm:$0xff]
    %v77 = vld [vmem:[%s3 + $0x98] sm:$0xff]
    %v78 = vld [vmem:[%s3 + $0xa0] sm:$0xff]
    %v79 = vld [vmem:[%s3 + $0xa8] sm:$0xff]
    %v80 = vld [vmem:[%s3 + $0xb0] sm:$0xff]
    %v81 = vld [vmem:[%s3 + $0xb8] sm:$0xff]
    %v82 = vld [vmem:[%s0] sm:$0xff]
    %v83 = vld [vmem:[%s0 + $0x8] sm:$0xff]
    %v84 = vld [vmem:[%s0 + $0x10] sm:$0xff]
    %v85 = vld [vmem:[%s0 + $0x18] sm:$0xff]
    %v86 = vld [vmem:[%s0 + $0x20] sm:$0xff]
    %v87 = vld [vmem:[%s0 + $0x28] sm:$0xff]
    %v88 = vld [vmem:[%s0 + $0x30] sm:$0xff]
    %v89 = vld [vmem:[%s0 + $0x38] sm:$0xff]
    %v90 = vpack.c.bf16 %v83, %v82
    %v91 = vpack.c.bf16 %v85, %v84
    %v92 = vpack.c.bf16 %v87, %v86
    %v93 = vpack.c.bf16 %v89, %v88
    %v94 = vld [vmem:[#allocation2] sm:$0xff]
    %v95 = vld [vmem:[#allocation2 + $0x8] sm:$0xf]
    %v96 = vld [vmem:[#allocation2 + $0xc] sm:$0xff]
    %v97 = vld [vmem:[#allocation2 + $0x14] sm:$0xf]
    %v98 = vld [vmem:[#allocation2 + $0x18] sm:$0xff]
    %v99 = vld [vmem:[#allocation2 + $0x20] sm:$0xf]
    %v100 = vld [vmem:[#allocation2 + $0x24] sm:$0xff]
    %v101 = vld [vmem:[#allocation2 + $0x2c] sm:$0xf]
    %v102 = vld [vmem:[#allocation2 + $0x30] sm:$0xff]
    %v103 = vld [vmem:[#allocation2 + $0x38] sm:$0xf]
    %v104 = vld [vmem:[#allocation2 + $0x3c] sm:$0xff]
    %v105 = vld [vmem:[#allocation2 + $0x44] sm:$0xf]
    %v106 = vld [vmem:[#allocation2 + $0x48] sm:$0xff]
    %v107 = vld [vmem:[#allocation2 + $0x50] sm:$0xf]
    %v108 = vld [vmem:[#allocation2 + $0x54] sm:$0xff]
    %v109 = vld [vmem:[#allocation2 + $0x5c] sm:$0xf]
    %v110 = vld [vmem:[#allocation2 + $0x60] sm:$0xff]
    %v111 = vld [vmem:[#allocation2 + $0x68] sm:$0xf]
    %v112 = vld [vmem:[#allocation2 + $0x6c] sm:$0xff]
    %v113 = vld [vmem:[#allocation2 + $0x74] sm:$0xf]
    %v114 = vld [vmem:[#allocation2 + $0x78] sm:$0xff]
    %v115 = vld [vmem:[#allocation2 + $0x80] sm:$0xf]
    %v116 = vld [vmem:[#allocation2 + $0x84] sm:$0xff]
    %v117 = vld [vmem:[#allocation2 + $0x8c] sm:$0xf]
    %v118 = vld [vmem:[#allocation2 + $0x90] sm:$0xff]
    %v119 = vld [vmem:[#allocation2 + $0x98] sm:$0xf]
    %v120 = vld [vmem:[#allocation2 + $0x9c] sm:$0xff]
    %v121 = vld [vmem:[#allocation2 + $0xa4] sm:$0xf]
    %v122 = vld [vmem:[#allocation2 + $0xa8] sm:$0xff]
    %v123 = vld [vmem:[#allocation2 + $0xb0] sm:$0xf]
    %v124 = vld [vmem:[#allocation2 + $0xb4] sm:$0xff]
    %v125 = vld [vmem:[#allocation2 + $0xbc] sm:$0xf]
    %v158 = vunpack.c.l.b16 %v94
    %v159 = vunpack.c.h.b16 %v94
    %v160 = vunpack.c.l.b16 %v95
    %v161 = vunpack.c.l.b16 %v96
    %v162 = vunpack.c.h.b16 %v96
    %v163 = vunpack.c.l.b16 %v97
    %v164 = vunpack.c.l.b16 %v98
    %v165 = vunpack.c.h.b16 %v98
    %v166 = vunpack.c.l.b16 %v99
    %v167 = vunpack.c.l.b16 %v100
    %v168 = vunpack.c.h.b16 %v100
    %v169 = vunpack.c.l.b16 %v101
    %v170 = vunpack.c.l.b16 %v102
    %v171 = vunpack.c.h.b16 %v102
    %v172 = vunpack.c.l.b16 %v103
    %v173 = vunpack.c.l.b16 %v104
    %v174 = vunpack.c.h.b16 %v104
    %v175 = vunpack.c.l.b16 %v105
    %v176 = vunpack.c.l.b16 %v106
    %v177 = vunpack.c.h.b16 %v106
    %v178 = vunpack.c.l.b16 %v107
    %v179 = vunpack.c.l.b16 %v108
    %v180 = vunpack.c.h.b16 %v108
    %v181 = vunpack.c.l.b16 %v109
    %v182 = vunpack.c.l.b16 %v110
    %v183 = vunpack.c.h.b16 %v110
    %v184 = vunpack.c.l.b16 %v111
    %v185 = vunpack.c.l.b16 %v112
    %v186 = vunpack.c.h.b16 %v112
    %v187 = vunpack.c.l.b16 %v113
    %v188 = vunpack.c.l.b16 %v114
    %v189 = vunpack.c.h.b16 %v114
    %v190 = vunpack.c.l.b16 %v115
    %v191 = vunpack.c.l.b16 %v116
    %v192 = vunpack.c.h.b16 %v116
    %v193 = vunpack.c.l.b16 %v117
    %v194 = vunpack.c.l.b16 %v118
    %v195 = vunpack.c.h.b16 %v118
    %v196 = vunpack.c.l.b16 %v119
    %v197 = vunpack.c.l.b16 %v120
    %v198 = vunpack.c.h.b16 %v120
    %v199 = vunpack.c.l.b16 %v121
    %v200 = vunpack.c.l.b16 %v122
    %v201 = vunpack.c.h.b16 %v122
    %v202 = vunpack.c.l.b16 %v123
    %v203 = vunpack.c.l.b16 %v124
    %v204 = vunpack.c.h.b16 %v124
    %v205 = vunpack.c.l.b16 %v125
    %v206 = vpack.c.b16 %v161, %v158
    %v207 = vpack.c.b16 %v162, %v159
    %v208 = vpack.c.b16 %v163, %v160
    %v209 = vpack.c.b16 %v167, %v164
    %v210 = vpack.c.b16 %v168, %v165
    %v211 = vpack.c.b16 %v169, %v166
    %v212 = vpack.c.b16 %v173, %v170
    %v213 = vpack.c.b16 %v174, %v171
    %v214 = vpack.c.b16 %v175, %v172
    %v215 = vpack.c.b16 %v179, %v176
    %v216 = vpack.c.b16 %v180, %v177
    %v217 = vpack.c.b16 %v181, %v178
    %v218 = vpack.c.b16 %v185, %v182
    %v219 = vpack.c.b16 %v186, %v183
    %v220 = vpack.c.b16 %v187, %v184
    %v221 = vpack.c.b16 %v191, %v188
    %v222 = vpack.c.b16 %v192, %v189
    %v223 = vpack.c.b16 %v193, %v190
    %v224 = vpack.c.b16 %v197, %v194
    %v225 = vpack.c.b16 %v198, %v195
    %v226 = vpack.c.b16 %v199, %v196
    %v227 = vpack.c.b16 %v203, %v200
    %v228 = vpack.c.b16 %v204, %v201
    %v229 = vpack.c.b16 %v205, %v202
    %254 = vmatpush.bf16.msra.mxu0 %v227
    %255 = vmatpush.bf16.msra.mxu0 %v224
    %256 = vmatpush.bf16.msra.mxu0 %v221
    %257 = vmatpush.bf16.msra.mxu0 %v218
    %258 = vmatpush.bf16.msra.mxu0 %v215
    %259 = vmatpush.bf16.msra.mxu0 %v212
    %260 = vmatpush.bf16.msra.mxu0 %v209
    %261 = vmatpush.bf16.msra.mxu0 %v206
    %262 = vmatmul.bf16.gmra.mxu0 %v90
    %v263 = vpop.f32.mrf.mxu0
    %v264 = vadd.f32 0.0, %v263
    %v265 = vpop.f32.mrf.mxu0
    %v266 = vadd.f32 0.0, %v265
    %267 = vmatmul.bf16.gmra.mxu0 %v91
    %v268 = vpop.f32.mrf.mxu0
    %v269 = vadd.f32 0.0, %v268
    %v270 = vpop.f32.mrf.mxu0
    %v271 = vadd.f32 0.0, %v270
    %272 = vmatmul.bf16.gmra.mxu0 %v92
    %v273 = vpop.f32.mrf.mxu0
    %v274 = vadd.f32 0.0, %v273
    %v275 = vpop.f32.mrf.mxu0
    %v276 = vadd.f32 0.0, %v275
    %277 = vmatmul.bf16.gmra.mxu0 %v93
    %v278 = vpop.f32.mrf.mxu0
    %v279 = vadd.f32 0.0, %v278
    %v280 = vpop.f32.mrf.mxu0
    %v281 = vadd.f32 0.0, %v280
    %282 = vdwg.mxu0
    %283 = vmatpush.bf16.msra.mxu0 %v228
    %284 = vmatpush.bf16.msra.mxu0 %v225
    %285 = vmatpush.bf16.msra.mxu0 %v222
    %286 = vmatpush.bf16.msra.mxu0 %v219
    %287 = vmatpush.bf16.msra.mxu0 %v216
    %288 = vmatpush.bf16.msra.mxu0 %v213
    %289 = vmatpush.bf16.msra.mxu0 %v210
    %290 = vmatpush.bf16.msra.mxu0 %v207
    %291 = vmatmul.bf16.gmra.mxu0 %v90
    %v292 = vpop.f32.mrf.mxu0
    %v293 = vadd.f32 0.0, %v292
    %v294 = vpop.f32.mrf.mxu0
    %v295 = vadd.f32 0.0, %v294
    %296 = vmatmul.bf16.gmra.mxu0 %v91
    %v297 = vpop.f32.mrf.mxu0
    %v298 = vadd.f32 0.0, %v297
    %v299 = vpop.f32.mrf.mxu0
    %v300 = vadd.f32 0.0, %v299
    %301 = vmatmul.bf16.gmra.mxu0 %v92
    %v302 = vpop.f32.mrf.mxu0
    %v303 = vadd.f32 0.0, %v302
    %v304 = vpop.f32.mrf.mxu0
    %v305 = vadd.f32 0.0, %v304
    %306 = vmatmul.bf16.gmra.mxu0 %v93
    %v307 = vpop.f32.mrf.mxu0
    %v308 = vadd.f32 0.0, %v307
    %v309 = vpop.f32.mrf.mxu0
    %v310 = vadd.f32 0.0, %v309
    %311 = vdwg.mxu0
    %312 = vmatpush.bf16.msra.mxu0 %v229
    %313 = vmatpush.bf16.msra.mxu0 %v226
    %314 = vmatpush.bf16.msra.mxu0 %v223
    %315 = vmatpush.bf16.msra.mxu0 %v220
    %316 = vmatpush.bf16.msra.mxu0 %v217
    %317 = vmatpush.bf16.msra.mxu0 %v214
    %318 = vmatpush.bf16.msra.mxu0 %v211
    %319 = vmatpush.bf16.msra.mxu0 %v208
    %320 = vmatmul.bf16.gmra.mxu0 %v90
    %v321 = vpop.f32.mrf.mxu0
    %v322 = vadd.f32 0.0, %v321
    %v323 = vpop.f32.mrf.mxu0
    %v324 = vadd.f32 0.0, %v323
    %325 = vmatmul.bf16.gmra.mxu0 %v91
    %v326 = vpop.f32.mrf.mxu0
    %v327 = vadd.f32 0.0, %v326
    %v328 = vpop.f32.mrf.mxu0
    %v329 = vadd.f32 0.0, %v328
    %330 = vmatmul.bf16.gmra.mxu0 %v92
    %v331 = vpop.f32.mrf.mxu0
    %v332 = vadd.f32 0.0, %v331
    %v333 = vpop.f32.mrf.mxu0
    %v334 = vadd.f32 0.0, %v333
    %335 = vmatmul.bf16.gmra.mxu0 %v93
    %v336 = vpop.f32.mrf.mxu0
    %v337 = vadd.f32 0.0, %v336
    %v338 = vpop.f32.mrf.mxu0
    %v339 = vadd.f32 0.0, %v338
    %340 = vdwg.mxu0
    %v341 = vadd.f32 %v58, %v264
    %v342 = vadd.f32 %v59, %v293
    %v343 = vadd.f32 %v60, %v322
    %v344 = vadd.f32 %v61, %v266
    %v345 = vadd.f32 %v62, %v295
    %v346 = vadd.f32 %v63, %v324
    %v347 = vadd.f32 %v64, %v269
    %v348 = vadd.f32 %v65, %v298
    %v349 = vadd.f32 %v66, %v327
    %v350 = vadd.f32 %v67, %v271
    %v351 = vadd.f32 %v68, %v300
    %v352 = vadd.f32 %v69, %v329
    %v353 = vadd.f32 %v70, %v274
    %v354 = vadd.f32 %v71, %v303
    %v355 = vadd.f32 %v72, %v332
    %v356 = vadd.f32 %v73, %v276
    %v357 = vadd.f32 %v74, %v305
    %v358 = vadd.f32 %v75, %v334
    %v359 = vadd.f32 %v76, %v279
    %v360 = vadd.f32 %v77, %v308
    %v361 = vadd.f32 %v78, %v337
    %v362 = vadd.f32 %v79, %v281
    %v363 = vadd.f32 %v80, %v310
    %v364 = vadd.f32 %v81, %v339
    %365 = vst [vmem:[%s3] sm:$0xff] %v341
    %366 = vst [vmem:[%s3 + $0x8] sm:$0xff] %v342
    %367 = vst [vmem:[%s3 + $0x10] sm:$0xff] %v343
    %368 = vst [vmem:[%s3 + $0x18] sm:$0xff] %v344
    %369 = vst [vmem:[%s3 + $0x20] sm:$0xff] %v345
    %370 = vst [vmem:[%s3 + $0x28] sm:$0xff] %v346
    %371 = vst [vmem:[%s3 + $0x30] sm:$0xff] %v347
    %372 = vst [vmem:[%s3 + $0x38] sm:$0xff] %v348
    %373 = vst [vmem:[%s3 + $0x40] sm:$0xff] %v349
    %374 = vst [vmem:[%s3 + $0x48] sm:$0xff] %v350
    %375 = vst [vmem:[%s3 + $0x50] sm:$0xff] %v351
    %376 = vst [vmem:[%s3 + $0x58] sm:$0xff] %v352
    %377 = vst [vmem:[%s3 + $0x60] sm:$0xff] %v353
    %378 = vst [vmem:[%s3 + $0x68] sm:$0xff] %v354
    %379 = vst [vmem:[%s3 + $0x70] sm:$0xff] %v355
    %380 = vst [vmem:[%s3 + $0x78] sm:$0xff] %v356
    %381 = vst [vmem:[%s3 + $0x80] sm:$0xff] %v357
    %382 = vst [vmem:[%s3 + $0x88] sm:$0xff] %v358
    %383 = vst [vmem:[%s3 + $0x90] sm:$0xff] %v359
    %384 = vst [vmem:[%s3 + $0x98] sm:$0xff] %v360
    %385 = vst [vmem:[%s3 + $0xa0] sm:$0xff] %v361
    %386 = vst [vmem:[%s3 + $0xa8] sm:$0xff] %v362
    %387 = vst [vmem:[%s3 + $0xb0] sm:$0xff] %v363
    %388 = vst [vmem:[%s3 + $0xb8] sm:$0xff] %v364
    // Predicated region
    $region22: #{seq2seq_forward_pallas.33} parent=1 // pred_check
      %p389 = pneg %p30
    $region23: #{seq2seq_forward_pallas.33} parent=1 // pred_check_branch
      %391 = sbr.rel (%p389) target = $region25
    $region24: #{seq2seq_forward_pallas.33} parent=1 // pred_region
      %v392 = vld [vmem:[%s3] sm:$0xff]
      %v393 = vld [vmem:[%s3 + $0x8] sm:$0xff]
      %v394 = vld [vmem:[%s3 + $0x10] sm:$0xff]
      %v395 = vld [vmem:[%s3 + $0x18] sm:$0xff]
      %v396 = vld [vmem:[%s3 + $0x20] sm:$0xff]
      %v397 = vld [vmem:[%s3 + $0x28] sm:$0xff]
      %v398 = vld [vmem:[%s3 + $0x30] sm:$0xff]
      %v399 = vld [vmem:[%s3 + $0x38] sm:$0xff]
      %v400 = vld [vmem:[%s3 + $0x40] sm:$0xff]
      %v401 = vld [vmem:[%s3 + $0x48] sm:$0xff]
      %v402 = vld [vmem:[%s3 + $0x50] sm:$0xff]
      %v403 = vld [vmem:[%s3 + $0x58] sm:$0xff]
      %v404 = vld [vmem:[%s3 + $0x60] sm:$0xff]
      %v405 = vld [vmem:[%s3 + $0x68] sm:$0xff]
      %v406 = vld [vmem:[%s3 + $0x70] sm:$0xff]
      %v407 = vld [vmem:[%s3 + $0x78] sm:$0xff]
      %v408 = vld [vmem:[%s3 + $0x80] sm:$0xff]
      %v409 = vld [vmem:[%s3 + $0x88] sm:$0xff]
      %v410 = vld [vmem:[%s3 + $0x90] sm:$0xff]
      %v411 = vld [vmem:[%s3 + $0x98] sm:$0xff]
      %v412 = vld [vmem:[%s3 + $0xa0] sm:$0xff]
      %v413 = vld [vmem:[%s3 + $0xa8] sm:$0xff]
      %v414 = vld [vmem:[%s3 + $0xb0] sm:$0xff]
      %v415 = vld [vmem:[%s3 + $0xb8] sm:$0xff]
      %v416 = vld [vmem:[%s2] sm:$0x7]
      %v418 = vperm.slane %v416, 0
      %v419 = vperm.slane %v416, 1
      %v420 = vperm.slane %v416, 2
      %v424 = vadd.f32 %v392, %v418
      %v425 = vadd.f32 %v393, %v419
      %v426 = vadd.f32 %v394, %v420
      %v427 = vadd.f32 %v395, %v418
      %v428 = vadd.f32 %v396, %v419
      %v429 = vadd.f32 %v397, %v420
      %v430 = vadd.f32 %v398, %v418
      %v431 = vadd.f32 %v399, %v419
      %v432 = vadd.f32 %v400, %v420
      %v433 = vadd.f32 %v401, %v418
      %v434 = vadd.f32 %v402, %v419
      %v435 = vadd.f32 %v403, %v420
      %v436 = vadd.f32 %v404, %v418
      %v437 = vadd.f32 %v405, %v419
      %v438 = vadd.f32 %v406, %v420
      %v439 = vadd.f32 %v407, %v418
      %v440 = vadd.f32 %v408, %v419
      %v441 = vadd.f32 %v409, %v420
      %v442 = vadd.f32 %v410, %v418
      %v443 = vadd.f32 %v411, %v419
      %v444 = vadd.f32 %v412, %v420
      %v445 = vadd.f32 %v413, %v418
      %v446 = vadd.f32 %v414, %v419
      %v447 = vadd.f32 %v415, %v420
      %448 = vst [vmem:[%s3] sm:$0xff] %v424
      %449 = vst [vmem:[%s3 + $0x8] sm:$0xff] %v425
      %450 = vst [vmem:[%s3 + $0x10] sm:$0xff] %v426
      %451 = vst [vmem:[%s3 + $0x18] sm:$0xff] %v427
      %452 = vst [vmem:[%s3 + $0x20] sm:$0xff] %v428
      %453 = vst [vmem:[%s3 + $0x28] sm:$0xff] %v429
      %454 = vst [vmem:[%s3 + $0x30] sm:$0xff] %v430
      %455 = vst [vmem:[%s3 + $0x38] sm:$0xff] %v431
      %456 = vst [vmem:[%s3 + $0x40] sm:$0xff] %v432
      %457 = vst [vmem:[%s3 + $0x48] sm:$0xff] %v433
      %458 = vst [vmem:[%s3 + $0x50] sm:$0xff] %v434
      %459 = vst [vmem:[%s3 + $0x58] sm:$0xff] %v435
      %460 = vst [vmem:[%s3 + $0x60] sm:$0xff] %v436
      %461 = vst [vmem:[%s3 + $0x68] sm:$0xff] %v437
      %462 = vst [vmem:[%s3 + $0x70] sm:$0xff] %v438
      %463 = vst [vmem:[%s3 + $0x78] sm:$0xff] %v439
      %464 = vst [vmem:[%s3 + $0x80] sm:$0xff] %v440
      %465 = vst [vmem:[%s3 + $0x88] sm:$0xff] %v441
      %466 = vst [vmem:[%s3 + $0x90] sm:$0xff] %v442
      %467 = vst [vmem:[%s3 + $0x98] sm:$0xff] %v443
      %468 = vst [vmem:[%s3 + $0xa0] sm:$0xff] %v444
      %469 = vst [vmem:[%s3 + $0xa8] sm:$0xff] %v445
      %470 = vst [vmem:[%s3 + $0xb0] sm:$0xff] %v446
      %471 = vst [vmem:[%s3 + $0xb8] sm:$0xff] %v447
    $region25: #{seq2seq_forward_pallas.33} parent=1 // pred_fallthru
      _
    // Predicated region
    $region26: #{seq2seq_forward_pallas.33} parent=1 // pred_check
      _
    $region27: #{seq2seq_forward_pallas.33} parent=1 // pred_check_branch
      %473 = sbr.rel (0) target = $region29
    $region28: #{seq2seq_forward_pallas.33} parent=1 // pred_region
      _
    $region29: #{seq2seq_forward_pallas.33} parent=1 // pred_fallthru
      _
    // Predicated region
    $region30: #{seq2seq_forward_pallas.33} parent=1 // pred_check
      _
    $region31: #{seq2seq_forward_pallas.33} parent=1 // pred_check_branch
      %475 = sbr.rel (0) target = $region33
    $region32: #{seq2seq_forward_pallas.33} parent=1 // pred_region
      _
    $region33: #{seq2seq_forward_pallas.33} parent=1 // pred_fallthru
      _
    %476 = vsyncpa [#allocation3], 1

// kernel: seq2seq_forward_pallas.36
$region0: #{seq2seq_forward_pallas.36}
  #allocation0 [shape = 'u32[]', space=smem, size = 0x4, offset = 0x4, fixed_abs, tag = 'smem constant byte address 0x4 - core index']
  #allocation1 [shape = 'u32[72,128]{1,0:T(1,128)}', space=vmem, size = 0x9000, scoped, tag = 'internal scratch']
  %s0 = inlined_call_operand.vmem [shape: f32[64,128], index: 0, kind: input, shape index: {}]
  %s1 = inlined_call_operand.vmem [shape: bf16[128,256], index: 1, kind: input, shape index: {}]
  %s2 = inlined_call_operand.vmem [shape: f32[1,256], index: 2, kind: input, shape index: {}]
  %s3 = inlined_call_operand.vmem [shape: f32[64,256], index: 3, kind: output, shape index: {}]
  %s4 = sld [smem:[#allocation0]]
  $region30: #{seq2seq_forward_pallas.36} parent=0
    _
  %s6 = ssub.s32 1, %s4
  %s7 = scalar_select 0, %s6, %s4
  // Predicated region
  $region2: #{seq2seq_forward_pallas.36} parent=0 // pred_check
    _
  $region3: #{seq2seq_forward_pallas.36} parent=0 // pred_check_branch
    %9 = sbr.rel (0) target = $region5
  $region4: #{seq2seq_forward_pallas.36} parent=0 // pred_region
    _
  $region5: #{seq2seq_forward_pallas.36} parent=0 // pred_fallthru
    _
  // Predicated region
  $region6: #{seq2seq_forward_pallas.36} parent=0 // pred_check
    _
  $region7: #{seq2seq_forward_pallas.36} parent=0 // pred_check_branch
    %11 = sbr.rel (0) target = $region9
  $region8: #{seq2seq_forward_pallas.36} parent=0 // pred_region
    _
  $region9: #{seq2seq_forward_pallas.36} parent=0 // pred_fallthru
    _
  // Predicated region
  $region10: #{seq2seq_forward_pallas.36} parent=0 // pred_check
    _
  $region11: #{seq2seq_forward_pallas.36} parent=0 // pred_check_branch
    %13 = sbr.rel (0) target = $region13
  $region12: #{seq2seq_forward_pallas.36} parent=0 // pred_region
    _
  $region13: #{seq2seq_forward_pallas.36} parent=0 // pred_fallthru
    _
  %p14 = scmp.eq.s32.totalorder 0, 0
  // Predicated region
  $region14: #{seq2seq_forward_pallas.36} parent=0 // pred_check
    %p15 = pneg %p14
  $region15: #{seq2seq_forward_pallas.36} parent=0 // pred_check_branch
    %17 = sbr.rel (%p15) target = $region17
  $region16: #{seq2seq_forward_pallas.36} parent=0 // pred_region
    %18 = vst [vmem:[%s3] sm:$0xff] 0.0
    %19 = vst [vmem:[%s3 + $0x8] sm:$0xff] 0.0
    %20 = vst [vmem:[%s3 + $0x10] sm:$0xff] 0.0
    %21 = vst [vmem:[%s3 + $0x18] sm:$0xff] 0.0
    %22 = vst [vmem:[%s3 + $0x20] sm:$0xff] 0.0
    %23 = vst [vmem:[%s3 + $0x28] sm:$0xff] 0.0
    %24 = vst [vmem:[%s3 + $0x30] sm:$0xff] 0.0
    %25 = vst [vmem:[%s3 + $0x38] sm:$0xff] 0.0
    %26 = vst [vmem:[%s3 + $0x40] sm:$0xff] 0.0
    %27 = vst [vmem:[%s3 + $0x48] sm:$0xff] 0.0
    %28 = vst [vmem:[%s3 + $0x50] sm:$0xff] 0.0
    %29 = vst [vmem:[%s3 + $0x58] sm:$0xff] 0.0
    %30 = vst [vmem:[%s3 + $0x60] sm:$0xff] 0.0
    %31 = vst [vmem:[%s3 + $0x68] sm:$0xff] 0.0
    %32 = vst [vmem:[%s3 + $0x70] sm:$0xff] 0.0
    %33 = vst [vmem:[%s3 + $0x78] sm:$0xff] 0.0
  $region17: #{seq2seq_forward_pallas.36} parent=0 // pred_fallthru
    _
  %v34 = vld [vmem:[%s3] sm:$0xff]
  %v35 = vld [vmem:[%s3 + $0x8] sm:$0xff]
  %v36 = vld [vmem:[%s3 + $0x10] sm:$0xff]
  %v37 = vld [vmem:[%s3 + $0x18] sm:$0xff]
  %v38 = vld [vmem:[%s3 + $0x20] sm:$0xff]
  %v39 = vld [vmem:[%s3 + $0x28] sm:$0xff]
  %v40 = vld [vmem:[%s3 + $0x30] sm:$0xff]
  %v41 = vld [vmem:[%s3 + $0x38] sm:$0xff]
  %v42 = vld [vmem:[%s3 + $0x40] sm:$0xff]
  %v43 = vld [vmem:[%s3 + $0x48] sm:$0xff]
  %v44 = vld [vmem:[%s3 + $0x50] sm:$0xff]
  %v45 = vld [vmem:[%s3 + $0x58] sm:$0xff]
  %v46 = vld [vmem:[%s3 + $0x60] sm:$0xff]
  %v47 = vld [vmem:[%s3 + $0x68] sm:$0xff]
  %v48 = vld [vmem:[%s3 + $0x70] sm:$0xff]
  %v49 = vld [vmem:[%s3 + $0x78] sm:$0xff]
  %v50 = vld [vmem:[%s0] sm:$0xff]
  %v51 = vld [vmem:[%s0 + $0x8] sm:$0xff]
  %v52 = vld [vmem:[%s0 + $0x10] sm:$0xff]
  %v53 = vld [vmem:[%s0 + $0x18] sm:$0xff]
  %v54 = vld [vmem:[%s0 + $0x20] sm:$0xff]
  %v55 = vld [vmem:[%s0 + $0x28] sm:$0xff]
  %v56 = vld [vmem:[%s0 + $0x30] sm:$0xff]
  %v57 = vld [vmem:[%s0 + $0x38] sm:$0xff]
  %v58 = vpack.c.bf16 %v51, %v50
  %v59 = vpack.c.bf16 %v53, %v52
  %v60 = vpack.c.bf16 %v55, %v54
  %v61 = vpack.c.bf16 %v57, %v56
  %v62 = vld [vmem:[%s1] sm:$0xff]
  %v63 = vld [vmem:[%s1 + $0x8] sm:$0xff]
  %v64 = vld [vmem:[%s1 + $0x10] sm:$0xff]
  %v65 = vld [vmem:[%s1 + $0x18] sm:$0xff]
  %v66 = vld [vmem:[%s1 + $0x20] sm:$0xff]
  %v67 = vld [vmem:[%s1 + $0x28] sm:$0xff]
  %v68 = vld [vmem:[%s1 + $0x30] sm:$0xff]
  %v69 = vld [vmem:[%s1 + $0x38] sm:$0xff]
  %v70 = vld [vmem:[%s1 + $0x40] sm:$0xff]
  %v71 = vld [vmem:[%s1 + $0x48] sm:$0xff]
  %v72 = vld [vmem:[%s1 + $0x50] sm:$0xff]
  %v73 = vld [vmem:[%s1 + $0x58] sm:$0xff]
  %v74 = vld [vmem:[%s1 + $0x60] sm:$0xff]
  %v75 = vld [vmem:[%s1 + $0x68] sm:$0xff]
  %v76 = vld [vmem:[%s1 + $0x70] sm:$0xff]
  %v77 = vld [vmem:[%s1 + $0x78] sm:$0xff]
  %v94 = vunpack.c.l.b16 %v62
  %v95 = vunpack.c.h.b16 %v62
  %v96 = vunpack.c.l.b16 %v63
  %v97 = vunpack.c.h.b16 %v63
  %v98 = vunpack.c.l.b16 %v64
  %v99 = vunpack.c.h.b16 %v64
  %v100 = vunpack.c.l.b16 %v65
  %v101 = vunpack.c.h.b16 %v65
  %v102 = vunpack.c.l.b16 %v66
  %v103 = vunpack.c.h.b16 %v66
  %v104 = vunpack.c.l.b16 %v67
  %v105 = vunpack.c.h.b16 %v67
  %v106 = vunpack.c.l.b16 %v68
  %v107 = vunpack.c.h.b16 %v68
  %v108 = vunpack.c.l.b16 %v69
  %v109 = vunpack.c.h.b16 %v69
  %v110 = vunpack.c.l.b16 %v70
  %v111 = vunpack.c.h.b16 %v70
  %v112 = vunpack.c.l.b16 %v71
  %v113 = vunpack.c.h.b16 %v71
  %v114 = vunpack.c.l.b16 %v72
  %v115 = vunpack.c.h.b16 %v72
  %v116 = vunpack.c.l.b16 %v73
  %v117 = vunpack.c.h.b16 %v73
  %v118 = vunpack.c.l.b16 %v74
  %v119 = vunpack.c.h.b16 %v74
  %v120 = vunpack.c.l.b16 %v75
  %v121 = vunpack.c.h.b16 %v75
  %v122 = vunpack.c.l.b16 %v76
  %v123 = vunpack.c.h.b16 %v76
  %v124 = vunpack.c.l.b16 %v77
  %v125 = vunpack.c.h.b16 %v77
  %v126 = vpack.c.b16 %v96, %v94
  %v127 = vpack.c.b16 %v97, %v95
  %v128 = vpack.c.b16 %v100, %v98
  %v129 = vpack.c.b16 %v101, %v99
  %v130 = vpack.c.b16 %v104, %v102
  %v131 = vpack.c.b16 %v105, %v103
  %v132 = vpack.c.b16 %v108, %v106
  %v133 = vpack.c.b16 %v109, %v107
  %v134 = vpack.c.b16 %v112, %v110
  %v135 = vpack.c.b16 %v113, %v111
  %v136 = vpack.c.b16 %v116, %v114
  %v137 = vpack.c.b16 %v117, %v115
  %v138 = vpack.c.b16 %v120, %v118
  %v139 = vpack.c.b16 %v121, %v119
  %v140 = vpack.c.b16 %v124, %v122
  %v141 = vpack.c.b16 %v125, %v123
  %158 = vmatpush.bf16.msra.mxu0 %v140
  %159 = vmatpush.bf16.msra.mxu0 %v138
  %160 = vmatpush.bf16.msra.mxu0 %v136
  %161 = vmatpush.bf16.msra.mxu0 %v134
  %162 = vmatpush.bf16.msra.mxu0 %v132
  %163 = vmatpush.bf16.msra.mxu0 %v130
  %164 = vmatpush.bf16.msra.mxu0 %v128
  %165 = vmatpush.bf16.msra.mxu0 %v126
  %166 = vmatmul.bf16.gmra.mxu0 %v58
  %v167 = vpop.f32.mrf.mxu0
  %v168 = vadd.f32 0.0, %v167
  %v169 = vpop.f32.mrf.mxu0
  %v170 = vadd.f32 0.0, %v169
  %171 = vmatmul.bf16.gmra.mxu0 %v59
  %v172 = vpop.f32.mrf.mxu0
  %v173 = vadd.f32 0.0, %v172
  %v174 = vpop.f32.mrf.mxu0
  %v175 = vadd.f32 0.0, %v174
  %176 = vmatmul.bf16.gmra.mxu0 %v60
  %v177 = vpop.f32.mrf.mxu0
  %v178 = vadd.f32 0.0, %v177
  %v179 = vpop.f32.mrf.mxu0
  %v180 = vadd.f32 0.0, %v179
  %181 = vmatmul.bf16.gmra.mxu0 %v61
  %v182 = vpop.f32.mrf.mxu0
  %v183 = vadd.f32 0.0, %v182
  %v184 = vpop.f32.mrf.mxu0
  %v185 = vadd.f32 0.0, %v184
  %186 = vdwg.mxu0
  %187 = vmatpush.bf16.msra.mxu0 %v141
  %188 = vmatpush.bf16.msra.mxu0 %v139
  %189 = vmatpush.bf16.msra.mxu0 %v137
  %190 = vmatpush.bf16.msra.mxu0 %v135
  %191 = vmatpush.bf16.msra.mxu0 %v133
  %192 = vmatpush.bf16.msra.mxu0 %v131
  %193 = vmatpush.bf16.msra.mxu0 %v129
  %194 = vmatpush.bf16.msra.mxu0 %v127
  %195 = vmatmul.bf16.gmra.mxu0 %v58
  %v196 = vpop.f32.mrf.mxu0
  %v197 = vadd.f32 0.0, %v196
  %v198 = vpop.f32.mrf.mxu0
  %v199 = vadd.f32 0.0, %v198
  %200 = vmatmul.bf16.gmra.mxu0 %v59
  %v201 = vpop.f32.mrf.mxu0
  %v202 = vadd.f32 0.0, %v201
  %v203 = vpop.f32.mrf.mxu0
  %v204 = vadd.f32 0.0, %v203
  %205 = vmatmul.bf16.gmra.mxu0 %v60
  %v206 = vpop.f32.mrf.mxu0
  %v207 = vadd.f32 0.0, %v206
  %v208 = vpop.f32.mrf.mxu0
  %v209 = vadd.f32 0.0, %v208
  %210 = vmatmul.bf16.gmra.mxu0 %v61
  %v211 = vpop.f32.mrf.mxu0
  %v212 = vadd.f32 0.0, %v211
  %v213 = vpop.f32.mrf.mxu0
  %v214 = vadd.f32 0.0, %v213
  %215 = vdwg.mxu0
  %v216 = vadd.f32 %v34, %v168
  %v217 = vadd.f32 %v35, %v197
  %v218 = vadd.f32 %v36, %v170
  %v219 = vadd.f32 %v37, %v199
  %v220 = vadd.f32 %v38, %v173
  %v221 = vadd.f32 %v39, %v202
  %v222 = vadd.f32 %v40, %v175
  %v223 = vadd.f32 %v41, %v204
  %v224 = vadd.f32 %v42, %v178
  %v225 = vadd.f32 %v43, %v207
  %v226 = vadd.f32 %v44, %v180
  %v227 = vadd.f32 %v45, %v209
  %v228 = vadd.f32 %v46, %v183
  %v229 = vadd.f32 %v47, %v212
  %v230 = vadd.f32 %v48, %v185
  %v231 = vadd.f32 %v49, %v214
  %232 = vst [vmem:[%s3] sm:$0xff] %v216
  %233 = vst [vmem:[%s3 + $0x8] sm:$0xff] %v217
  %234 = vst [vmem:[%s3 + $0x10] sm:$0xff] %v218
  %235 = vst [vmem:[%s3 + $0x18] sm:$0xff] %v219
  %236 = vst [vmem:[%s3 + $0x20] sm:$0xff] %v220
  %237 = vst [vmem:[%s3 + $0x28] sm:$0xff] %v221
  %238 = vst [vmem:[%s3 + $0x30] sm:$0xff] %v222
  %239 = vst [vmem:[%s3 + $0x38] sm:$0xff] %v223
  %240 = vst [vmem:[%s3 + $0x40] sm:$0xff] %v224
  %241 = vst [vmem:[%s3 + $0x48] sm:$0xff] %v225
  %242 = vst [vmem:[%s3 + $0x50] sm:$0xff] %v226
  %243 = vst [vmem:[%s3 + $0x58] sm:$0xff] %v227
  %244 = vst [vmem:[%s3 + $0x60] sm:$0xff] %v228
  %245 = vst [vmem:[%s3 + $0x68] sm:$0xff] %v229
  %246 = vst [vmem:[%s3 + $0x70] sm:$0xff] %v230
  %247 = vst [vmem:[%s3 + $0x78] sm:$0xff] %v231
  // Predicated region
  $region18: #{seq2seq_forward_pallas.36} parent=0 // pred_check
    %p248 = pneg %p14
  $region19: #{seq2seq_forward_pallas.36} parent=0 // pred_check_branch
    %250 = sbr.rel (%p248) target = $region21
  $region20: #{seq2seq_forward_pallas.36} parent=0 // pred_region
    %v251 = vld [vmem:[%s3] sm:$0xff]
    %v252 = vld [vmem:[%s3 + $0x8] sm:$0xff]
    %v253 = vld [vmem:[%s3 + $0x10] sm:$0xff]
    %v254 = vld [vmem:[%s3 + $0x18] sm:$0xff]
    %v255 = vld [vmem:[%s3 + $0x20] sm:$0xff]
    %v256 = vld [vmem:[%s3 + $0x28] sm:$0xff]
    %v257 = vld [vmem:[%s3 + $0x30] sm:$0xff]
    %v258 = vld [vmem:[%s3 + $0x38] sm:$0xff]
    %v259 = vld [vmem:[%s3 + $0x40] sm:$0xff]
    %v260 = vld [vmem:[%s3 + $0x48] sm:$0xff]
    %v261 = vld [vmem:[%s3 + $0x50] sm:$0xff]
    %v262 = vld [vmem:[%s3 + $0x58] sm:$0xff]
    %v263 = vld [vmem:[%s3 + $0x60] sm:$0xff]
    %v264 = vld [vmem:[%s3 + $0x68] sm:$0xff]
    %v265 = vld [vmem:[%s3 + $0x70] sm:$0xff]
    %v266 = vld [vmem:[%s3 + $0x78] sm:$0xff]
    %v267 = vld [vmem:[%s2] sm:$0x3]
    %v269 = vperm.slane %v267, 0
    %v270 = vperm.slane %v267, 1
    %v273 = vadd.f32 %v251, %v269
    %v274 = vadd.f32 %v252, %v270
    %v275 = vadd.f32 %v253, %v269
    %v276 = vadd.f32 %v254, %v270
    %v277 = vadd.f32 %v255, %v269
    %v278 = vadd.f32 %v256, %v270
    %v279 = vadd.f32 %v257, %v269
    %v280 = vadd.f32 %v258, %v270
    %v281 = vadd.f32 %v259, %v269
    %v282 = vadd.f32 %v260, %v270
    %v283 = vadd.f32 %v261, %v269
    %v284 = vadd.f32 %v262, %v270
    %v285 = vadd.f32 %v263, %v269
    %v286 = vadd.f32 %v264, %v270
    %v287 = vadd.f32 %v265, %v269
    %v288 = vadd.f32 %v266, %v270
    %v289 = vmax.f32 %v273, 0.0
    %v290 = vmax.f32 %v274, 0.0
    %v291 = vmax.f32 %v275, 0.0
    %v292 = vmax.f32 %v276, 0.0
    %v293 = vmax.f32 %v277, 0.0
    %v294 = vmax.f32 %v278, 0.0
    %v295 = vmax.f32 %v279, 0.0
    %v296 = vmax.f32 %v280, 0.0
    %v297 = vmax.f32 %v281, 0.0
    %v298 = vmax.f32 %v282, 0.0
    %v299 = vmax.f32 %v283, 0.0
    %v300 = vmax.f32 %v284, 0.0
    %v301 = vmax.f32 %v285, 0.0
    %v302 = vmax.f32 %v286, 0.0
    %v303 = vmax.f32 %v287, 0.0
    %v304 = vmax.f32 %v288, 0.0
    %305 = vst [vmem:[%s3] sm:$0xff] %v289
    %306 = vst [vmem:[%s3 + $0x8] sm:$0xff] %v290
    %307 = vst [vmem:[%s3 + $0x10] sm:$0xff] %v291
    %308 = vst [vmem:[%s3 + $0x18] sm:$0xff] %v292
    %309 = vst [vmem:[%s3 + $0x20] sm:$0xff] %v293
    %310 = vst [vmem:[%s3 + $0x28] sm:$0xff] %v294
    %311 = vst [vmem:[%s3 + $0x30] sm:$0xff] %v295
    %312 = vst [vmem:[%s3 + $0x38] sm:$0xff] %v296
    %313 = vst [vmem:[%s3 + $0x40] sm:$0xff] %v297
    %314 = vst [vmem:[%s3 + $0x48] sm:$0xff] %v298
    %315 = vst [vmem:[%s3 + $0x50] sm:$0xff] %v299
    %316 = vst [vmem:[%s3 + $0x58] sm:$0xff] %v300
    %317 = vst [vmem:[%s3 + $0x60] sm:$0xff] %v301
    %318 = vst [vmem:[%s3 + $0x68] sm:$0xff] %v302
    %319 = vst [vmem:[%s3 + $0x70] sm:$0xff] %v303
    %320 = vst [vmem:[%s3 + $0x78] sm:$0xff] %v304
  $region21: #{seq2seq_forward_pallas.36} parent=0 // pred_fallthru
    _
  // Predicated region
  $region22: #{seq2seq_forward_pallas.36} parent=0 // pred_check
    _
  $region23: #{seq2seq_forward_pallas.36} parent=0 // pred_check_branch
    %322 = sbr.rel (0) target = $region25
  $region24: #{seq2seq_forward_pallas.36} parent=0 // pred_region
    _
  $region25: #{seq2seq_forward_pallas.36} parent=0 // pred_fallthru
    _
  // Predicated region
  $region26: #{seq2seq_forward_pallas.36} parent=0 // pred_check
    _
  $region27: #{seq2seq_forward_pallas.36} parent=0 // pred_check_branch
    %324 = sbr.rel (0) target = $region29
  $region28: #{seq2seq_forward_pallas.36} parent=0 // pred_region
    _
  $region29: #{seq2seq_forward_pallas.36} parent=0 // pred_fallthru
    _

// kernel: seq2seq_forward_pallas.34
$region0: #{seq2seq_forward_pallas.34}
  #allocation0 [shape = 'u32[]', space=smem, size = 0x4, offset = 0x4, fixed_abs, tag = 'smem constant byte address 0x4 - core index']
  #allocation1 [shape = 'u32[72,128]{1,0:T(1,128)}', space=vmem, size = 0x9000, scoped, tag = 'internal scratch']
  %s0 = inlined_call_operand.vmem [shape: bf16[4,4,16,32], index: 0, kind: input, shape index: {}]
  %s1 = inlined_call_operand.vmem [shape: bf16[4,4,16,32], index: 1, kind: input, shape index: {}]
  %s2 = inlined_call_operand.vmem [shape: bf16[4,4,16,32], index: 2, kind: input, shape index: {}]
  %s3 = inlined_call_operand.vmem [shape: f32[4,16,16], index: 3, kind: input, shape index: {}]
  %s4 = inlined_call_operand.vmem [shape: f32[4,4,16,32], index: 4, kind: output, shape index: {}]
  %s5 = sld [smem:[#allocation0]]
  $region26: #{seq2seq_forward_pallas.34} parent=0
    _
  %s7 = ssub.s32 1, %s5
  %s8 = scalar_select 0, %s7, %s5
  // Predicated region
  $region2: #{seq2seq_forward_pallas.34} parent=0 // pred_check
    _
  $region3: #{seq2seq_forward_pallas.34} parent=0 // pred_check_branch
    %10 = sbr.rel (0) target = $region5
  $region4: #{seq2seq_forward_pallas.34} parent=0 // pred_region
    _
  $region5: #{seq2seq_forward_pallas.34} parent=0 // pred_fallthru
    _
  // Predicated region
  $region6: #{seq2seq_forward_pallas.34} parent=0 // pred_check
    _
  $region7: #{seq2seq_forward_pallas.34} parent=0 // pred_check_branch
    %12 = sbr.rel (0) target = $region9
  $region8: #{seq2seq_forward_pallas.34} parent=0 // pred_region
    _
  $region9: #{seq2seq_forward_pallas.34} parent=0 // pred_fallthru
    _
  // Predicated region
  $region10: #{seq2seq_forward_pallas.34} parent=0 // pred_check
    _
  $region11: #{seq2seq_forward_pallas.34} parent=0 // pred_check_branch
    %14 = sbr.rel (0) target = $region13
  $region12: #{seq2seq_forward_pallas.34} parent=0 // pred_region
    _
  $region13: #{seq2seq_forward_pallas.34} parent=0 // pred_fallthru
    _
  // Predicated region
  $region14: #{seq2seq_forward_pallas.34} parent=0 // pred_check
    _
  $region15: #{seq2seq_forward_pallas.34} parent=0 // pred_check_branch
    %16 = sbr.rel (0) target = $region17
  $region16: #{seq2seq_forward_pallas.34} parent=0 // pred_region
    _
  $region17: #{seq2seq_forward_pallas.34} parent=0 // pred_fallthru
    _
  %v18 = vld [vmem:[%s0] sm:$0xf]
  %v19 = vld [vmem:[%s0 + $0x4] sm:$0xf]
  %v20 = vld [vmem:[%s0 + $0x8] sm:$0xf]
  %v21 = vld [vmem:[%s0 + $0xc] sm:$0xf]
  %v22 = vld [vmem:[%s0 + $0x10] sm:$0xf]
  %v23 = vld [vmem:[%s0 + $0x14] sm:$0xf]
  %v24 = vld [vmem:[%s0 + $0x18] sm:$0xf]
  %v25 = vld [vmem:[%s0 + $0x1c] sm:$0xf]
  %v26 = vld [vmem:[%s0 + $0x20] sm:$0xf]
  %v27 = vld [vmem:[%s0 + $0x24] sm:$0xf]
  %v28 = vld [vmem:[%s0 + $0x28] sm:$0xf]
  %v29 = vld [vmem:[%s0 + $0x2c] sm:$0xf]
  %v30 = vld [vmem:[%s0 + $0x30] sm:$0xf]
  %v31 = vld [vmem:[%s0 + $0x34] sm:$0xf]
  %v32 = vld [vmem:[%s0 + $0x38] sm:$0xf]
  %v33 = vld [vmem:[%s0 + $0x3c] sm:$0xf]
  %v34 = vld [vmem:[%s0 + $0x40] sm:$0xf]
  %v35 = vld [vmem:[%s0 + $0x44] sm:$0xf]
  %v36 = vld [vmem:[%s0 + $0x48] sm:$0xf]
  %v37 = vld [vmem:[%s0 + $0x4c] sm:$0xf]
  %v38 = vld [vmem:[%s0 + $0x50] sm:$0xf]
  %v39 = vld [vmem:[%s0 + $0x54] sm:$0xf]
  %v40 = vld [vmem:[%s0 + $0x58] sm:$0xf]
  %v41 = vld [vmem:[%s0 + $0x5c] sm:$0xf]
  %v42 = vld [vmem:[%s0 + $0x60] sm:$0xf]
  %v43 = vld [vmem:[%s0 + $0x64] sm:$0xf]
  %v44 = vld [vmem:[%s0 + $0x68] sm:$0xf]
  %v45 = vld [vmem:[%s0 + $0x6c] sm:$0xf]
  %v46 = vld [vmem:[%s0 + $0x70] sm:$0xf]
  %v47 = vld [vmem:[%s0 + $0x74] sm:$0xf]
  %v48 = vld [vmem:[%s0 + $0x78] sm:$0xf]
  %v49 = vld [vmem:[%s0 + $0x7c] sm:$0xf]
  %v50 = vld [vmem:[%s1] sm:$0xf]
  %v51 = vld [vmem:[%s1 + $0x4] sm:$0xf]
  %v52 = vld [vmem:[%s1 + $0x8] sm:$0xf]
  %v53 = vld [vmem:[%s1 + $0xc] sm:$0xf]
  %v54 = vld [vmem:[%s1 + $0x10] sm:$0xf]
  %v55 = vld [vmem:[%s1 + $0x14] sm:$0xf]
  %v56 = vld [vmem:[%s1 + $0x18] sm:$0xf]
  %v57 = vld [vmem:[%s1 + $0x1c] sm:$0xf]
  %v58 = vld [vmem:[%s1 + $0x20] sm:$0xf]
  %v59 = vld [vmem:[%s1 + $0x24] sm:$0xf]
  %v60 = vld [vmem:[%s1 + $0x28] sm:$0xf]
  %v61 = vld [vmem:[%s1 + $0x2c] sm:$0xf]
  %v62 = vld [vmem:[%s1 + $0x30] sm:$0xf]
  %v63 = vld [vmem:[%s1 + $0x34] sm:$0xf]
  %v64 = vld [vmem:[%s1 + $0x38] sm:$0xf]
  %v65 = vld [vmem:[%s1 + $0x3c] sm:$0xf]
  %v66 = vld [vmem:[%s1 + $0x40] sm:$0xf]
  %v67 = vld [vmem:[%s1 + $0x44] sm:$0xf]
  %v68 = vld [vmem:[%s1 + $0x48] sm:$0xf]
  %v69 = vld [vmem:[%s1 + $0x4c] sm:$0xf]
  %v70 = vld [vmem:[%s1 + $0x50] sm:$0xf]
  %v71 = vld [vmem:[%s1 + $0x54] sm:$0xf]
  %v72 = vld [vmem:[%s1 + $0x58] sm:$0xf]
  %v73 = vld [vmem:[%s1 + $0x5c] sm:$0xf]
  %v74 = vld [vmem:[%s1 + $0x60] sm:$0xf]
  %v75 = vld [vmem:[%s1 + $0x64] sm:$0xf]
  %v76 = vld [vmem:[%s1 + $0x68] sm:$0xf]
  %v77 = vld [vmem:[%s1 + $0x6c] sm:$0xf]
  %v78 = vld [vmem:[%s1 + $0x70] sm:$0xf]
  %v79 = vld [vmem:[%s1 + $0x74] sm:$0xf]
  %v80 = vld [vmem:[%s1 + $0x78] sm:$0xf]
  %v81 = vld [vmem:[%s1 + $0x7c] sm:$0xf]
  %v82 = vld [vmem:[%s2] sm:$0xf]
  %v83 = vld [vmem:[%s2 + $0x4] sm:$0xf]
  %v84 = vld [vmem:[%s2 + $0x8] sm:$0xf]
  %v85 = vld [vmem:[%s2 + $0xc] sm:$0xf]
  %v86 = vld [vmem:[%s2 + $0x10] sm:$0xf]
  %v87 = vld [vmem:[%s2 + $0x14] sm:$0xf]
  %v88 = vld [vmem:[%s2 + $0x18] sm:$0xf]
  %v89 = vld [vmem:[%s2 + $0x1c] sm:$0xf]
  %v90 = vld [vmem:[%s2 + $0x20] sm:$0xf]
  %v91 = vld [vmem:[%s2 + $0x24] sm:$0xf]
  %v92 = vld [vmem:[%s2 + $0x28] sm:$0xf]
  %v93 = vld [vmem:[%s2 + $0x2c] sm:$0xf]
  %v94 = vld [vmem:[%s2 + $0x30] sm:$0xf]
  %v95 = vld [vmem:[%s2 + $0x34] sm:$0xf]
  %v96 = vld [vmem:[%s2 + $0x38] sm:$0xf]
  %v97 = vld [vmem:[%s2 + $0x3c] sm:$0xf]
  %v98 = vld [vmem:[%s2 + $0x40] sm:$0xf]
  %v99 = vld [vmem:[%s2 + $0x44] sm:$0xf]
  %v100 = vld [vmem:[%s2 + $0x48] sm:$0xf]
  %v101 = vld [vmem:[%s2 + $0x4c] sm:$0xf]
  %v102 = vld [vmem:[%s2 + $0x50] sm:$0xf]
  %v103 = vld [vmem:[%s2 + $0x54] sm:$0xf]
  %v104 = vld [vmem:[%s2 + $0x58] sm:$0xf]
  %v105 = vld [vmem:[%s2 + $0x5c] sm:$0xf]
  %v106 = vld [vmem:[%s2 + $0x60] sm:$0xf]
  %v107 = vld [vmem:[%s2 + $0x64] sm:$0xf]
  %v108 = vld [vmem:[%s2 + $0x68] sm:$0xf]
  %v109 = vld [vmem:[%s2 + $0x6c] sm:$0xf]
  %v110 = vld [vmem:[%s2 + $0x70] sm:$0xf]
  %v111 = vld [vmem:[%s2 + $0x74] sm:$0xf]
  %v112 = vld [vmem:[%s2 + $0x78] sm:$0xf]
  %v113 = vld [vmem:[%s2 + $0x7c] sm:$0xf]
  %v116 = vunpack.c.l.b16 %v18
  %v117 = vunpack.c.l.b16 %v19
  %v118 = vpack.c.b16 %v117, %v116
  %v121 = vunpack.c.l.b16 %v50
  %v122 = vunpack.c.l.b16 %v51
  %v123 = vpack.c.b16 %v122, %v121
  %vm124 = vcmask 261120
  %v126 = vsel %vm124, %v118, 0
  %v129 = vsel %vm124, %v123, 0
  %131 = vmatpush.bf16.xpose.msra.mxu0 0
  %132 = vmatpush.bf16.xpose.msra.mxu0 0
  %133 = vmatpush.bf16.xpose.msra.mxu0 0
  %134 = vmatpush.bf16.xpose.msra.mxu0 0
  %135 = vmatpush.bf16.xpose.msra.mxu0 0
  %136 = vmatpush.bf16.xpose.msra.mxu0 0
  %137 = vmatpush.bf16.xpose.msra.mxu0 0
  %138 = vmatpush.bf16.xpose.msra.mxu0 %v129
  %139 = vmatmul.bf16.gmra.mxu0 %v126
  %v140 = vpop.f32.mrf.mxu0
  %v141 = vadd.f32 0.0, %v140
  %v142 = vpop.f32.mrf.mxu0
  %v143 = vadd.f32 0.0, %v142
  %144 = vdwg.mxu0
  %v147 = vunpack.c.l.b16 %v20
  %v148 = vunpack.c.l.b16 %v21
  %v149 = vpack.c.b16 %v148, %v147
  %v152 = vunpack.c.l.b16 %v52
  %v153 = vunpack.c.l.b16 %v53
  %v154 = vpack.c.b16 %v153, %v152
  %v156 = vsel %vm124, %v149, 0
  %v159 = vsel %vm124, %v154, 0
  %161 = vmatpush.bf16.xpose.msra.mxu0 0
  %162 = vmatpush.bf16.xpose.msra.mxu0 0
  %163 = vmatpush.bf16.xpose.msra.mxu0 0
  %164 = vmatpush.bf16.xpose.msra.mxu0 0
  %165 = vmatpush.bf16.xpose.msra.mxu0 0
  %166 = vmatpush.bf16.xpose.msra.mxu0 0
  %167 = vmatpush.bf16.xpose.msra.mxu0 0
  %168 = vmatpush.bf16.xpose.msra.mxu0 %v159
  %169 = vmatmul.bf16.gmra.mxu0 %v156
  %v170 = vpop.f32.mrf.mxu0
  %v171 = vadd.f32 0.0, %v170
  %v172 = vpop.f32.mrf.mxu0
  %v173 = vadd.f32 0.0, %v172
  %174 = vdwg.mxu0
  %v177 = vunpack.c.l.b16 %v22
  %v178 = vunpack.c.l.b16 %v23
  %v179 = vpack.c.b16 %v178, %v177
  %v182 = vunpack.c.l.b16 %v54
  %v183 = vunpack.c.l.b16 %v55
  %v184 = vpack.c.b16 %v183, %v182
  %v186 = vsel %vm124, %v179, 0
  %v189 = vsel %vm124, %v184, 0
  %191 = vmatpush.bf16.xpose.msra.mxu0 0
  %192 = vmatpush.bf16.xpose.msra.mxu0 0
  %193 = vmatpush.bf16.xpose.msra.mxu0 0
  %194 = vmatpush.bf16.xpose.msra.mxu0 0
  %195 = vmatpush.bf16.xpose.msra.mxu0 0
  %196 = vmatpush.bf16.xpose.msra.mxu0 0
  %197 = vmatpush.bf16.xpose.msra.mxu0 0
  %198 = vmatpush.bf16.xpose.msra.mxu0 %v189
  %199 = vmatmul.bf16.gmra.mxu0 %v186
  %v200 = vpop.f32.mrf.mxu0
  %v201 = vadd.f32 0.0, %v200
  %v202 = vpop.f32.mrf.mxu0
  %v203 = vadd.f32 0.0, %v202
  %204 = vdwg.mxu0
  %v207 = vunpack.c.l.b16 %v24
  %v208 = vunpack.c.l.b16 %v25
  %v209 = vpack.c.b16 %v208, %v207
  %v212 = vunpack.c.l.b16 %v56
  %v213 = vunpack.c.l.b16 %v57
  %v214 = vpack.c.b16 %v213, %v212
  %v216 = vsel %vm124, %v209, 0
  %v219 = vsel %vm124, %v214, 0
  %221 = vmatpush.bf16.xpose.msra.mxu0 0
  %222 = vmatpush.bf16.xpose.msra.mxu0 0
  %223 = vmatpush.bf16.xpose.msra.mxu0 0
  %224 = vmatpush.bf16.xpose.msra.mxu0 0
  %225 = vmatpush.bf16.xpose.msra.mxu0 0
  %226 = vmatpush.bf16.xpose.msra.mxu0 0
  %227 = vmatpush.bf16.xpose.msra.mxu0 0
  %228 = vmatpush.bf16.xpose.msra.mxu0 %v219
  %229 = vmatmul.bf16.gmra.mxu0 %v216
  %v230 = vpop.f32.mrf.mxu0
  %v231 = vadd.f32 0.0, %v230
  %v232 = vpop.f32.mrf.mxu0
  %v233 = vadd.f32 0.0, %v232
  %234 = vdwg.mxu0
  %v237 = vunpack.c.l.b16 %v26
  %v238 = vunpack.c.l.b16 %v27
  %v239 = vpack.c.b16 %v238, %v237
  %v242 = vunpack.c.l.b16 %v58
  %v243 = vunpack.c.l.b16 %v59
  %v244 = vpack.c.b16 %v243, %v242
  %v246 = vsel %vm124, %v239, 0
  %v249 = vsel %vm124, %v244, 0
  %251 = vmatpush.bf16.xpose.msra.mxu0 0
  %252 = vmatpush.bf16.xpose.msra.mxu0 0
  %253 = vmatpush.bf16.xpose.msra.mxu0 0
  %254 = vmatpush.bf16.xpose.msra.mxu0 0
  %255 = vmatpush.bf16.xpose.msra.mxu0 0
  %256 = vmatpush.bf16.xpose.msra.mxu0 0
  %257 = vmatpush.bf16.xpose.msra.mxu0 0
  %258 = vmatpush.bf16.xpose.msra.mxu0 %v249
  %259 = vmatmul.bf16.gmra.mxu0 %v246
  %v260 = vpop.f32.mrf.mxu0
  %v261 = vadd.f32 0.0, %v260
  %v262 = vpop.f32.mrf.mxu0
  %v263 = vadd.f32 0.0, %v262
  %264 = vdwg.mxu0
  %v267 = vunpack.c.l.b16 %v28
  %v268 = vunpack.c.l.b16 %v29
  %v269 = vpack.c.b16 %v268, %v267
  %v272 = vunpack.c.l.b16 %v60
  %v273 = vunpack.c.l.b16 %v61
  %v274 = vpack.c.b16 %v273, %v272
  %v276 = vsel %vm124, %v269, 0
  %v279 = vsel %vm124, %v274, 0
  %281 = vmatpush.bf16.xpose.msra.mxu0 0
  %282 = vmatpush.bf16.xpose.msra.mxu0 0
  %283 = vmatpush.bf16.xpose.msra.mxu0 0
  %284 = vmatpush.bf16.xpose.msra.mxu0 0
  %285 = vmatpush.bf16.xpose.msra.mxu0 0
  %286 = vmatpush.bf16.xpose.msra.mxu0 0
  %287 = vmatpush.bf16.xpose.msra.mxu0 0
  %288 = vmatpush.bf16.xpose.msra.mxu0 %v279
  %289 = vmatmul.bf16.gmra.mxu0 %v276
  %v290 = vpop.f32.mrf.mxu0
  %v291 = vadd.f32 0.0, %v290
  %v292 = vpop.f32.mrf.mxu0
  %v293 = vadd.f32 0.0, %v292
  %294 = vdwg.mxu0
  %v297 = vunpack.c.l.b16 %v30
  %v298 = vunpack.c.l.b16 %v31
  %v299 = vpack.c.b16 %v298, %v297
  %v302 = vunpack.c.l.b16 %v62
  %v303 = vunpack.c.l.b16 %v63
  %v304 = vpack.c.b16 %v303, %v302
  %v306 = vsel %vm124, %v299, 0
  %v309 = vsel %vm124, %v304, 0
  %311 = vmatpush.bf16.xpose.msra.mxu0 0
  %312 = vmatpush.bf16.xpose.msra.mxu0 0
  %313 = vmatpush.bf16.xpose.msra.mxu0 0
  %314 = vmatpush.bf16.xpose.msra.mxu0 0
  %315 = vmatpush.bf16.xpose.msra.mxu0 0
  %316 = vmatpush.bf16.xpose.msra.mxu0 0
  %317 = vmatpush.bf16.xpose.msra.mxu0 0
  %318 = vmatpush.bf16.xpose.msra.mxu0 %v309
  %319 = vmatmul.bf16.gmra.mxu0 %v306
  %v320 = vpop.f32.mrf.mxu0
  %v321 = vadd.f32 0.0, %v320
  %v322 = vpop.f32.mrf.mxu0
  %v323 = vadd.f32 0.0, %v322
  %324 = vdwg.mxu0
  %v327 = vunpack.c.l.b16 %v32
  %v328 = vunpack.c.l.b16 %v33
  %v329 = vpack.c.b16 %v328, %v327
  %v332 = vunpack.c.l.b16 %v64
  %v333 = vunpack.c.l.b16 %v65
  %v334 = vpack.c.b16 %v333, %v332
  %v336 = vsel %vm124, %v329, 0
  %v339 = vsel %vm124, %v334, 0
  %341 = vmatpush.bf16.xpose.msra.mxu0 0
  %342 = vmatpush.bf16.xpose.msra.mxu0 0
  %343 = vmatpush.bf16.xpose.msra.mxu0 0
  %344 = vmatpush.bf16.xpose.msra.mxu0 0
  %345 = vmatpush.bf16.xpose.msra.mxu0 0
  %346 = vmatpush.bf16.xpose.msra.mxu0 0
  %347 = vmatpush.bf16.xpose.msra.mxu0 0
  %348 = vmatpush.bf16.xpose.msra.mxu0 %v339
  %349 = vmatmul.bf16.gmra.mxu0 %v336
  %v350 = vpop.f32.mrf.mxu0
  %v351 = vadd.f32 0.0, %v350
  %v352 = vpop.f32.mrf.mxu0
  %v353 = vadd.f32 0.0, %v352
  %354 = vdwg.mxu0
  %v357 = vunpack.c.l.b16 %v34
  %v358 = vunpack.c.l.b16 %v35
  %v359 = vpack.c.b16 %v358, %v357
  %v362 = vunpack.c.l.b16 %v66
  %v363 = vunpack.c.l.b16 %v67
  %v364 = vpack.c.b16 %v363, %v362
  %v366 = vsel %vm124, %v359, 0
  %v369 = vsel %vm124, %v364, 0
  %371 = vmatpush.bf16.xpose.msra.mxu0 0
  %372 = vmatpush.bf16.xpose.msra.mxu0 0
  %373 = vmatpush.bf16.xpose.msra.mxu0 0
  %374 = vmatpush.bf16.xpose.msra.mxu0 0
  %375 = vmatpush.bf16.xpose.msra.mxu0 0
  %376 = vmatpush.bf16.xpose.msra.mxu0 0
  %377 = vmatpush.bf16.xpose.msra.mxu0 0
  %378 = vmatpush.bf16.xpose.msra.mxu0 %v369
  %379 = vmatmul.bf16.gmra.mxu0 %v366
  %v380 = vpop.f32.mrf.mxu0
  %v381 = vadd.f32 0.0, %v380
  %v382 = vpop.f32.mrf.mxu0
  %v383 = vadd.f32 0.0, %v382
  %384 = vdwg.mxu0
  %v387 = vunpack.c.l.b16 %v36
  %v388 = vunpack.c.l.b16 %v37
  %v389 = vpack.c.b16 %v388, %v387
  %v392 = vunpack.c.l.b16 %v68
  %v393 = vunpack.c.l.b16 %v69
  %v394 = vpack.c.b16 %v393, %v392
  %v396 = vsel %vm124, %v389, 0
  %v399 = vsel %vm124, %v394, 0
  %401 = vmatpush.bf16.xpose.msra.mxu0 0
  %402 = vmatpush.bf16.xpose.msra.mxu0 0
  %403 = vmatpush.bf16.xpose.msra.mxu0 0
  %404 = vmatpush.bf16.xpose.msra.mxu0 0
  %405 = vmatpush.bf16.xpose.msra.mxu0 0
  %406 = vmatpush.bf16.xpose.msra.mxu0 0
  %407 = vmatpush.bf16.xpose.msra.mxu0 0
  %408 = vmatpush.bf16.xpose.msra.mxu0 %v399
  %409 = vmatmul.bf16.gmra.mxu0 %v396
  %v410 = vpop.f32.mrf.mxu0
  %v411 = vadd.f32 0.0, %v410
  %v412 = vpop.f32.mrf.mxu0
  %v413 = vadd.f32 0.0, %v412
  %414 = vdwg.mxu0
  %v417 = vunpack.c.l.b16 %v38
  %v418 = vunpack.c.l.b16 %v39
  %v419 = vpack.c.b16 %v418, %v417
  %v422 = vunpack.c.l.b16 %v70
  %v423 = vunpack.c.l.b16 %v71
  %v424 = vpack.c.b16 %v423, %v422
  %v426 = vsel %vm124, %v419, 0
  %v429 = vsel %vm124, %v424, 0
  %431 = vmatpush.bf16.xpose.msra.mxu0 0
  %432 = vmatpush.bf16.xpose.msra.mxu0 0
  %433 = vmatpush.bf16.xpose.msra.mxu0 0
  %434 = vmatpush.bf16.xpose.msra.mxu0 0
  %435 = vmatpush.bf16.xpose.msra.mxu0 0
  %436 = vmatpush.bf16.xpose.msra.mxu0 0
  %437 = vmatpush.bf16.xpose.msra.mxu0 0
  %438 = vmatpush.bf16.xpose.msra.mxu0 %v429
  %439 = vmatmul.bf16.gmra.mxu0 %v426
  %v440 = vpop.f32.mrf.mxu0
  %v441 = vadd.f32 0.0, %v440
  %v442 = vpop.f32.mrf.mxu0
  %v443 = vadd.f32 0.0, %v442
  %444 = vdwg.mxu0
  %v447 = vunpack.c.l.b16 %v40
  %v448 = vunpack.c.l.b16 %v41
  %v449 = vpack.c.b16 %v448, %v447
  %v452 = vunpack.c.l.b16 %v72
  %v453 = vunpack.c.l.b16 %v73
  %v454 = vpack.c.b16 %v453, %v452
  %v456 = vsel %vm124, %v449, 0
  %v459 = vsel %vm124, %v454, 0
  %461 = vmatpush.bf16.xpose.msra.mxu0 0
  %462 = vmatpush.bf16.xpose.msra.mxu0 0
  %463 = vmatpush.bf16.xpose.msra.mxu0 0
  %464 = vmatpush.bf16.xpose.msra.mxu0 0
  %465 = vmatpush.bf16.xpose.msra.mxu0 0
  %466 = vmatpush.bf16.xpose.msra.mxu0 0
  %467 = vmatpush.bf16.xpose.msra.mxu0 0
  %468 = vmatpush.bf16.xpose.msra.mxu0 %v459
  %469 = vmatmul.bf16.gmra.mxu0 %v456
  %v470 = vpop.f32.mrf.mxu0
  %v471 = vadd.f32 0.0, %v470
  %v472 = vpop.f32.mrf.mxu0
  %v473 = vadd.f32 0.0, %v472
  %474 = vdwg.mxu0
  %v477 = vunpack.c.l.b16 %v42
  %v478 = vunpack.c.l.b16 %v43
  %v479 = vpack.c.b16 %v478, %v477
  %v482 = vunpack.c.l.b16 %v74
  %v483 = vunpack.c.l.b16 %v75
  %v484 = vpack.c.b16 %v483, %v482
  %v486 = vsel %vm124, %v479, 0
  %v489 = vsel %vm124, %v484, 0
  %491 = vmatpush.bf16.xpose.msra.mxu0 0
  %492 = vmatpush.bf16.xpose.msra.mxu0 0
  %493 = vmatpush.bf16.xpose.msra.mxu0 0
  %494 = vmatpush.bf16.xpose.msra.mxu0 0
  %495 = vmatpush.bf16.xpose.msra.mxu0 0
  %496 = vmatpush.bf16.xpose.msra.mxu0 0
  %497 = vmatpush.bf16.xpose.msra.mxu0 0
  %498 = vmatpush.bf16.xpose.msra.mxu0 %v489
  %499 = vmatmul.bf16.gmra.mxu0 %v486
  %v500 = vpop.f32.mrf.mxu0
  %v501 = vadd.f32 0.0, %v500
  %v502 = vpop.f32.mrf.mxu0
  %v503 = vadd.f32 0.0, %v502
  %504 = vdwg.mxu0
  %v507 = vunpack.c.l.b16 %v44
  %v508 = vunpack.c.l.b16 %v45
  %v509 = vpack.c.b16 %v508, %v507
  %v512 = vunpack.c.l.b16 %v76
  %v513 = vunpack.c.l.b16 %v77
  %v514 = vpack.c.b16 %v513, %v512
  %v516 = vsel %vm124, %v509, 0
  %v519 = vsel %vm124, %v514, 0
  %521 = vmatpush.bf16.xpose.msra.mxu0 0
  %522 = vmatpush.bf16.xpose.msra.mxu0 0
  %523 = vmatpush.bf16.xpose.msra.mxu0 0
  %524 = vmatpush.bf16.xpose.msra.mxu0 0
  %525 = vmatpush.bf16.xpose.msra.mxu0 0
  %526 = vmatpush.bf16.xpose.msra.mxu0 0
  %527 = vmatpush.bf16.xpose.msra.mxu0 0
  %528 = vmatpush.bf16.xpose.msra.mxu0 %v519
  %529 = vmatmul.bf16.gmra.mxu0 %v516
  %v530 = vpop.f32.mrf.mxu0
  %v531 = vadd.f32 0.0, %v530
  %v532 = vpop.f32.mrf.mxu0
  %v533 = vadd.f32 0.0, %v532
  %534 = vdwg.mxu0
  %v537 = vunpack.c.l.b16 %v46
  %v538 = vunpack.c.l.b16 %v47
  %v539 = vpack.c.b16 %v538, %v537
  %v542 = vunpack.c.l.b16 %v78
  %v543 = vunpack.c.l.b16 %v79
  %v544 = vpack.c.b16 %v543, %v542
  %v546 = vsel %vm124, %v539, 0
  %v549 = vsel %vm124, %v544, 0
  %551 = vmatpush.bf16.xpose.msra.mxu0 0
  %552 = vmatpush.bf16.xpose.msra.mxu0 0
  %553 = vmatpush.bf16.xpose.msra.mxu0 0
  %554 = vmatpush.bf16.xpose.msra.mxu0 0
  %555 = vmatpush.bf16.xpose.msra.mxu0 0
  %556 = vmatpush.bf16.xpose.msra.mxu0 0
  %557 = vmatpush.bf16.xpose.msra.mxu0 0
  %558 = vmatpush.bf16.xpose.msra.mxu0 %v549
  %559 = vmatmul.bf16.gmra.mxu0 %v546
  %v560 = vpop.f32.mrf.mxu0
  %v561 = vadd.f32 0.0, %v560
  %v562 = vpop.f32.mrf.mxu0
  %v563 = vadd.f32 0.0, %v562
  %564 = vdwg.mxu0
  %v567 = vunpack.c.l.b16 %v48
  %v568 = vunpack.c.l.b16 %v49
  %v569 = vpack.c.b16 %v568, %v567
  %v572 = vunpack.c.l.b16 %v80
  %v573 = vunpack.c.l.b16 %v81
  %v574 = vpack.c.b16 %v573, %v572
  %v576 = vsel %vm124, %v569, 0
  %v579 = vsel %vm124, %v574, 0
  %581 = vmatpush.bf16.xpose.msra.mxu0 0
  %582 = vmatpush.bf16.xpose.msra.mxu0 0
  %583 = vmatpush.bf16.xpose.msra.mxu0 0
  %584 = vmatpush.bf16.xpose.msra.mxu0 0
  %585 = vmatpush.bf16.xpose.msra.mxu0 0
  %586 = vmatpush.bf16.xpose.msra.mxu0 0
  %587 = vmatpush.bf16.xpose.msra.mxu0 0
  %588 = vmatpush.bf16.xpose.msra.mxu0 %v579
  %589 = vmatmul.bf16.gmra.mxu0 %v576
  %v590 = vpop.f32.mrf.mxu0
  %v591 = vadd.f32 0.0, %v590
  %v592 = vpop.f32.mrf.mxu0
  %v593 = vadd.f32 0.0, %v592
  %594 = vdwg.mxu0
  %v595 = vmul.f32 %v141, 0.17677669
  %v596 = vmul.f32 %v143, 0.17677669
  %v597 = vmul.f32 %v171, 0.17677669
  %v598 = vmul.f32 %v173, 0.17677669
  %v599 = vmul.f32 %v201, 0.17677669
  %v600 = vmul.f32 %v203, 0.17677669
  %v601 = vmul.f32 %v231, 0.17677669
  %v602 = vmul.f32 %v233, 0.17677669
  %v603 = vmul.f32 %v261, 0.17677669
  %v604 = vmul.f32 %v263, 0.17677669
  %v605 = vmul.f32 %v291, 0.17677669
  %v606 = vmul.f32 %v293, 0.17677669
  %v607 = vmul.f32 %v321, 0.17677669
  %v608 = vmul.f32 %v323, 0.17677669
  %v609 = vmul.f32 %v351, 0.17677669
  %v610 = vmul.f32 %v353, 0.17677669
  %v611 = vmul.f32 %v381, 0.17677669
  %v612 = vmul.f32 %v383, 0.17677669
  %v613 = vmul.f32 %v411, 0.17677669
  %v614 = vmul.f32 %v413, 0.17677669
  %v615 = vmul.f32 %v441, 0.17677669
  %v616 = vmul.f32 %v443, 0.17677669
  %v617 = vmul.f32 %v471, 0.17677669
  %v618 = vmul.f32 %v473, 0.17677669
  %v619 = vmul.f32 %v501, 0.17677669
  %v620 = vmul.f32 %v503, 0.17677669
  %v621 = vmul.f32 %v531, 0.17677669
  %v622 = vmul.f32 %v533, 0.17677669
  %v623 = vmul.f32 %v561, 0.17677669
  %v624 = vmul.f32 %v563, 0.17677669
  %v625 = vmul.f32 %v591, 0.17677669
  %v626 = vmul.f32 %v593, 0.17677669
  %v627 = vld [vmem:[%s3] sm:$0xff]
  %v628 = vld [vmem:[%s3 + $0x8] sm:$0xff]
  %v629 = vld [vmem:[%s3 + $0x10] sm:$0xff]
  %v630 = vld [vmem:[%s3 + $0x18] sm:$0xff]
  %v631 = vld [vmem:[%s3 + $0x20] sm:$0xff]
  %v632 = vld [vmem:[%s3 + $0x28] sm:$0xff]
  %v633 = vld [vmem:[%s3 + $0x30] sm:$0xff]
  %v634 = vld [vmem:[%s3 + $0x38] sm:$0xff]
  %v635 = vadd.f32 %v595, %v627
  %v636 = vadd.f32 %v596, %v628
  %v637 = vadd.f32 %v597, %v627
  %v638 = vadd.f32 %v598, %v628
  %v639 = vadd.f32 %v599, %v627
  %v640 = vadd.f32 %v600, %v628
  %v641 = vadd.f32 %v601, %v627
  %v642 = vadd.f32 %v602, %v628
  %v643 = vadd.f32 %v603, %v629
  %v644 = vadd.f32 %v604, %v630
  %v645 = vadd.f32 %v605, %v629
  %v646 = vadd.f32 %v606, %v630
  %v647 = vadd.f32 %v607, %v629
  %v648 = vadd.f32 %v608, %v630
  %v649 = vadd.f32 %v609, %v629
  %v650 = vadd.f32 %v610, %v630
  %v651 = vadd.f32 %v611, %v631
  %v652 = vadd.f32 %v612, %v632
  %v653 = vadd.f32 %v613, %v631
  %v654 = vadd.f32 %v614, %v632
  %v655 = vadd.f32 %v615, %v631
  %v656 = vadd.f32 %v616, %v632
  %v657 = vadd.f32 %v617, %v631
  %v658 = vadd.f32 %v618, %v632
  %v659 = vadd.f32 %v619, %v633
  %v660 = vadd.f32 %v620, %v634
  %v661 = vadd.f32 %v621, %v633
  %v662 = vadd.f32 %v622, %v634
  %v663 = vadd.f32 %v623, %v633
  %v664 = vadd.f32 %v624, %v634
  %v665 = vadd.f32 %v625, %v633
  %v666 = vadd.f32 %v626, %v634
  %vm667 = vcmask 130048
  %v668 = vsel %vm667, %v635, -inf
  %669 = vmax.xlane.f32.xlu0 %v668
  %v670 = vpop.xlane.xlu0 %669
  %v671 = vsel %vm667, %v636, -inf
  %672 = vmax.xlane.f32.xlu0 %v671
  %v673 = vpop.xlane.xlu0 %672
  %v674 = vsel %vm667, %v637, -inf
  %675 = vmax.xlane.f32.xlu0 %v674
  %v676 = vpop.xlane.xlu0 %675
  %v677 = vsel %vm667, %v638, -inf
  %678 = vmax.xlane.f32.xlu0 %v677
  %v679 = vpop.xlane.xlu0 %678
  %v680 = vsel %vm667, %v639, -inf
  %681 = vmax.xlane.f32.xlu0 %v680
  %v682 = vpop.xlane.xlu0 %681
  %v683 = vsel %vm667, %v640, -inf
  %684 = vmax.xlane.f32.xlu0 %v683
  %v685 = vpop.xlane.xlu0 %684
  %v686 = vsel %vm667, %v641, -inf
  %687 = vmax.xlane.f32.xlu0 %v686
  %v688 = vpop.xlane.xlu0 %687
  %v689 = vsel %vm667, %v642, -inf
  %690 = vmax.xlane.f32.xlu0 %v689
  %v691 = vpop.xlane.xlu0 %690
  %v692 = vsel %vm667, %v643, -inf
  %693 = vmax.xlane.f32.xlu0 %v692
  %v694 = vpop.xlane.xlu0 %693
  %v695 = vsel %vm667, %v644, -inf
  %696 = vmax.xlane.f32.xlu0 %v695
  %v697 = vpop.xlane.xlu0 %696
  %v698 = vsel %vm667, %v645, -inf
  %699 = vmax.xlane.f32.xlu0 %v698
  %v700 = vpop.xlane.xlu0 %699
  %v701 = vsel %vm667, %v646, -inf
  %702 = vmax.xlane.f32.xlu0 %v701
  %v703 = vpop.xlane.xlu0 %702
  %v704 = vsel %vm667, %v647, -inf
  %705 = vmax.xlane.f32.xlu0 %v704
  %v706 = vpop.xlane.xlu0 %705
  %v707 = vsel %vm667, %v648, -inf
  %708 = vmax.xlane.f32.xlu0 %v707
  %v709 = vpop.xlane.xlu0 %708
  %v710 = vsel %vm667, %v649, -inf
  %711 = vmax.xlane.f32.xlu0 %v710
  %v712 = vpop.xlane.xlu0 %711
  %v713 = vsel %vm667, %v650, -inf
  %714 = vmax.xlane.f32.xlu0 %v713
  %v715 = vpop.xlane.xlu0 %714
  %v716 = vsel %vm667, %v651, -inf
  %717 = vmax.xlane.f32.xlu0 %v716
  %v718 = vpop.xlane.xlu0 %717
  %v719 = vsel %vm667, %v652, -inf
  %720 = vmax.xlane.f32.xlu0 %v719
  %v721 = vpop.xlane.xlu0 %720
  %v722 = vsel %vm667, %v653, -inf
  %723 = vmax.xlane.f32.xlu0 %v722
  %v724 = vpop.xlane.xlu0 %723
  %v725 = vsel %vm667, %v654, -inf
  %726 = vmax.xlane.f32.xlu0 %v725
  %v727 = vpop.xlane.xlu0 %726
  %v728 = vsel %vm667, %v655, -inf
  %729 = vmax.xlane.f32.xlu0 %v728
  %v730 = vpop.xlane.xlu0 %729
  %v731 = vsel %vm667, %v656, -inf
  %732 = vmax.xlane.f32.xlu0 %v731
  %v733 = vpop.xlane.xlu0 %732
  %v734 = vsel %vm667, %v657, -inf
  %735 = vmax.xlane.f32.xlu0 %v734
  %v736 = vpop.xlane.xlu0 %735
  %v737 = vsel %vm667, %v658, -inf
  %738 = vmax.xlane.f32.xlu0 %v737
  %v739 = vpop.xlane.xlu0 %738
  %v740 = vsel %vm667, %v659, -inf
  %741 = vmax.xlane.f32.xlu0 %v740
  %v742 = vpop.xlane.xlu0 %741
  %v743 = vsel %vm667, %v660, -inf
  %744 = vmax.xlane.f32.xlu0 %v743
  %v745 = vpop.xlane.xlu0 %744
  %v746 = vsel %vm667, %v661, -inf
  %747 = vmax.xlane.f32.xlu0 %v746
  %v748 = vpop.xlane.xlu0 %747
  %v749 = vsel %vm667, %v662, -inf
  %750 = vmax.xlane.f32.xlu0 %v749
  %v751 = vpop.xlane.xlu0 %750
  %v752 = vsel %vm667, %v663, -inf
  %753 = vmax.xlane.f32.xlu0 %v752
  %v754 = vpop.xlane.xlu0 %753
  %v755 = vsel %vm667, %v664, -inf
  %756 = vmax.xlane.f32.xlu0 %v755
  %v757 = vpop.xlane.xlu0 %756
  %v758 = vsel %vm667, %v665, -inf
  %759 = vmax.xlane.f32.xlu0 %v758
  %v760 = vpop.xlane.xlu0 %759
  %v761 = vsel %vm667, %v666, -inf
  %762 = vmax.xlane.f32.xlu0 %v761
  %v763 = vpop.xlane.xlu0 %762
  %v764 = vsub.f32 %v635, %v670
  %v765 = vsub.f32 %v636, %v673
  %v766 = vsub.f32 %v637, %v676
  %v767 = vsub.f32 %v638, %v679
  %v768 = vsub.f32 %v639, %v682
  %v769 = vsub.f32 %v640, %v685
  %v770 = vsub.f32 %v641, %v688
  %v771 = vsub.f32 %v642, %v691
  %v772 = vsub.f32 %v643, %v694
  %v773 = vsub.f32 %v644, %v697
  %v774 = vsub.f32 %v645, %v700
  %v775 = vsub.f32 %v646, %v703
  %v776 = vsub.f32 %v647, %v706
  %v777 = vsub.f32 %v648, %v709
  %v778 = vsub.f32 %v649, %v712
  %v779 = vsub.f32 %v650, %v715
  %v780 = vsub.f32 %v651, %v718
  %v781 = vsub.f32 %v652, %v721
  %v782 = vsub.f32 %v653, %v724
  %v783 = vsub.f32 %v654, %v727
  %v784 = vsub.f32 %v655, %v730
  %v785 = vsub.f32 %v656, %v733
  %v786 = vsub.f32 %v657, %v736
  %v787 = vsub.f32 %v658, %v739
  %v788 = vsub.f32 %v659, %v742
  %v789 = vsub.f32 %v660, %v745
  %v790 = vsub.f32 %v661, %v748
  %v791 = vsub.f32 %v662, %v751
  %v792 = vsub.f32 %v663, %v754
  %v793 = vsub.f32 %v664, %v757
  %v794 = vsub.f32 %v665, %v760
  %v795 = vsub.f32 %v666, %v763
  %v796 = vmul.f32 %v764, 1.442695
  %v797 = vpow.pop %v796
  %v798 = vmul.f32 %v765, 1.442695
  %v799 = vpow.pop %v798
  %v800 = vmul.f32 %v766, 1.442695
  %v801 = vpow.pop %v800
  %v802 = vmul.f32 %v767, 1.442695
  %v803 = vpow.pop %v802
  %v804 = vmul.f32 %v768, 1.442695
  %v805 = vpow.pop %v804
  %v806 = vmul.f32 %v769, 1.442695
  %v807 = vpow.pop %v806
  %v808 = vmul.f32 %v770, 1.442695
  %v809 = vpow.pop %v808
  %v810 = vmul.f32 %v771, 1.442695
  %v811 = vpow.pop %v810
  %v812 = vmul.f32 %v772, 1.442695
  %v813 = vpow.pop %v812
  %v814 = vmul.f32 %v773, 1.442695
  %v815 = vpow.pop %v814
  %v816 = vmul.f32 %v774, 1.442695
  %v817 = vpow.pop %v816
  %v818 = vmul.f32 %v775, 1.442695
  %v819 = vpow.pop %v818
  %v820 = vmul.f32 %v776, 1.442695
  %v821 = vpow.pop %v820
  %v822 = vmul.f32 %v777, 1.442695
  %v823 = vpow.pop %v822
  %v824 = vmul.f32 %v778, 1.442695
  %v825 = vpow.pop %v824
  %v826 = vmul.f32 %v779, 1.442695
  %v827 = vpow.pop %v826
  %v828 = vmul.f32 %v780, 1.442695
  %v829 = vpow.pop %v828
  %v830 = vmul.f32 %v781, 1.442695
  %v831 = vpow.pop %v830
  %v832 = vmul.f32 %v782, 1.442695
  %v833 = vpow.pop %v832
  %v834 = vmul.f32 %v783, 1.442695
  %v835 = vpow.pop %v834
  %v836 = vmul.f32 %v784, 1.442695
  %v837 = vpow.pop %v836
  %v838 = vmul.f32 %v785, 1.442695
  %v839 = vpow.pop %v838
  %v840 = vmul.f32 %v786, 1.442695
  %v841 = vpow.pop %v840
  %v842 = vmul.f32 %v787, 1.442695
  %v843 = vpow.pop %v842
  %v844 = vmul.f32 %v788, 1.442695
  %v845 = vpow.pop %v844
  %v846 = vmul.f32 %v789, 1.442695
  %v847 = vpow.pop %v846
  %v848 = vmul.f32 %v790, 1.442695
  %v849 = vpow.pop %v848
  %v850 = vmul.f32 %v791, 1.442695
  %v851 = vpow.pop %v850
  %v852 = vmul.f32 %v792, 1.442695
  %v853 = vpow.pop %v852
  %v854 = vmul.f32 %v793, 1.442695
  %v855 = vpow.pop %v854
  %v856 = vmul.f32 %v794, 1.442695
  %v857 = vpow.pop %v856
  %v858 = vmul.f32 %v795, 1.442695
  %v859 = vpow.pop %v858
  %v860 = vsel %vm667, %v797, 0.0
  %861 = vadd.xlane.f32.xlu0 %v860
  %v862 = vpop.xlane.xlu0 %861
  %v863 = vsel %vm667, %v799, 0.0
  %864 = vadd.xlane.f32.xlu0 %v863
  %v865 = vpop.xlane.xlu0 %864
  %v866 = vsel %vm667, %v801, 0.0
  %867 = vadd.xlane.f32.xlu0 %v866
  %v868 = vpop.xlane.xlu0 %867
  %v869 = vsel %vm667, %v803, 0.0
  %870 = vadd.xlane.f32.xlu0 %v869
  %v871 = vpop.xlane.xlu0 %870
  %v872 = vsel %vm667, %v805, 0.0
  %873 = vadd.xlane.f32.xlu0 %v872
  %v874 = vpop.xlane.xlu0 %873
  %v875 = vsel %vm667, %v807, 0.0
  %876 = vadd.xlane.f32.xlu0 %v875
  %v877 = vpop.xlane.xlu0 %876
  %v878 = vsel %vm667, %v809, 0.0
  %879 = vadd.xlane.f32.xlu0 %v878
  %v880 = vpop.xlane.xlu0 %879
  %v881 = vsel %vm667, %v811, 0.0
  %882 = vadd.xlane.f32.xlu0 %v881
  %v883 = vpop.xlane.xlu0 %882
  %v884 = vsel %vm667, %v813, 0.0
  %885 = vadd.xlane.f32.xlu0 %v884
  %v886 = vpop.xlane.xlu0 %885
  %v887 = vsel %vm667, %v815, 0.0
  %888 = vadd.xlane.f32.xlu0 %v887
  %v889 = vpop.xlane.xlu0 %888
  %v890 = vsel %vm667, %v817, 0.0
  %891 = vadd.xlane.f32.xlu0 %v890
  %v892 = vpop.xlane.xlu0 %891
  %v893 = vsel %vm667, %v819, 0.0
  %894 = vadd.xlane.f32.xlu0 %v893
  %v895 = vpop.xlane.xlu0 %894
  %v896 = vsel %vm667, %v821, 0.0
  %897 = vadd.xlane.f32.xlu0 %v896
  %v898 = vpop.xlane.xlu0 %897
  %v899 = vsel %vm667, %v823, 0.0
  %900 = vadd.xlane.f32.xlu0 %v899
  %v901 = vpop.xlane.xlu0 %900
  %v902 = vsel %vm667, %v825, 0.0
  %903 = vadd.xlane.f32.xlu0 %v902
  %v904 = vpop.xlane.xlu0 %903
  %v905 = vsel %vm667, %v827, 0.0
  %906 = vadd.xlane.f32.xlu0 %v905
  %v907 = vpop.xlane.xlu0 %906
  %v908 = vsel %vm667, %v829, 0.0
  %909 = vadd.xlane.f32.xlu0 %v908
  %v910 = vpop.xlane.xlu0 %909
  %v911 = vsel %vm667, %v831, 0.0
  %912 = vadd.xlane.f32.xlu0 %v911
  %v913 = vpop.xlane.xlu0 %912
  %v914 = vsel %vm667, %v833, 0.0
  %915 = vadd.xlane.f32.xlu0 %v914
  %v916 = vpop.xlane.xlu0 %915
  %v917 = vsel %vm667, %v835, 0.0
  %918 = vadd.xlane.f32.xlu0 %v917
  %v919 = vpop.xlane.xlu0 %918
  %v920 = vsel %vm667, %v837, 0.0
  %921 = vadd.xlane.f32.xlu0 %v920
  %v922 = vpop.xlane.xlu0 %921
  %v923 = vsel %vm667, %v839, 0.0
  %924 = vadd.xlane.f32.xlu0 %v923
  %v925 = vpop.xlane.xlu0 %924
  %v926 = vsel %vm667, %v841, 0.0
  %927 = vadd.xlane.f32.xlu0 %v926
  %v928 = vpop.xlane.xlu0 %927
  %v929 = vsel %vm667, %v843, 0.0
  %930 = vadd.xlane.f32.xlu0 %v929
  %v931 = vpop.xlane.xlu0 %930
  %v932 = vsel %vm667, %v845, 0.0
  %933 = vadd.xlane.f32.xlu0 %v932
  %v934 = vpop.xlane.xlu0 %933
  %v935 = vsel %vm667, %v847, 0.0
  %936 = vadd.xlane.f32.xlu0 %v935
  %v937 = vpop.xlane.xlu0 %936
  %v938 = vsel %vm667, %v849, 0.0
  %939 = vadd.xlane.f32.xlu0 %v938
  %v940 = vpop.xlane.xlu0 %939
  %v941 = vsel %vm667, %v851, 0.0
  %942 = vadd.xlane.f32.xlu0 %v941
  %v943 = vpop.xlane.xlu0 %942
  %v944 = vsel %vm667, %v853, 0.0
  %945 = vadd.xlane.f32.xlu0 %v944
  %v946 = vpop.xlane.xlu0 %945
  %v947 = vsel %vm667, %v855, 0.0
  %948 = vadd.xlane.f32.xlu0 %v947
  %v949 = vpop.xlane.xlu0 %948
  %v950 = vsel %vm667, %v857, 0.0
  %951 = vadd.xlane.f32.xlu0 %v950
  %v952 = vpop.xlane.xlu0 %951
  %v953 = vsel %vm667, %v859, 0.0
  %954 = vadd.xlane.f32.xlu0 %v953
  %v955 = vpop.xlane.xlu0 %954
  %v956 = vrcp.pop %v862
  %v957 = vrcp.pop %v865
  %v958 = vrcp.pop %v868
  %v959 = vrcp.pop %v871
  %v960 = vrcp.pop %v874
  %v961 = vrcp.pop %v877
  %v962 = vrcp.pop %v880
  %v963 = vrcp.pop %v883
  %v964 = vrcp.pop %v886
  %v965 = vrcp.pop %v889
  %v966 = vrcp.pop %v892
  %v967 = vrcp.pop %v895
  %v968 = vrcp.pop %v898
  %v969 = vrcp.pop %v901
  %v970 = vrcp.pop %v904
  %v971 = vrcp.pop %v907
  %v972 = vrcp.pop %v910
  %v973 = vrcp.pop %v913
  %v974 = vrcp.pop %v916
  %v975 = vrcp.pop %v919
  %v976 = vrcp.pop %v922
  %v977 = vrcp.pop %v925
  %v978 = vrcp.pop %v928
  %v979 = vrcp.pop %v931
  %v980 = vrcp.pop %v934
  %v981 = vrcp.pop %v937
  %v982 = vrcp.pop %v940
  %v983 = vrcp.pop %v943
  %v984 = vrcp.pop %v946
  %v985 = vrcp.pop %v949
  %v986 = vrcp.pop %v952
  %v987 = vrcp.pop %v955
  %v988 = vmul.f32 %v797, %v956
  %v989 = vmul.f32 %v799, %v957
  %v990 = vmul.f32 %v801, %v958
  %v991 = vmul.f32 %v803, %v959
  %v992 = vmul.f32 %v805, %v960
  %v993 = vmul.f32 %v807, %v961
  %v994 = vmul.f32 %v809, %v962
  %v995 = vmul.f32 %v811, %v963
  %v996 = vmul.f32 %v813, %v964
  %v997 = vmul.f32 %v815, %v965
  %v998 = vmul.f32 %v817, %v966
  %v999 = vmul.f32 %v819, %v967
  %v1000 = vmul.f32 %v821, %v968
  %v1001 = vmul.f32 %v823, %v969
  %v1002 = vmul.f32 %v825, %v970
  %v1003 = vmul.f32 %v827, %v971
  %v1004 = vmul.f32 %v829, %v972
  %v1005 = vmul.f32 %v831, %v973
  %v1006 = vmul.f32 %v833, %v974
  %v1007 = vmul.f32 %v835, %v975
  %v1008 = vmul.f32 %v837, %v976
  %v1009 = vmul.f32 %v839, %v977
  %v1010 = vmul.f32 %v841, %v978
  %v1011 = vmul.f32 %v843, %v979
  %v1012 = vmul.f32 %v845, %v980
  %v1013 = vmul.f32 %v847, %v981
  %v1014 = vmul.f32 %v849, %v982
  %v1015 = vmul.f32 %v851, %v983
  %v1016 = vmul.f32 %v853, %v984
  %v1017 = vmul.f32 %v855, %v985
  %v1018 = vmul.f32 %v857, %v986
  %v1019 = vmul.f32 %v859, %v987
  %v1020 = vpack.c.bf16 %v988, %v988
  %v1021 = vpack.c.bf16 %v989, %v989
  %v1022 = vpack.c.bf16 %v990, %v990
  %v1023 = vpack.c.bf16 %v991, %v991
  %v1024 = vpack.c.bf16 %v992, %v992
  %v1025 = vpack.c.bf16 %v993, %v993
  %v1026 = vpack.c.bf16 %v994, %v994
  %v1027 = vpack.c.bf16 %v995, %v995
  %v1028 = vpack.c.bf16 %v996, %v996
  %v1029 = vpack.c.bf16 %v997, %v997
  %v1030 = vpack.c.bf16 %v998, %v998
  %v1031 = vpack.c.bf16 %v999, %v999
  %v1032 = vpack.c.bf16 %v1000, %v1000
  %v1033 = vpack.c.bf16 %v1001, %v1001
  %v1034 = vpack.c.bf16 %v1002, %v1002
  %v1035 = vpack.c.bf16 %v1003, %v1003
  %v1036 = vpack.c.bf16 %v1004, %v1004
  %v1037 = vpack.c.bf16 %v1005, %v1005
  %v1038 = vpack.c.bf16 %v1006, %v1006
  %v1039 = vpack.c.bf16 %v1007, %v1007
  %v1040 = vpack.c.bf16 %v1008, %v1008
  %v1041 = vpack.c.bf16 %v1009, %v1009
  %v1042 = vpack.c.bf16 %v1010, %v1010
  %v1043 = vpack.c.bf16 %v1011, %v1011
  %v1044 = vpack.c.bf16 %v1012, %v1012
  %v1045 = vpack.c.bf16 %v1013, %v1013
  %v1046 = vpack.c.bf16 %v1014, %v1014
  %v1047 = vpack.c.bf16 %v1015, %v1015
  %v1048 = vpack.c.bf16 %v1016, %v1016
  %v1049 = vpack.c.bf16 %v1017, %v1017
  %v1050 = vpack.c.bf16 %v1018, %v1018
  %v1051 = vpack.c.bf16 %v1019, %v1019
  %v1054 = vunpack.c.l.b16 %v1020
  %v1055 = vunpack.c.l.b16 %v1021
  %v1056 = vpack.c.b16 %v1055, %v1054
  %v1059 = vunpack.c.l.b16 %v82
  %v1060 = vunpack.c.l.b16 %v83
  %v1061 = vpack.c.b16 %v1060, %v1059
  %v1064 = vsel %vm667, %v1056, 0
  %1066 = vmatpush.bf16.msra.mxu0 0
  %1067 = vmatpush.bf16.msra.mxu0 0
  %1068 = vmatpush.bf16.msra.mxu0 0
  %1069 = vmatpush.bf16.msra.mxu0 0
  %1070 = vmatpush.bf16.msra.mxu0 0
  %1071 = vmatpush.bf16.msra.mxu0 0
  %1072 = vmatpush.bf16.msra.mxu0 0
  %1073 = vmatpush.bf16.msra.mxu0 %v1061
  %1074 = vmatmul.bf16.gmra.mxu0 %v1064
  %v1075 = vpop.f32.mrf.mxu0
  %v1076 = vadd.f32 0.0, %v1075
  %v1077 = vpop.f32.mrf.mxu0
  %v1078 = vadd.f32 0.0, %v1077
  %1079 = vdwg.mxu0
  %v1082 = vunpack.c.l.b16 %v1022
  %v1083 = vunpack.c.l.b16 %v1023
  %v1084 = vpack.c.b16 %v1083, %v1082
  %v1087 = vunpack.c.l.b16 %v84
  %v1088 = vunpack.c.l.b16 %v85
  %v1089 = vpack.c.b16 %v1088, %v1087
  %v1092 = vsel %vm667, %v1084, 0
  %1094 = vmatpush.bf16.msra.mxu0 0
  %1095 = vmatpush.bf16.msra.mxu0 0
  %1096 = vmatpush.bf16.msra.mxu0 0
  %1097 = vmatpush.bf16.msra.mxu0 0
  %1098 = vmatpush.bf16.msra.mxu0 0
  %1099 = vmatpush.bf16.msra.mxu0 0
  %1100 = vmatpush.bf16.msra.mxu0 0
  %1101 = vmatpush.bf16.msra.mxu0 %v1089
  %1102 = vmatmul.bf16.gmra.mxu0 %v1092
  %v1103 = vpop.f32.mrf.mxu0
  %v1104 = vadd.f32 0.0, %v1103
  %v1105 = vpop.f32.mrf.mxu0
  %v1106 = vadd.f32 0.0, %v1105
  %1107 = vdwg.mxu0
  %v1110 = vunpack.c.l.b16 %v1024
  %v1111 = vunpack.c.l.b16 %v1025
  %v1112 = vpack.c.b16 %v1111, %v1110
  %v1115 = vunpack.c.l.b16 %v86
  %v1116 = vunpack.c.l.b16 %v87
  %v1117 = vpack.c.b16 %v1116, %v1115
  %v1120 = vsel %vm667, %v1112, 0
  %1122 = vmatpush.bf16.msra.mxu0 0
  %1123 = vmatpush.bf16.msra.mxu0 0
  %1124 = vmatpush.bf16.msra.mxu0 0
  %1125 = vmatpush.bf16.msra.mxu0 0
  %1126 = vmatpush.bf16.msra.mxu0 0
  %1127 = vmatpush.bf16.msra.mxu0 0
  %1128 = vmatpush.bf16.msra.mxu0 0
  %1129 = vmatpush.bf16.msra.mxu0 %v1117
  %1130 = vmatmul.bf16.gmra.mxu0 %v1120
  %v1131 = vpop.f32.mrf.mxu0
  %v1132 = vadd.f32 0.0, %v1131
  %v1133 = vpop.f32.mrf.mxu0
  %v1134 = vadd.f32 0.0, %v1133
  %1135 = vdwg.mxu0
  %v1138 = vunpack.c.l.b16 %v1026
  %v1139 = vunpack.c.l.b16 %v1027
  %v1140 = vpack.c.b16 %v1139, %v1138
  %v1143 = vunpack.c.l.b16 %v88
  %v1144 = vunpack.c.l.b16 %v89
  %v1145 = vpack.c.b16 %v1144, %v1143
  %v1148 = vsel %vm667, %v1140, 0
  %1150 = vmatpush.bf16.msra.mxu0 0
  %1151 = vmatpush.bf16.msra.mxu0 0
  %1152 = vmatpush.bf16.msra.mxu0 0
  %1153 = vmatpush.bf16.msra.mxu0 0
  %1154 = vmatpush.bf16.msra.mxu0 0
  %1155 = vmatpush.bf16.msra.mxu0 0
  %1156 = vmatpush.bf16.msra.mxu0 0
  %1157 = vmatpush.bf16.msra.mxu0 %v1145
  %1158 = vmatmul.bf16.gmra.mxu0 %v1148
  %v1159 = vpop.f32.mrf.mxu0
  %v1160 = vadd.f32 0.0, %v1159
  %v1161 = vpop.f32.mrf.mxu0
  %v1162 = vadd.f32 0.0, %v1161
  %1163 = vdwg.mxu0
  %v1166 = vunpack.c.l.b16 %v1028
  %v1167 = vunpack.c.l.b16 %v1029
  %v1168 = vpack.c.b16 %v1167, %v1166
  %v1171 = vunpack.c.l.b16 %v90
  %v1172 = vunpack.c.l.b16 %v91
  %v1173 = vpack.c.b16 %v1172, %v1171
  %v1176 = vsel %vm667, %v1168, 0
  %1178 = vmatpush.bf16.msra.mxu0 0
  %1179 = vmatpush.bf16.msra.mxu0 0
  %1180 = vmatpush.bf16.msra.mxu0 0
  %1181 = vmatpush.bf16.msra.mxu0 0
  %1182 = vmatpush.bf16.msra.mxu0 0
  %1183 = vmatpush.bf16.msra.mxu0 0
  %1184 = vmatpush.bf16.msra.mxu0 0
  %1185 = vmatpush.bf16.msra.mxu0 %v1173
  %1186 = vmatmul.bf16.gmra.mxu0 %v1176
  %v1187 = vpop.f32.mrf.mxu0
  %v1188 = vadd.f32 0.0, %v1187
  %v1189 = vpop.f32.mrf.mxu0
  %v1190 = vadd.f32 0.0, %v1189
  %1191 = vdwg.mxu0
  %v1194 = vunpack.c.l.b16 %v1030
  %v1195 = vunpack.c.l.b16 %v1031
  %v1196 = vpack.c.b16 %v1195, %v1194
  %v1199 = vunpack.c.l.b16 %v92
  %v1200 = vunpack.c.l.b16 %v93
  %v1201 = vpack.c.b16 %v1200, %v1199
  %v1204 = vsel %vm667, %v1196, 0
  %1206 = vmatpush.bf16.msra.mxu0 0
  %1207 = vmatpush.bf16.msra.mxu0 0
  %1208 = vmatpush.bf16.msra.mxu0 0
  %1209 = vmatpush.bf16.msra.mxu0 0
  %1210 = vmatpush.bf16.msra.mxu0 0
  %1211 = vmatpush.bf16.msra.mxu0 0
  %1212 = vmatpush.bf16.msra.mxu0 0
  %1213 = vmatpush.bf16.msra.mxu0 %v1201
  %1214 = vmatmul.bf16.gmra.mxu0 %v1204
  %v1215 = vpop.f32.mrf.mxu0
  %v1216 = vadd.f32 0.0, %v1215
  %v1217 = vpop.f32.mrf.mxu0
  %v1218 = vadd.f32 0.0, %v1217
  %1219 = vdwg.mxu0
  %v1222 = vunpack.c.l.b16 %v1032
  %v1223 = vunpack.c.l.b16 %v1033
  %v1224 = vpack.c.b16 %v1223, %v1222
  %v1227 = vunpack.c.l.b16 %v94
  %v1228 = vunpack.c.l.b16 %v95
  %v1229 = vpack.c.b16 %v1228, %v1227
  %v1232 = vsel %vm667, %v1224, 0
  %1234 = vmatpush.bf16.msra.mxu0 0
  %1235 = vmatpush.bf16.msra.mxu0 0
  %1236 = vmatpush.bf16.msra.mxu0 0
  %1237 = vmatpush.bf16.msra.mxu0 0
  %1238 = vmatpush.bf16.msra.mxu0 0
  %1239 = vmatpush.bf16.msra.mxu0 0
  %1240 = vmatpush.bf16.msra.mxu0 0
  %1241 = vmatpush.bf16.msra.mxu0 %v1229
  %1242 = vmatmul.bf16.gmra.mxu0 %v1232
  %v1243 = vpop.f32.mrf.mxu0
  %v1244 = vadd.f32 0.0, %v1243
  %v1245 = vpop.f32.mrf.mxu0
  %v1246 = vadd.f32 0.0, %v1245
  %1247 = vdwg.mxu0
  %v1250 = vunpack.c.l.b16 %v1034
  %v1251 = vunpack.c.l.b16 %v1035
  %v1252 = vpack.c.b16 %v1251, %v1250
  %v1255 = vunpack.c.l.b16 %v96
  %v1256 = vunpack.c.l.b16 %v97
  %v1257 = vpack.c.b16 %v1256, %v1255
  %v1260 = vsel %vm667, %v1252, 0
  %1262 = vmatpush.bf16.msra.mxu0 0
  %1263 = vmatpush.bf16.msra.mxu0 0
  %1264 = vmatpush.bf16.msra.mxu0 0
  %1265 = vmatpush.bf16.msra.mxu0 0
  %1266 = vmatpush.bf16.msra.mxu0 0
  %1267 = vmatpush.bf16.msra.mxu0 0
  %1268 = vmatpush.bf16.msra.mxu0 0
  %1269 = vmatpush.bf16.msra.mxu0 %v1257
  %1270 = vmatmul.bf16.gmra.mxu0 %v1260
  %v1271 = vpop.f32.mrf.mxu0
  %v1272 = vadd.f32 0.0, %v1271
  %v1273 = vpop.f32.mrf.mxu0
  %v1274 = vadd.f32 0.0, %v1273
  %1275 = vdwg.mxu0
  %v1278 = vunpack.c.l.b16 %v1036
  %v1279 = vunpack.c.l.b16 %v1037
  %v1280 = vpack.c.b16 %v1279, %v1278
  %v1283 = vunpack.c.l.b16 %v98
  %v1284 = vunpack.c.l.b16 %v99
  %v1285 = vpack.c.b16 %v1284, %v1283
  %v1288 = vsel %vm667, %v1280, 0
  %1290 = vmatpush.bf16.msra.mxu0 0
  %1291 = vmatpush.bf16.msra.mxu0 0
  %1292 = vmatpush.bf16.msra.mxu0 0
  %1293 = vmatpush.bf16.msra.mxu0 0
  %1294 = vmatpush.bf16.msra.mxu0 0
  %1295 = vmatpush.bf16.msra.mxu0 0
  %1296 = vmatpush.bf16.msra.mxu0 0
  %1297 = vmatpush.bf16.msra.mxu0 %v1285
  %1298 = vmatmul.bf16.gmra.mxu0 %v1288
  %v1299 = vpop.f32.mrf.mxu0
  %v1300 = vadd.f32 0.0, %v1299
  %v1301 = vpop.f32.mrf.mxu0
  %v1302 = vadd.f32 0.0, %v1301
  %1303 = vdwg.mxu0
  %v1306 = vunpack.c.l.b16 %v1038
  %v1307 = vunpack.c.l.b16 %v1039
  %v1308 = vpack.c.b16 %v1307, %v1306
  %v1311 = vunpack.c.l.b16 %v100
  %v1312 = vunpack.c.l.b16 %v101
  %v1313 = vpack.c.b16 %v1312, %v1311
  %v1316 = vsel %vm667, %v1308, 0
  %1318 = vmatpush.bf16.msra.mxu0 0
  %1319 = vmatpush.bf16.msra.mxu0 0
  %1320 = vmatpush.bf16.msra.mxu0 0
  %1321 = vmatpush.bf16.msra.mxu0 0
  %1322 = vmatpush.bf16.msra.mxu0 0
  %1323 = vmatpush.bf16.msra.mxu0 0
  %1324 = vmatpush.bf16.msra.mxu0 0
  %1325 = vmatpush.bf16.msra.mxu0 %v1313
  %1326 = vmatmul.bf16.gmra.mxu0 %v1316
  %v1327 = vpop.f32.mrf.mxu0
  %v1328 = vadd.f32 0.0, %v1327
  %v1329 = vpop.f32.mrf.mxu0
  %v1330 = vadd.f32 0.0, %v1329
  %1331 = vdwg.mxu0
  %v1334 = vunpack.c.l.b16 %v1040
  %v1335 = vunpack.c.l.b16 %v1041
  %v1336 = vpack.c.b16 %v1335, %v1334
  %v1339 = vunpack.c.l.b16 %v102
  %v1340 = vunpack.c.l.b16 %v103
  %v1341 = vpack.c.b16 %v1340, %v1339
  %v1344 = vsel %vm667, %v1336, 0
  %1346 = vmatpush.bf16.msra.mxu0 0
  %1347 = vmatpush.bf16.msra.mxu0 0
  %1348 = vmatpush.bf16.msra.mxu0 0
  %1349 = vmatpush.bf16.msra.mxu0 0
  %1350 = vmatpush.bf16.msra.mxu0 0
  %1351 = vmatpush.bf16.msra.mxu0 0
  %1352 = vmatpush.bf16.msra.mxu0 0
  %1353 = vmatpush.bf16.msra.mxu0 %v1341
  %1354 = vmatmul.bf16.gmra.mxu0 %v1344
  %v1355 = vpop.f32.mrf.mxu0
  %v1356 = vadd.f32 0.0, %v1355
  %v1357 = vpop.f32.mrf.mxu0
  %v1358 = vadd.f32 0.0, %v1357
  %1359 = vdwg.mxu0
  %v1362 = vunpack.c.l.b16 %v1042
  %v1363 = vunpack.c.l.b16 %v1043
  %v1364 = vpack.c.b16 %v1363, %v1362
  %v1367 = vunpack.c.l.b16 %v104
  %v1368 = vunpack.c.l.b16 %v105
  %v1369 = vpack.c.b16 %v1368, %v1367
  %v1372 = vsel %vm667, %v1364, 0
  %1374 = vmatpush.bf16.msra.mxu0 0
  %1375 = vmatpush.bf16.msra.mxu0 0
  %1376 = vmatpush.bf16.msra.mxu0 0
  %1377 = vmatpush.bf16.msra.mxu0 0
  %1378 = vmatpush.bf16.msra.mxu0 0
  %1379 = vmatpush.bf16.msra.mxu0 0
  %1380 = vmatpush.bf16.msra.mxu0 0
  %1381 = vmatpush.bf16.msra.mxu0 %v1369
  %1382 = vmatmul.bf16.gmra.mxu0 %v1372
  %v1383 = vpop.f32.mrf.mxu0
  %v1384 = vadd.f32 0.0, %v1383
  %v1385 = vpop.f32.mrf.mxu0
  %v1386 = vadd.f32 0.0, %v1385
  %1387 = vdwg.mxu0
  %v1390 = vunpack.c.l.b16 %v1044
  %v1391 = vunpack.c.l.b16 %v1045
  %v1392 = vpack.c.b16 %v1391, %v1390
  %v1395 = vunpack.c.l.b16 %v106
  %v1396 = vunpack.c.l.b16 %v107
  %v1397 = vpack.c.b16 %v1396, %v1395
  %v1400 = vsel %vm667, %v1392, 0
  %1402 = vmatpush.bf16.msra.mxu0 0
  %1403 = vmatpush.bf16.msra.mxu0 0
  %1404 = vmatpush.bf16.msra.mxu0 0
  %1405 = vmatpush.bf16.msra.mxu0 0
  %1406 = vmatpush.bf16.msra.mxu0 0
  %1407 = vmatpush.bf16.msra.mxu0 0
  %1408 = vmatpush.bf16.msra.mxu0 0
  %1409 = vmatpush.bf16.msra.mxu0 %v1397
  %1410 = vmatmul.bf16.gmra.mxu0 %v1400
  %v1411 = vpop.f32.mrf.mxu0
  %v1412 = vadd.f32 0.0, %v1411
  %v1413 = vpop.f32.mrf.mxu0
  %v1414 = vadd.f32 0.0, %v1413
  %1415 = vdwg.mxu0
  %v1418 = vunpack.c.l.b16 %v1046
  %v1419 = vunpack.c.l.b16 %v1047
  %v1420 = vpack.c.b16 %v1419, %v1418
  %v1423 = vunpack.c.l.b16 %v108
  %v1424 = vunpack.c.l.b16 %v109
  %v1425 = vpack.c.b16 %v1424, %v1423
  %v1428 = vsel %vm667, %v1420, 0
  %1430 = vmatpush.bf16.msra.mxu0 0
  %1431 = vmatpush.bf16.msra.mxu0 0
  %1432 = vmatpush.bf16.msra.mxu0 0
  %1433 = vmatpush.bf16.msra.mxu0 0
  %1434 = vmatpush.bf16.msra.mxu0 0
  %1435 = vmatpush.bf16.msra.mxu0 0
  %1436 = vmatpush.bf16.msra.mxu0 0
  %1437 = vmatpush.bf16.msra.mxu0 %v1425
  %1438 = vmatmul.bf16.gmra.mxu0 %v1428
  %v1439 = vpop.f32.mrf.mxu0
  %v1440 = vadd.f32 0.0, %v1439
  %v1441 = vpop.f32.mrf.mxu0
  %v1442 = vadd.f32 0.0, %v1441
  %1443 = vdwg.mxu0
  %v1446 = vunpack.c.l.b16 %v1048
  %v1447 = vunpack.c.l.b16 %v1049
  %v1448 = vpack.c.b16 %v1447, %v1446
  %v1451 = vunpack.c.l.b16 %v110
  %v1452 = vunpack.c.l.b16 %v111
  %v1453 = vpack.c.b16 %v1452, %v1451
  %v1456 = vsel %vm667, %v1448, 0
  %1458 = vmatpush.bf16.msra.mxu0 0
  %1459 = vmatpush.bf16.msra.mxu0 0
  %1460 = vmatpush.bf16.msra.mxu0 0
  %1461 = vmatpush.bf16.msra.mxu0 0
  %1462 = vmatpush.bf16.msra.mxu0 0
  %1463 = vmatpush.bf16.msra.mxu0 0
  %1464 = vmatpush.bf16.msra.mxu0 0
  %1465 = vmatpush.bf16.msra.mxu0 %v1453
  %1466 = vmatmul.bf16.gmra.mxu0 %v1456
  %v1467 = vpop.f32.mrf.mxu0
  %v1468 = vadd.f32 0.0, %v1467
  %v1469 = vpop.f32.mrf.mxu0
  %v1470 = vadd.f32 0.0, %v1469
  %1471 = vdwg.mxu0
  %v1474 = vunpack.c.l.b16 %v1050
  %v1475 = vunpack.c.l.b16 %v1051
  %v1476 = vpack.c.b16 %v1475, %v1474
  %v1479 = vunpack.c.l.b16 %v112
  %v1480 = vunpack.c.l.b16 %v113
  %v1481 = vpack.c.b16 %v1480, %v1479
  %v1484 = vsel %vm667, %v1476, 0
  %1486 = vmatpush.bf16.msra.mxu0 0
  %1487 = vmatpush.bf16.msra.mxu0 0
  %1488 = vmatpush.bf16.msra.mxu0 0
  %1489 = vmatpush.bf16.msra.mxu0 0
  %1490 = vmatpush.bf16.msra.mxu0 0
  %1491 = vmatpush.bf16.msra.mxu0 0
  %1492 = vmatpush.bf16.msra.mxu0 0
  %1493 = vmatpush.bf16.msra.mxu0 %v1481
  %1494 = vmatmul.bf16.gmra.mxu0 %v1484
  %v1495 = vpop.f32.mrf.mxu0
  %v1496 = vadd.f32 0.0, %v1495
  %v1497 = vpop.f32.mrf.mxu0
  %v1498 = vadd.f32 0.0, %v1497
  %1499 = vdwg.mxu0
  %1500 = vst.msk [vmem:[%s4] sm:$0xff] %vm124, %v1076
  %1501 = vst.msk [vmem:[%s4 + $0x8] sm:$0xff] %vm124, %v1078
  %1502 = vst.msk [vmem:[%s4 + $0x10] sm:$0xff] %vm124, %v1104
  %1503 = vst.msk [vmem:[%s4 + $0x18] sm:$0xff] %vm124, %v1106
  %1504 = vst.msk [vmem:[%s4 + $0x20] sm:$0xff] %vm124, %v1132
  %1505 = vst.msk [vmem:[%s4 + $0x28] sm:$0xff] %vm124, %v1134
  %1506 = vst.msk [vmem:[%s4 + $0x30] sm:$0xff] %vm124, %v1160
  %1507 = vst.msk [vmem:[%s4 + $0x38] sm:$0xff] %vm124, %v1162
  %1508 = vst.msk [vmem:[%s4 + $0x40] sm:$0xff] %vm124, %v1188
  %1509 = vst.msk [vmem:[%s4 + $0x48] sm:$0xff] %vm124, %v1190
  %1510 = vst.msk [vmem:[%s4 + $0x50] sm:$0xff] %vm124, %v1216
  %1511 = vst.msk [vmem:[%s4 + $0x58] sm:$0xff] %vm124, %v1218
  %1512 = vst.msk [vmem:[%s4 + $0x60] sm:$0xff] %vm124, %v1244
  %1513 = vst.msk [vmem:[%s4 + $0x68] sm:$0xff] %vm124, %v1246
  %1514 = vst.msk [vmem:[%s4 + $0x70] sm:$0xff] %vm124, %v1272
  %1515 = vst.msk [vmem:[%s4 + $0x78] sm:$0xff] %vm124, %v1274
  %1516 = vst.msk [vmem:[%s4 + $0x80] sm:$0xff] %vm124, %v1300
  %1517 = vst.msk [vmem:[%s4 + $0x88] sm:$0xff] %vm124, %v1302
  %1518 = vst.msk [vmem:[%s4 + $0x90] sm:$0xff] %vm124, %v1328
  %1519 = vst.msk [vmem:[%s4 + $0x98] sm:$0xff] %vm124, %v1330
  %1520 = vst.msk [vmem:[%s4 + $0xa0] sm:$0xff] %vm124, %v1356
  %1521 = vst.msk [vmem:[%s4 + $0xa8] sm:$0xff] %vm124, %v1358
  %1522 = vst.msk [vmem:[%s4 + $0xb0] sm:$0xff] %vm124, %v1384
  %1523 = vst.msk [vmem:[%s4 + $0xb8] sm:$0xff] %vm124, %v1386
  %1524 = vst.msk [vmem:[%s4 + $0xc0] sm:$0xff] %vm124, %v1412
  %1525 = vst.msk [vmem:[%s4 + $0xc8] sm:$0xff] %vm124, %v1414
  %1526 = vst.msk [vmem:[%s4 + $0xd0] sm:$0xff] %vm124, %v1440
  %1527 = vst.msk [vmem:[%s4 + $0xd8] sm:$0xff] %vm124, %v1442
  %1528 = vst.msk [vmem:[%s4 + $0xe0] sm:$0xff] %vm124, %v1468
  %1529 = vst.msk [vmem:[%s4 + $0xe8] sm:$0xff] %vm124, %v1470
  %1530 = vst.msk [vmem:[%s4 + $0xf0] sm:$0xff] %vm124, %v1496
  %1531 = vst.msk [vmem:[%s4 + $0xf8] sm:$0xff] %vm124, %v1498
  // Predicated region
  $region18: #{seq2seq_forward_pallas.34} parent=0 // pred_check
    _
  $region19: #{seq2seq_forward_pallas.34} parent=0 // pred_check_branch
    %1533 = sbr.rel (0) target = $region21
  $region20: #{seq2seq_forward_pallas.34} parent=0 // pred_region
    _
  $region21: #{seq2seq_forward_pallas.34} parent=0 // pred_fallthru
    _
  // Predicated region
  $region22: #{seq2seq_forward_pallas.34} parent=0 // pred_check
    _
  $region23: #{seq2seq_forward_pallas.34} parent=0 // pred_check_branch
    %1535 = sbr.rel (0) target = $region25
  $region24: #{seq2seq_forward_pallas.34} parent=0 // pred_region
    _
  $region25: #{seq2seq_forward_pallas.34} parent=0 // pred_fallthru
    _

// kernel: seq2seq_forward_pallas.35
$region0: #{seq2seq_forward_pallas.35}
  #allocation0 [shape = 'u32[]', space=smem, size = 0x4, offset = 0x4, fixed_abs, tag = 'smem constant byte address 0x4 - core index']
  #allocation1 [shape = 'u32[72,128]{1,0:T(1,128)}', space=vmem, size = 0x9000, scoped, tag = 'internal scratch']
  %s0 = inlined_call_operand.vmem [shape: f32[64,128], index: 0, kind: input, shape index: {}]
  %s1 = inlined_call_operand.vmem [shape: bf16[128,128], index: 1, kind: input, shape index: {}]
  %s2 = inlined_call_operand.vmem [shape: f32[1,128], index: 2, kind: input, shape index: {}]
  %s3 = inlined_call_operand.vmem [shape: f32[64,128], index: 3, kind: input, shape index: {}]
  %s4 = inlined_call_operand.vmem [shape: f32[1,128], index: 4, kind: input, shape index: {}]
  %s5 = inlined_call_operand.vmem [shape: f32[1,128], index: 5, kind: input, shape index: {}]
  %s6 = inlined_call_operand.vmem [shape: f32[64,128], index: 6, kind: output, shape index: {}]
  %s7 = sld [smem:[#allocation0]]
  $region42: #{seq2seq_forward_pallas.35} parent=0
    _
  %s9 = ssub.s32 1, %s7
  %s10 = scalar_select 0, %s9, %s7
  // Predicated region
  $region2: #{seq2seq_forward_pallas.35} parent=0 // pred_check
    _
  $region3: #{seq2seq_forward_pallas.35} parent=0 // pred_check_branch
    %12 = sbr.rel (0) target = $region5
  $region4: #{seq2seq_forward_pallas.35} parent=0 // pred_region
    _
  $region5: #{seq2seq_forward_pallas.35} parent=0 // pred_fallthru
    _
  // Predicated region
  $region6: #{seq2seq_forward_pallas.35} parent=0 // pred_check
    _
  $region7: #{seq2seq_forward_pallas.35} parent=0 // pred_check_branch
    %14 = sbr.rel (0) target = $region9
  $region8: #{seq2seq_forward_pallas.35} parent=0 // pred_region
    _
  $region9: #{seq2seq_forward_pallas.35} parent=0 // pred_fallthru
    _
  // Predicated region
  $region10: #{seq2seq_forward_pallas.35} parent=0 // pred_check
    _
  $region11: #{seq2seq_forward_pallas.35} parent=0 // pred_check_branch
    %16 = sbr.rel (0) target = $region13
  $region12: #{seq2seq_forward_pallas.35} parent=0 // pred_region
    _
  $region13: #{seq2seq_forward_pallas.35} parent=0 // pred_fallthru
    _
  // Predicated region
  $region14: #{seq2seq_forward_pallas.35} parent=0 // pred_check
    _
  $region15: #{seq2seq_forward_pallas.35} parent=0 // pred_check_branch
    %18 = sbr.rel (0) target = $region17
  $region16: #{seq2seq_forward_pallas.35} parent=0 // pred_region
    _
  $region17: #{seq2seq_forward_pallas.35} parent=0 // pred_fallthru
    _
  // Predicated region
  $region18: #{seq2seq_forward_pallas.35} parent=0 // pred_check
    _
  $region19: #{seq2seq_forward_pallas.35} parent=0 // pred_check_branch
    %20 = sbr.rel (0) target = $region21
  $region20: #{seq2seq_forward_pallas.35} parent=0 // pred_region
    _
  $region21: #{seq2seq_forward_pallas.35} parent=0 // pred_fallthru
    _
  // Predicated region
  $region22: #{seq2seq_forward_pallas.35} parent=0 // pred_check
    _
  $region23: #{seq2seq_forward_pallas.35} parent=0 // pred_check_branch
    %22 = sbr.rel (0) target = $region25
  $region24: #{seq2seq_forward_pallas.35} parent=0 // pred_region
    _
  $region25: #{seq2seq_forward_pallas.35} parent=0 // pred_fallthru
    _
  %p23 = scmp.eq.s32.totalorder 0, 0
  // Predicated region
  $region26: #{seq2seq_forward_pallas.35} parent=0 // pred_check
    %p24 = pneg %p23
  $region27: #{seq2seq_forward_pallas.35} parent=0 // pred_check_branch
    %26 = sbr.rel (%p24) target = $region29
  $region28: #{seq2seq_forward_pallas.35} parent=0 // pred_region
    %27 = vst [vmem:[%s6] sm:$0xff] 0.0
    %28 = vst [vmem:[%s6 + $0x8] sm:$0xff] 0.0
    %29 = vst [vmem:[%s6 + $0x10] sm:$0xff] 0.0
    %30 = vst [vmem:[%s6 + $0x18] sm:$0xff] 0.0
    %31 = vst [vmem:[%s6 + $0x20] sm:$0xff] 0.0
    %32 = vst [vmem:[%s6 + $0x28] sm:$0xff] 0.0
    %33 = vst [vmem:[%s6 + $0x30] sm:$0xff] 0.0
    %34 = vst [vmem:[%s6 + $0x38] sm:$0xff] 0.0
  $region29: #{seq2seq_forward_pallas.35} parent=0 // pred_fallthru
    _
  %v35 = vld [vmem:[%s6] sm:$0xff]
  %v36 = vld [vmem:[%s6 + $0x8] sm:$0xff]
  %v37 = vld [vmem:[%s6 + $0x10] sm:$0xff]
  %v38 = vld [vmem:[%s6 + $0x18] sm:$0xff]
  %v39 = vld [vmem:[%s6 + $0x20] sm:$0xff]
  %v40 = vld [vmem:[%s6 + $0x28] sm:$0xff]
  %v41 = vld [vmem:[%s6 + $0x30] sm:$0xff]
  %v42 = vld [vmem:[%s6 + $0x38] sm:$0xff]
  %v43 = vld [vmem:[%s0] sm:$0xff]
  %v44 = vld [vmem:[%s0 + $0x8] sm:$0xff]
  %v45 = vld [vmem:[%s0 + $0x10] sm:$0xff]
  %v46 = vld [vmem:[%s0 + $0x18] sm:$0xff]
  %v47 = vld [vmem:[%s0 + $0x20] sm:$0xff]
  %v48 = vld [vmem:[%s0 + $0x28] sm:$0xff]
  %v49 = vld [vmem:[%s0 + $0x30] sm:$0xff]
  %v50 = vld [vmem:[%s0 + $0x38] sm:$0xff]
  %v51 = vpack.c.bf16 %v44, %v43
  %v52 = vpack.c.bf16 %v46, %v45
  %v53 = vpack.c.bf16 %v48, %v47
  %v54 = vpack.c.bf16 %v50, %v49
  %v55 = vld [vmem:[%s1] sm:$0xf]
  %v56 = vld [vmem:[%s1 + $0x4] sm:$0xf]
  %v57 = vld [vmem:[%s1 + $0x8] sm:$0xf]
  %v58 = vld [vmem:[%s1 + $0xc] sm:$0xf]
  %v59 = vld [vmem:[%s1 + $0x10] sm:$0xf]
  %v60 = vld [vmem:[%s1 + $0x14] sm:$0xf]
  %v61 = vld [vmem:[%s1 + $0x18] sm:$0xf]
  %v62 = vld [vmem:[%s1 + $0x1c] sm:$0xf]
  %v63 = vld [vmem:[%s1 + $0x20] sm:$0xf]
  %v64 = vld [vmem:[%s1 + $0x24] sm:$0xf]
  %v65 = vld [vmem:[%s1 + $0x28] sm:$0xf]
  %v66 = vld [vmem:[%s1 + $0x2c] sm:$0xf]
  %v67 = vld [vmem:[%s1 + $0x30] sm:$0xf]
  %v68 = vld [vmem:[%s1 + $0x34] sm:$0xf]
  %v69 = vld [vmem:[%s1 + $0x38] sm:$0xf]
  %v70 = vld [vmem:[%s1 + $0x3c] sm:$0xf]
  %v87 = vunpack.c.l.b16 %v55
  %v88 = vunpack.c.l.b16 %v56
  %v89 = vunpack.c.l.b16 %v57
  %v90 = vunpack.c.l.b16 %v58
  %v91 = vunpack.c.l.b16 %v59
  %v92 = vunpack.c.l.b16 %v60
  %v93 = vunpack.c.l.b16 %v61
  %v94 = vunpack.c.l.b16 %v62
  %v95 = vunpack.c.l.b16 %v63
  %v96 = vunpack.c.l.b16 %v64
  %v97 = vunpack.c.l.b16 %v65
  %v98 = vunpack.c.l.b16 %v66
  %v99 = vunpack.c.l.b16 %v67
  %v100 = vunpack.c.l.b16 %v68
  %v101 = vunpack.c.l.b16 %v69
  %v102 = vunpack.c.l.b16 %v70
  %v103 = vpack.c.b16 %v88, %v87
  %v104 = vpack.c.b16 %v90, %v89
  %v105 = vpack.c.b16 %v92, %v91
  %v106 = vpack.c.b16 %v94, %v93
  %v107 = vpack.c.b16 %v96, %v95
  %v108 = vpack.c.b16 %v98, %v97
  %v109 = vpack.c.b16 %v100, %v99
  %v110 = vpack.c.b16 %v102, %v101
  %119 = vmatpush.bf16.msra.mxu0 %v110
  %120 = vmatpush.bf16.msra.mxu0 %v109
  %121 = vmatpush.bf16.msra.mxu0 %v108
  %122 = vmatpush.bf16.msra.mxu0 %v107
  %123 = vmatpush.bf16.msra.mxu0 %v106
  %124 = vmatpush.bf16.msra.mxu0 %v105
  %125 = vmatpush.bf16.msra.mxu0 %v104
  %126 = vmatpush.bf16.msra.mxu0 %v103
  %127 = vmatmul.bf16.gmra.mxu0 %v51
  %v128 = vpop.f32.mrf.mxu0
  %v129 = vadd.f32 0.0, %v128
  %v130 = vpop.f32.mrf.mxu0
  %v131 = vadd.f32 0.0, %v130
  %132 = vmatmul.bf16.gmra.mxu0 %v52
  %v133 = vpop.f32.mrf.mxu0
  %v134 = vadd.f32 0.0, %v133
  %v135 = vpop.f32.mrf.mxu0
  %v136 = vadd.f32 0.0, %v135
  %137 = vmatmul.bf16.gmra.mxu0 %v53
  %v138 = vpop.f32.mrf.mxu0
  %v139 = vadd.f32 0.0, %v138
  %v140 = vpop.f32.mrf.mxu0
  %v141 = vadd.f32 0.0, %v140
  %142 = vmatmul.bf16.gmra.mxu0 %v54
  %v143 = vpop.f32.mrf.mxu0
  %v144 = vadd.f32 0.0, %v143
  %v145 = vpop.f32.mrf.mxu0
  %v146 = vadd.f32 0.0, %v145
  %147 = vdwg.mxu0
  %v148 = vadd.f32 %v35, %v129
  %v149 = vadd.f32 %v36, %v131
  %v150 = vadd.f32 %v37, %v134
  %v151 = vadd.f32 %v38, %v136
  %v152 = vadd.f32 %v39, %v139
  %v153 = vadd.f32 %v40, %v141
  %v154 = vadd.f32 %v41, %v144
  %v155 = vadd.f32 %v42, %v146
  %156 = vst [vmem:[%s6] sm:$0xff] %v148
  %157 = vst [vmem:[%s6 + $0x8] sm:$0xff] %v149
  %158 = vst [vmem:[%s6 + $0x10] sm:$0xff] %v150
  %159 = vst [vmem:[%s6 + $0x18] sm:$0xff] %v151
  %160 = vst [vmem:[%s6 + $0x20] sm:$0xff] %v152
  %161 = vst [vmem:[%s6 + $0x28] sm:$0xff] %v153
  %162 = vst [vmem:[%s6 + $0x30] sm:$0xff] %v154
  %163 = vst [vmem:[%s6 + $0x38] sm:$0xff] %v155
  // Predicated region
  $region30: #{seq2seq_forward_pallas.35} parent=0 // pred_check
    %p164 = pneg %p23
  $region31: #{seq2seq_forward_pallas.35} parent=0 // pred_check_branch
    %166 = sbr.rel (%p164) target = $region33
  $region32: #{seq2seq_forward_pallas.35} parent=0 // pred_region
    %v167 = vld [vmem:[%s6] sm:$0xff]
    %v168 = vld [vmem:[%s6 + $0x8] sm:$0xff]
    %v169 = vld [vmem:[%s6 + $0x10] sm:$0xff]
    %v170 = vld [vmem:[%s6 + $0x18] sm:$0xff]
    %v171 = vld [vmem:[%s6 + $0x20] sm:$0xff]
    %v172 = vld [vmem:[%s6 + $0x28] sm:$0xff]
    %v173 = vld [vmem:[%s6 + $0x30] sm:$0xff]
    %v174 = vld [vmem:[%s6 + $0x38] sm:$0xff]
    %v175 = vld [vmem:[%s2] sm:$0x1]
    %v177 = vperm.slane %v175, 0
    %v179 = vadd.f32 %v167, %v177
    %v180 = vadd.f32 %v168, %v177
    %v181 = vadd.f32 %v169, %v177
    %v182 = vadd.f32 %v170, %v177
    %v183 = vadd.f32 %v171, %v177
    %v184 = vadd.f32 %v172, %v177
    %v185 = vadd.f32 %v173, %v177
    %v186 = vadd.f32 %v174, %v177
    %v187 = vld [vmem:[%s3] sm:$0xff]
    %v188 = vld [vmem:[%s3 + $0x8] sm:$0xff]
    %v189 = vld [vmem:[%s3 + $0x10] sm:$0xff]
    %v190 = vld [vmem:[%s3 + $0x18] sm:$0xff]
    %v191 = vld [vmem:[%s3 + $0x20] sm:$0xff]
    %v192 = vld [vmem:[%s3 + $0x28] sm:$0xff]
    %v193 = vld [vmem:[%s3 + $0x30] sm:$0xff]
    %v194 = vld [vmem:[%s3 + $0x38] sm:$0xff]
    %v195 = vadd.f32 %v179, %v187
    %v196 = vadd.f32 %v180, %v188
    %v197 = vadd.f32 %v181, %v189
    %v198 = vadd.f32 %v182, %v190
    %v199 = vadd.f32 %v183, %v191
    %v200 = vadd.f32 %v184, %v192
    %v201 = vadd.f32 %v185, %v193
    %v202 = vadd.f32 %v186, %v194
    %203 = vadd.xlane.f32.xlu0 %v195
    %v204 = vpop.xlane.xlu0 %203
    %205 = vadd.xlane.f32.xlu0 %v196
    %v206 = vpop.xlane.xlu0 %205
    %207 = vadd.xlane.f32.xlu0 %v197
    %v208 = vpop.xlane.xlu0 %207
    %209 = vadd.xlane.f32.xlu0 %v198
    %v210 = vpop.xlane.xlu0 %209
    %211 = vadd.xlane.f32.xlu0 %v199
    %v212 = vpop.xlane.xlu0 %211
    %213 = vadd.xlane.f32.xlu0 %v200
    %v214 = vpop.xlane.xlu0 %213
    %215 = vadd.xlane.f32.xlu0 %v201
    %v216 = vpop.xlane.xlu0 %215
    %217 = vadd.xlane.f32.xlu0 %v202
    %v218 = vpop.xlane.xlu0 %217
    %v219 = vrcp.pop 128.0
    %v220 = vmul.f32 128.0, %v219
    %v221 = vsub.f32 1.0, %v220
    %v222 = vmul.f32 %v219, %v221
    %v223 = vadd.f32 %v219, %v222
    %vm224 = vweird.f32 %v219
    %v225 = vsel %vm224, %v219, %v223
    %v226 = vmul.f32 %v204, %v225
    %v227 = vmul.f32 %v206, %v225
    %v228 = vmul.f32 %v208, %v225
    %v229 = vmul.f32 %v210, %v225
    %v230 = vmul.f32 %v212, %v225
    %v231 = vmul.f32 %v214, %v225
    %v232 = vmul.f32 %v216, %v225
    %v233 = vmul.f32 %v218, %v225
    %v234 = vsub.f32 %v195, %v226
    %v235 = vsub.f32 %v196, %v227
    %v236 = vsub.f32 %v197, %v228
    %v237 = vsub.f32 %v198, %v229
    %v238 = vsub.f32 %v199, %v230
    %v239 = vsub.f32 %v200, %v231
    %v240 = vsub.f32 %v201, %v232
    %v241 = vsub.f32 %v202, %v233
    %v242 = vmul.f32 %v234, %v234
    %v243 = vmul.f32 %v235, %v235
    %v244 = vmul.f32 %v236, %v236
    %v245 = vmul.f32 %v237, %v237
    %v246 = vmul.f32 %v238, %v238
    %v247 = vmul.f32 %v239, %v239
    %v248 = vmul.f32 %v240, %v240
    %v249 = vmul.f32 %v241, %v241
    %250 = vadd.xlane.f32.xlu0 %v242
    %v251 = vpop.xlane.xlu0 %250
    %252 = vadd.xlane.f32.xlu0 %v243
    %v253 = vpop.xlane.xlu0 %252
    %254 = vadd.xlane.f32.xlu0 %v244
    %v255 = vpop.xlane.xlu0 %254
    %256 = vadd.xlane.f32.xlu0 %v245
    %v257 = vpop.xlane.xlu0 %256
    %258 = vadd.xlane.f32.xlu0 %v246
    %v259 = vpop.xlane.xlu0 %258
    %260 = vadd.xlane.f32.xlu0 %v247
    %v261 = vpop.xlane.xlu0 %260
    %262 = vadd.xlane.f32.xlu0 %v248
    %v263 = vpop.xlane.xlu0 %262
    %264 = vadd.xlane.f32.xlu0 %v249
    %v265 = vpop.xlane.xlu0 %264
    %v266 = vmul.f32 %v251, %v225
    %v267 = vmul.f32 %v253, %v225
    %v268 = vmul.f32 %v255, %v225
    %v269 = vmul.f32 %v257, %v225
    %v270 = vmul.f32 %v259, %v225
    %v271 = vmul.f32 %v261, %v225
    %v272 = vmul.f32 %v263, %v225
    %v273 = vmul.f32 %v265, %v225
    %v274 = vadd.f32 %v266, 1e-05
    %v275 = vadd.f32 %v267, 1e-05
    %v276 = vadd.f32 %v268, 1e-05
    %v277 = vadd.f32 %v269, 1e-05
    %v278 = vadd.f32 %v270, 1e-05
    %v279 = vadd.f32 %v271, 1e-05
    %v280 = vadd.f32 %v272, 1e-05
    %v281 = vadd.f32 %v273, 1e-05
    %v282 = vrsqrt.pop %v274
    %v283 = vmul.f32 %v282, %v274
    %v284 = vmul.f32 %v283, %v282
    %v285 = vmul.f32 0.5, %v284
    %v286 = vsub.f32 1.5, %v285
    %v287 = vmul.f32 %v282, %v286
    %vm288 = vweird.f32 %v274
    %vm289 = vweird.f32 %v282
    %vm290 = vmor %vm288, %vm289
    %v291 = vsel %vm290, %v282, %v287
    %v292 = vrsqrt.pop %v275
    %v293 = vmul.f32 %v292, %v275
    %v294 = vmul.f32 %v293, %v292
    %v295 = vmul.f32 0.5, %v294
    %v296 = vsub.f32 1.5, %v295
    %v297 = vmul.f32 %v292, %v296
    %vm298 = vweird.f32 %v275
    %vm299 = vweird.f32 %v292
    %vm300 = vmor %vm298, %vm299
    %v301 = vsel %vm300, %v292, %v297
    %v302 = vrsqrt.pop %v276
    %v303 = vmul.f32 %v302, %v276
    %v304 = vmul.f32 %v303, %v302
    %v305 = vmul.f32 0.5, %v304
    %v306 = vsub.f32 1.5, %v305
    %v307 = vmul.f32 %v302, %v306
    %vm308 = vweird.f32 %v276
    %vm309 = vweird.f32 %v302
    %vm310 = vmor %vm308, %vm309
    %v311 = vsel %vm310, %v302, %v307
    %v312 = vrsqrt.pop %v277
    %v313 = vmul.f32 %v312, %v277
    %v314 = vmul.f32 %v313, %v312
    %v315 = vmul.f32 0.5, %v314
    %v316 = vsub.f32 1.5, %v315
    %v317 = vmul.f32 %v312, %v316
    %vm318 = vweird.f32 %v277
    %vm319 = vweird.f32 %v312
    %vm320 = vmor %vm318, %vm319
    %v321 = vsel %vm320, %v312, %v317
    %v322 = vrsqrt.pop %v278
    %v323 = vmul.f32 %v322, %v278
    %v324 = vmul.f32 %v323, %v322
    %v325 = vmul.f32 0.5, %v324
    %v326 = vsub.f32 1.5, %v325
    %v327 = vmul.f32 %v322, %v326
    %vm328 = vweird.f32 %v278
    %vm329 = vweird.f32 %v322
    %vm330 = vmor %vm328, %vm329
    %v331 = vsel %vm330, %v322, %v327
    %v332 = vrsqrt.pop %v279
    %v333 = vmul.f32 %v332, %v279
    %v334 = vmul.f32 %v333, %v332
    %v335 = vmul.f32 0.5, %v334
    %v336 = vsub.f32 1.5, %v335
    %v337 = vmul.f32 %v332, %v336
    %vm338 = vweird.f32 %v279
    %vm339 = vweird.f32 %v332
    %vm340 = vmor %vm338, %vm339
    %v341 = vsel %vm340, %v332, %v337
    %v342 = vrsqrt.pop %v280
    %v343 = vmul.f32 %v342, %v280
    %v344 = vmul.f32 %v343, %v342
    %v345 = vmul.f32 0.5, %v344
    %v346 = vsub.f32 1.5, %v345
    %v347 = vmul.f32 %v342, %v346
    %vm348 = vweird.f32 %v280
    %vm349 = vweird.f32 %v342
    %vm350 = vmor %vm348, %vm349
    %v351 = vsel %vm350, %v342, %v347
    %v352 = vrsqrt.pop %v281
    %v353 = vmul.f32 %v352, %v281
    %v354 = vmul.f32 %v353, %v352
    %v355 = vmul.f32 0.5, %v354
    %v356 = vsub.f32 1.5, %v355
    %v357 = vmul.f32 %v352, %v356
    %vm358 = vweird.f32 %v281
    %vm359 = vweird.f32 %v352
    %vm360 = vmor %vm358, %vm359
    %v361 = vsel %vm360, %v352, %v357
    %v362 = vmul.f32 %v234, %v291
    %v363 = vmul.f32 %v235, %v301
    %v364 = vmul.f32 %v236, %v311
    %v365 = vmul.f32 %v237, %v321
    %v366 = vmul.f32 %v238, %v331
    %v367 = vmul.f32 %v239, %v341
    %v368 = vmul.f32 %v240, %v351
    %v369 = vmul.f32 %v241, %v361
    %v370 = vld [vmem:[%s4] sm:$0x1]
    %v372 = vperm.slane %v370, 0
    %v374 = vmul.f32 %v362, %v372
    %v375 = vmul.f32 %v363, %v372
    %v376 = vmul.f32 %v364, %v372
    %v377 = vmul.f32 %v365, %v372
    %v378 = vmul.f32 %v366, %v372
    %v379 = vmul.f32 %v367, %v372
    %v380 = vmul.f32 %v368, %v372
    %v381 = vmul.f32 %v369, %v372
    %v382 = vld [vmem:[%s5] sm:$0x1]
    %v384 = vperm.slane %v382, 0
    %v386 = vadd.f32 %v374, %v384
    %v387 = vadd.f32 %v375, %v384
    %v388 = vadd.f32 %v376, %v384
    %v389 = vadd.f32 %v377, %v384
    %v390 = vadd.f32 %v378, %v384
    %v391 = vadd.f32 %v379, %v384
    %v392 = vadd.f32 %v380, %v384
    %v393 = vadd.f32 %v381, %v384
    %394 = vst [vmem:[%s6] sm:$0xff] %v386
    %395 = vst [vmem:[%s6 + $0x8] sm:$0xff] %v387
    %396 = vst [vmem:[%s6 + $0x10] sm:$0xff] %v388
    %397 = vst [vmem:[%s6 + $0x18] sm:$0xff] %v389
    %398 = vst [vmem:[%s6 + $0x20] sm:$0xff] %v390
    %399 = vst [vmem:[%s6 + $0x28] sm:$0xff] %v391
    %400 = vst [vmem:[%s6 + $0x30] sm:$0xff] %v392
    %401 = vst [vmem:[%s6 + $0x38] sm:$0xff] %v393
  $region33: #{seq2seq_forward_pallas.35} parent=0 // pred_fallthru
    _
  // Predicated region
  $region34: #{seq2seq_forward_pallas.35} parent=0 // pred_check
    _
  $region35: #{seq2seq_forward_pallas.35} parent=0 // pred_check_branch
    %403 = sbr.rel (0) target = $region37
  $region36: #{seq2seq_forward_pallas.35} parent=0 // pred_region
    _
  $region37: #{seq2seq_forward_pallas.35} parent=0 // pred_fallthru
    _
  // Predicated region
  $region38: #{seq2seq_forward_pallas.35} parent=0 // pred_check
    _
  $region39: #{seq2seq_forward_pallas.35} parent=0 // pred_check_branch
    %405 = sbr.rel (0) target = $region41
  $region40: #{seq2seq_forward_pallas.35} parent=0 // pred_region
    _
  $region41: #{seq2seq_forward_pallas.35} parent=0 // pred_fallthru
    _

// kernel: seq2seq_forward_pallas.37
$region0: #{seq2seq_forward_pallas.37}
  #allocation0 [shape = 'u32[]', space=smem, size = 0x4, offset = 0x4, fixed_abs, tag = 'smem constant byte address 0x4 - core index']
  #allocation1 [shape = 'u32[72,128]{1,0:T(1,128)}', space=vmem, size = 0x9000, scoped, tag = 'internal scratch']
  %s0 = inlined_call_operand.vmem [shape: f32[64,256], index: 0, kind: input, shape index: {}]
  %s1 = inlined_call_operand.vmem [shape: bf16[256,128], index: 1, kind: input, shape index: {}]
  %s2 = inlined_call_operand.vmem [shape: f32[1,128], index: 2, kind: input, shape index: {}]
  %s3 = inlined_call_operand.vmem [shape: f32[64,128], index: 3, kind: input, shape index: {}]
  %s4 = inlined_call_operand.vmem [shape: f32[1,128], index: 4, kind: input, shape index: {}]
  %s5 = inlined_call_operand.vmem [shape: f32[1,128], index: 5, kind: input, shape index: {}]
  %s6 = inlined_call_operand.vmem [shape: f32[64,128], index: 6, kind: output, shape index: {}]
  %s7 = sld [smem:[#allocation0]]
  $region42: #{seq2seq_forward_pallas.37} parent=0
    _
  %s9 = ssub.s32 1, %s7
  %s10 = scalar_select 0, %s9, %s7
  // Predicated region
  $region2: #{seq2seq_forward_pallas.37} parent=0 // pred_check
    _
  $region3: #{seq2seq_forward_pallas.37} parent=0 // pred_check_branch
    %12 = sbr.rel (0) target = $region5
  $region4: #{seq2seq_forward_pallas.37} parent=0 // pred_region
    _
  $region5: #{seq2seq_forward_pallas.37} parent=0 // pred_fallthru
    _
  // Predicated region
  $region6: #{seq2seq_forward_pallas.37} parent=0 // pred_check
    _
  $region7: #{seq2seq_forward_pallas.37} parent=0 // pred_check_branch
    %14 = sbr.rel (0) target = $region9
  $region8: #{seq2seq_forward_pallas.37} parent=0 // pred_region
    _
  $region9: #{seq2seq_forward_pallas.37} parent=0 // pred_fallthru
    _
  // Predicated region
  $region10: #{seq2seq_forward_pallas.37} parent=0 // pred_check
    _
  $region11: #{seq2seq_forward_pallas.37} parent=0 // pred_check_branch
    %16 = sbr.rel (0) target = $region13
  $region12: #{seq2seq_forward_pallas.37} parent=0 // pred_region
    _
  $region13: #{seq2seq_forward_pallas.37} parent=0 // pred_fallthru
    _
  // Predicated region
  $region14: #{seq2seq_forward_pallas.37} parent=0 // pred_check
    _
  $region15: #{seq2seq_forward_pallas.37} parent=0 // pred_check_branch
    %18 = sbr.rel (0) target = $region17
  $region16: #{seq2seq_forward_pallas.37} parent=0 // pred_region
    _
  $region17: #{seq2seq_forward_pallas.37} parent=0 // pred_fallthru
    _
  // Predicated region
  $region18: #{seq2seq_forward_pallas.37} parent=0 // pred_check
    _
  $region19: #{seq2seq_forward_pallas.37} parent=0 // pred_check_branch
    %20 = sbr.rel (0) target = $region21
  $region20: #{seq2seq_forward_pallas.37} parent=0 // pred_region
    _
  $region21: #{seq2seq_forward_pallas.37} parent=0 // pred_fallthru
    _
  // Predicated region
  $region22: #{seq2seq_forward_pallas.37} parent=0 // pred_check
    _
  $region23: #{seq2seq_forward_pallas.37} parent=0 // pred_check_branch
    %22 = sbr.rel (0) target = $region25
  $region24: #{seq2seq_forward_pallas.37} parent=0 // pred_region
    _
  $region25: #{seq2seq_forward_pallas.37} parent=0 // pred_fallthru
    _
  %p23 = scmp.eq.s32.totalorder 0, 0
  // Predicated region
  $region26: #{seq2seq_forward_pallas.37} parent=0 // pred_check
    %p24 = pneg %p23
  $region27: #{seq2seq_forward_pallas.37} parent=0 // pred_check_branch
    %26 = sbr.rel (%p24) target = $region29
  $region28: #{seq2seq_forward_pallas.37} parent=0 // pred_region
    %27 = vst [vmem:[%s6] sm:$0xff] 0.0
    %28 = vst [vmem:[%s6 + $0x8] sm:$0xff] 0.0
    %29 = vst [vmem:[%s6 + $0x10] sm:$0xff] 0.0
    %30 = vst [vmem:[%s6 + $0x18] sm:$0xff] 0.0
    %31 = vst [vmem:[%s6 + $0x20] sm:$0xff] 0.0
    %32 = vst [vmem:[%s6 + $0x28] sm:$0xff] 0.0
    %33 = vst [vmem:[%s6 + $0x30] sm:$0xff] 0.0
    %34 = vst [vmem:[%s6 + $0x38] sm:$0xff] 0.0
  $region29: #{seq2seq_forward_pallas.37} parent=0 // pred_fallthru
    _
  %v35 = vld [vmem:[%s6] sm:$0xff]
  %v36 = vld [vmem:[%s6 + $0x8] sm:$0xff]
  %v37 = vld [vmem:[%s6 + $0x10] sm:$0xff]
  %v38 = vld [vmem:[%s6 + $0x18] sm:$0xff]
  %v39 = vld [vmem:[%s6 + $0x20] sm:$0xff]
  %v40 = vld [vmem:[%s6 + $0x28] sm:$0xff]
  %v41 = vld [vmem:[%s6 + $0x30] sm:$0xff]
  %v42 = vld [vmem:[%s6 + $0x38] sm:$0xff]
  %v43 = vld [vmem:[%s0] sm:$0xff]
  %v44 = vld [vmem:[%s0 + $0x8] sm:$0xff]
  %v45 = vld [vmem:[%s0 + $0x10] sm:$0xff]
  %v46 = vld [vmem:[%s0 + $0x18] sm:$0xff]
  %v47 = vld [vmem:[%s0 + $0x20] sm:$0xff]
  %v48 = vld [vmem:[%s0 + $0x28] sm:$0xff]
  %v49 = vld [vmem:[%s0 + $0x30] sm:$0xff]
  %v50 = vld [vmem:[%s0 + $0x38] sm:$0xff]
  %v51 = vld [vmem:[%s0 + $0x40] sm:$0xff]
  %v52 = vld [vmem:[%s0 + $0x48] sm:$0xff]
  %v53 = vld [vmem:[%s0 + $0x50] sm:$0xff]
  %v54 = vld [vmem:[%s0 + $0x58] sm:$0xff]
  %v55 = vld [vmem:[%s0 + $0x60] sm:$0xff]
  %v56 = vld [vmem:[%s0 + $0x68] sm:$0xff]
  %v57 = vld [vmem:[%s0 + $0x70] sm:$0xff]
  %v58 = vld [vmem:[%s0 + $0x78] sm:$0xff]
  %v59 = vpack.c.bf16 %v45, %v43
  %v60 = vpack.c.bf16 %v46, %v44
  %v61 = vpack.c.bf16 %v49, %v47
  %v62 = vpack.c.bf16 %v50, %v48
  %v63 = vpack.c.bf16 %v53, %v51
  %v64 = vpack.c.bf16 %v54, %v52
  %v65 = vpack.c.bf16 %v57, %v55
  %v66 = vpack.c.bf16 %v58, %v56
  %v67 = vld [vmem:[%s1] sm:$0xf]
  %v68 = vld [vmem:[%s1 + $0x4] sm:$0xf]
  %v69 = vld [vmem:[%s1 + $0x8] sm:$0xf]
  %v70 = vld [vmem:[%s1 + $0xc] sm:$0xf]
  %v71 = vld [vmem:[%s1 + $0x10] sm:$0xf]
  %v72 = vld [vmem:[%s1 + $0x14] sm:$0xf]
  %v73 = vld [vmem:[%s1 + $0x18] sm:$0xf]
  %v74 = vld [vmem:[%s1 + $0x1c] sm:$0xf]
  %v75 = vld [vmem:[%s1 + $0x20] sm:$0xf]
  %v76 = vld [vmem:[%s1 + $0x24] sm:$0xf]
  %v77 = vld [vmem:[%s1 + $0x28] sm:$0xf]
  %v78 = vld [vmem:[%s1 + $0x2c] sm:$0xf]
  %v79 = vld [vmem:[%s1 + $0x30] sm:$0xf]
  %v80 = vld [vmem:[%s1 + $0x34] sm:$0xf]
  %v81 = vld [vmem:[%s1 + $0x38] sm:$0xf]
  %v82 = vld [vmem:[%s1 + $0x3c] sm:$0xf]
  %v83 = vld [vmem:[%s1 + $0x40] sm:$0xf]
  %v84 = vld [vmem:[%s1 + $0x44] sm:$0xf]
  %v85 = vld [vmem:[%s1 + $0x48] sm:$0xf]
  %v86 = vld [vmem:[%s1 + $0x4c] sm:$0xf]
  %v87 = vld [vmem:[%s1 + $0x50] sm:$0xf]
  %v88 = vld [vmem:[%s1 + $0x54] sm:$0xf]
  %v89 = vld [vmem:[%s1 + $0x58] sm:$0xf]
  %v90 = vld [vmem:[%s1 + $0x5c] sm:$0xf]
  %v91 = vld [vmem:[%s1 + $0x60] sm:$0xf]
  %v92 = vld [vmem:[%s1 + $0x64] sm:$0xf]
  %v93 = vld [vmem:[%s1 + $0x68] sm:$0xf]
  %v94 = vld [vmem:[%s1 + $0x6c] sm:$0xf]
  %v95 = vld [vmem:[%s1 + $0x70] sm:$0xf]
  %v96 = vld [vmem:[%s1 + $0x74] sm:$0xf]
  %v97 = vld [vmem:[%s1 + $0x78] sm:$0xf]
  %v98 = vld [vmem:[%s1 + $0x7c] sm:$0xf]
  %v131 = vunpack.c.l.b16 %v67
  %v132 = vunpack.c.l.b16 %v68
  %v133 = vunpack.c.l.b16 %v69
  %v134 = vunpack.c.l.b16 %v70
  %v135 = vunpack.c.l.b16 %v71
  %v136 = vunpack.c.l.b16 %v72
  %v137 = vunpack.c.l.b16 %v73
  %v138 = vunpack.c.l.b16 %v74
  %v139 = vunpack.c.l.b16 %v75
  %v140 = vunpack.c.l.b16 %v76
  %v141 = vunpack.c.l.b16 %v77
  %v142 = vunpack.c.l.b16 %v78
  %v143 = vunpack.c.l.b16 %v79
  %v144 = vunpack.c.l.b16 %v80
  %v145 = vunpack.c.l.b16 %v81
  %v146 = vunpack.c.l.b16 %v82
  %v147 = vunpack.c.l.b16 %v83
  %v148 = vunpack.c.l.b16 %v84
  %v149 = vunpack.c.l.b16 %v85
  %v150 = vunpack.c.l.b16 %v86
  %v151 = vunpack.c.l.b16 %v87
  %v152 = vunpack.c.l.b16 %v88
  %v153 = vunpack.c.l.b16 %v89
  %v154 = vunpack.c.l.b16 %v90
  %v155 = vunpack.c.l.b16 %v91
  %v156 = vunpack.c.l.b16 %v92
  %v157 = vunpack.c.l.b16 %v93
  %v158 = vunpack.c.l.b16 %v94
  %v159 = vunpack.c.l.b16 %v95
  %v160 = vunpack.c.l.b16 %v96
  %v161 = vunpack.c.l.b16 %v97
  %v162 = vunpack.c.l.b16 %v98
  %v163 = vpack.c.b16 %v132, %v131
  %v164 = vpack.c.b16 %v134, %v133
  %v165 = vpack.c.b16 %v136, %v135
  %v166 = vpack.c.b16 %v138, %v137
  %v167 = vpack.c.b16 %v140, %v139
  %v168 = vpack.c.b16 %v142, %v141
  %v169 = vpack.c.b16 %v144, %v143
  %v170 = vpack.c.b16 %v146, %v145
  %v171 = vpack.c.b16 %v148, %v147
  %v172 = vpack.c.b16 %v150, %v149
  %v173 = vpack.c.b16 %v152, %v151
  %v174 = vpack.c.b16 %v154, %v153
  %v175 = vpack.c.b16 %v156, %v155
  %v176 = vpack.c.b16 %v158, %v157
  %v177 = vpack.c.b16 %v160, %v159
  %v178 = vpack.c.b16 %v162, %v161
  %195 = vmatpush.bf16.msra.mxu0 %v170
  %196 = vmatpush.bf16.msra.mxu0 %v169
  %197 = vmatpush.bf16.msra.mxu0 %v168
  %198 = vmatpush.bf16.msra.mxu0 %v167
  %199 = vmatpush.bf16.msra.mxu0 %v166
  %200 = vmatpush.bf16.msra.mxu0 %v165
  %201 = vmatpush.bf16.msra.mxu0 %v164
  %202 = vmatpush.bf16.msra.mxu0 %v163
  %203 = vmatmul.bf16.gmra.mxu0 %v59
  %v204 = vpop.f32.mrf.mxu0
  %v205 = vadd.f32 0.0, %v204
  %v206 = vpop.f32.mrf.mxu0
  %v207 = vadd.f32 0.0, %v206
  %208 = vmatmul.bf16.gmra.mxu0 %v61
  %v209 = vpop.f32.mrf.mxu0
  %v210 = vadd.f32 0.0, %v209
  %v211 = vpop.f32.mrf.mxu0
  %v212 = vadd.f32 0.0, %v211
  %213 = vmatmul.bf16.gmra.mxu0 %v63
  %v214 = vpop.f32.mrf.mxu0
  %v215 = vadd.f32 0.0, %v214
  %v216 = vpop.f32.mrf.mxu0
  %v217 = vadd.f32 0.0, %v216
  %218 = vmatmul.bf16.gmra.mxu0 %v65
  %v219 = vpop.f32.mrf.mxu0
  %v220 = vadd.f32 0.0, %v219
  %v221 = vpop.f32.mrf.mxu0
  %v222 = vadd.f32 0.0, %v221
  %223 = vdwg.mxu0
  %224 = vmatpush.bf16.msra.mxu0 %v178
  %225 = vmatpush.bf16.msra.mxu0 %v177
  %226 = vmatpush.bf16.msra.mxu0 %v176
  %227 = vmatpush.bf16.msra.mxu0 %v175
  %228 = vmatpush.bf16.msra.mxu0 %v174
  %229 = vmatpush.bf16.msra.mxu0 %v173
  %230 = vmatpush.bf16.msra.mxu0 %v172
  %231 = vmatpush.bf16.msra.mxu0 %v171
  %232 = vmatmul.bf16.gmra.mxu0 %v60
  %v233 = vpop.f32.mrf.mxu0
  %v234 = vadd.f32 %v205, %v233
  %v235 = vpop.f32.mrf.mxu0
  %v236 = vadd.f32 %v207, %v235
  %237 = vmatmul.bf16.gmra.mxu0 %v62
  %v238 = vpop.f32.mrf.mxu0
  %v239 = vadd.f32 %v210, %v238
  %v240 = vpop.f32.mrf.mxu0
  %v241 = vadd.f32 %v212, %v240
  %242 = vmatmul.bf16.gmra.mxu0 %v64
  %v243 = vpop.f32.mrf.mxu0
  %v244 = vadd.f32 %v215, %v243
  %v245 = vpop.f32.mrf.mxu0
  %v246 = vadd.f32 %v217, %v245
  %247 = vmatmul.bf16.gmra.mxu0 %v66
  %v248 = vpop.f32.mrf.mxu0
  %v249 = vadd.f32 %v220, %v248
  %v250 = vpop.f32.mrf.mxu0
  %v251 = vadd.f32 %v222, %v250
  %252 = vdwg.mxu0
  %v253 = vadd.f32 %v35, %v234
  %v254 = vadd.f32 %v36, %v236
  %v255 = vadd.f32 %v37, %v239
  %v256 = vadd.f32 %v38, %v241
  %v257 = vadd.f32 %v39, %v244
  %v258 = vadd.f32 %v40, %v246
  %v259 = vadd.f32 %v41, %v249
  %v260 = vadd.f32 %v42, %v251
  %261 = vst [vmem:[%s6] sm:$0xff] %v253
  %262 = vst [vmem:[%s6 + $0x8] sm:$0xff] %v254
  %263 = vst [vmem:[%s6 + $0x10] sm:$0xff] %v255
  %264 = vst [vmem:[%s6 + $0x18] sm:$0xff] %v256
  %265 = vst [vmem:[%s6 + $0x20] sm:$0xff] %v257
  %266 = vst [vmem:[%s6 + $0x28] sm:$0xff] %v258
  %267 = vst [vmem:[%s6 + $0x30] sm:$0xff] %v259
  %268 = vst [vmem:[%s6 + $0x38] sm:$0xff] %v260
  // Predicated region
  $region30: #{seq2seq_forward_pallas.37} parent=0 // pred_check
    %p269 = pneg %p23
  $region31: #{seq2seq_forward_pallas.37} parent=0 // pred_check_branch
    %271 = sbr.rel (%p269) target = $region33
  $region32: #{seq2seq_forward_pallas.37} parent=0 // pred_region
    %v272 = vld [vmem:[%s6] sm:$0xff]
    %v273 = vld [vmem:[%s6 + $0x8] sm:$0xff]
    %v274 = vld [vmem:[%s6 + $0x10] sm:$0xff]
    %v275 = vld [vmem:[%s6 + $0x18] sm:$0xff]
    %v276 = vld [vmem:[%s6 + $0x20] sm:$0xff]
    %v277 = vld [vmem:[%s6 + $0x28] sm:$0xff]
    %v278 = vld [vmem:[%s6 + $0x30] sm:$0xff]
    %v279 = vld [vmem:[%s6 + $0x38] sm:$0xff]
    %v280 = vld [vmem:[%s2] sm:$0x1]
    %v282 = vperm.slane %v280, 0
    %v284 = vadd.f32 %v272, %v282
    %v285 = vadd.f32 %v273, %v282
    %v286 = vadd.f32 %v274, %v282
    %v287 = vadd.f32 %v275, %v282
    %v288 = vadd.f32 %v276, %v282
    %v289 = vadd.f32 %v277, %v282
    %v290 = vadd.f32 %v278, %v282
    %v291 = vadd.f32 %v279, %v282
    %v292 = vld [vmem:[%s3] sm:$0xff]
    %v293 = vld [vmem:[%s3 + $0x8] sm:$0xff]
    %v294 = vld [vmem:[%s3 + $0x10] sm:$0xff]
    %v295 = vld [vmem:[%s3 + $0x18] sm:$0xff]
    %v296 = vld [vmem:[%s3 + $0x20] sm:$0xff]
    %v297 = vld [vmem:[%s3 + $0x28] sm:$0xff]
    %v298 = vld [vmem:[%s3 + $0x30] sm:$0xff]
    %v299 = vld [vmem:[%s3 + $0x38] sm:$0xff]
    %v300 = vadd.f32 %v284, %v292
    %v301 = vadd.f32 %v285, %v293
    %v302 = vadd.f32 %v286, %v294
    %v303 = vadd.f32 %v287, %v295
    %v304 = vadd.f32 %v288, %v296
    %v305 = vadd.f32 %v289, %v297
    %v306 = vadd.f32 %v290, %v298
    %v307 = vadd.f32 %v291, %v299
    %308 = vadd.xlane.f32.xlu0 %v300
    %v309 = vpop.xlane.xlu0 %308
    %310 = vadd.xlane.f32.xlu0 %v301
    %v311 = vpop.xlane.xlu0 %310
    %312 = vadd.xlane.f32.xlu0 %v302
    %v313 = vpop.xlane.xlu0 %312
    %314 = vadd.xlane.f32.xlu0 %v303
    %v315 = vpop.xlane.xlu0 %314
    %316 = vadd.xlane.f32.xlu0 %v304
    %v317 = vpop.xlane.xlu0 %316
    %318 = vadd.xlane.f32.xlu0 %v305
    %v319 = vpop.xlane.xlu0 %318
    %320 = vadd.xlane.f32.xlu0 %v306
    %v321 = vpop.xlane.xlu0 %320
    %322 = vadd.xlane.f32.xlu0 %v307
    %v323 = vpop.xlane.xlu0 %322
    %v324 = vrcp.pop 128.0
    %v325 = vmul.f32 128.0, %v324
    %v326 = vsub.f32 1.0, %v325
    %v327 = vmul.f32 %v324, %v326
    %v328 = vadd.f32 %v324, %v327
    %vm329 = vweird.f32 %v324
    %v330 = vsel %vm329, %v324, %v328
    %v331 = vmul.f32 %v309, %v330
    %v332 = vmul.f32 %v311, %v330
    %v333 = vmul.f32 %v313, %v330
    %v334 = vmul.f32 %v315, %v330
    %v335 = vmul.f32 %v317, %v330
    %v336 = vmul.f32 %v319, %v330
    %v337 = vmul.f32 %v321, %v330
    %v338 = vmul.f32 %v323, %v330
    %v339 = vsub.f32 %v300, %v331
    %v340 = vsub.f32 %v301, %v332
    %v341 = vsub.f32 %v302, %v333
    %v342 = vsub.f32 %v303, %v334
    %v343 = vsub.f32 %v304, %v335
    %v344 = vsub.f32 %v305, %v336
    %v345 = vsub.f32 %v306, %v337
    %v346 = vsub.f32 %v307, %v338
    %v347 = vmul.f32 %v339, %v339
    %v348 = vmul.f32 %v340, %v340
    %v349 = vmul.f32 %v341, %v341
    %v350 = vmul.f32 %v342, %v342
    %v351 = vmul.f32 %v343, %v343
    %v352 = vmul.f32 %v344, %v344
    %v353 = vmul.f32 %v345, %v345
    %v354 = vmul.f32 %v346, %v346
    %355 = vadd.xlane.f32.xlu0 %v347
    %v356 = vpop.xlane.xlu0 %355
    %357 = vadd.xlane.f32.xlu0 %v348
    %v358 = vpop.xlane.xlu0 %357
    %359 = vadd.xlane.f32.xlu0 %v349
    %v360 = vpop.xlane.xlu0 %359
    %361 = vadd.xlane.f32.xlu0 %v350
    %v362 = vpop.xlane.xlu0 %361
    %363 = vadd.xlane.f32.xlu0 %v351
    %v364 = vpop.xlane.xlu0 %363
    %365 = vadd.xlane.f32.xlu0 %v352
    %v366 = vpop.xlane.xlu0 %365
    %367 = vadd.xlane.f32.xlu0 %v353
    %v368 = vpop.xlane.xlu0 %367
    %369 = vadd.xlane.f32.xlu0 %v354
    %v370 = vpop.xlane.xlu0 %369
    %v371 = vmul.f32 %v356, %v330
    %v372 = vmul.f32 %v358, %v330
    %v373 = vmul.f32 %v360, %v330
    %v374 = vmul.f32 %v362, %v330
    %v375 = vmul.f32 %v364, %v330
    %v376 = vmul.f32 %v366, %v330
    %v377 = vmul.f32 %v368, %v330
    %v378 = vmul.f32 %v370, %v330
    %v379 = vadd.f32 %v371, 1e-05
    %v380 = vadd.f32 %v372, 1e-05
    %v381 = vadd.f32 %v373, 1e-05
    %v382 = vadd.f32 %v374, 1e-05
    %v383 = vadd.f32 %v375, 1e-05
    %v384 = vadd.f32 %v376, 1e-05
    %v385 = vadd.f32 %v377, 1e-05
    %v386 = vadd.f32 %v378, 1e-05
    %v387 = vrsqrt.pop %v379
    %v388 = vmul.f32 %v387, %v379
    %v389 = vmul.f32 %v388, %v387
    %v390 = vmul.f32 0.5, %v389
    %v391 = vsub.f32 1.5, %v390
    %v392 = vmul.f32 %v387, %v391
    %vm393 = vweird.f32 %v379
    %vm394 = vweird.f32 %v387
    %vm395 = vmor %vm393, %vm394
    %v396 = vsel %vm395, %v387, %v392
    %v397 = vrsqrt.pop %v380
    %v398 = vmul.f32 %v397, %v380
    %v399 = vmul.f32 %v398, %v397
    %v400 = vmul.f32 0.5, %v399
    %v401 = vsub.f32 1.5, %v400
    %v402 = vmul.f32 %v397, %v401
    %vm403 = vweird.f32 %v380
    %vm404 = vweird.f32 %v397
    %vm405 = vmor %vm403, %vm404
    %v406 = vsel %vm405, %v397, %v402
    %v407 = vrsqrt.pop %v381
    %v408 = vmul.f32 %v407, %v381
    %v409 = vmul.f32 %v408, %v407
    %v410 = vmul.f32 0.5, %v409
    %v411 = vsub.f32 1.5, %v410
    %v412 = vmul.f32 %v407, %v411
    %vm413 = vweird.f32 %v381
    %vm414 = vweird.f32 %v407
    %vm415 = vmor %vm413, %vm414
    %v416 = vsel %vm415, %v407, %v412
    %v417 = vrsqrt.pop %v382
    %v418 = vmul.f32 %v417, %v382
    %v419 = vmul.f32 %v418, %v417
    %v420 = vmul.f32 0.5, %v419
    %v421 = vsub.f32 1.5, %v420
    %v422 = vmul.f32 %v417, %v421
    %vm423 = vweird.f32 %v382
    %vm424 = vweird.f32 %v417
    %vm425 = vmor %vm423, %vm424
    %v426 = vsel %vm425, %v417, %v422
    %v427 = vrsqrt.pop %v383
    %v428 = vmul.f32 %v427, %v383
    %v429 = vmul.f32 %v428, %v427
    %v430 = vmul.f32 0.5, %v429
    %v431 = vsub.f32 1.5, %v430
    %v432 = vmul.f32 %v427, %v431
    %vm433 = vweird.f32 %v383
    %vm434 = vweird.f32 %v427
    %vm435 = vmor %vm433, %vm434
    %v436 = vsel %vm435, %v427, %v432
    %v437 = vrsqrt.pop %v384
    %v438 = vmul.f32 %v437, %v384
    %v439 = vmul.f32 %v438, %v437
    %v440 = vmul.f32 0.5, %v439
    %v441 = vsub.f32 1.5, %v440
    %v442 = vmul.f32 %v437, %v441
    %vm443 = vweird.f32 %v384
    %vm444 = vweird.f32 %v437
    %vm445 = vmor %vm443, %vm444
    %v446 = vsel %vm445, %v437, %v442
    %v447 = vrsqrt.pop %v385
    %v448 = vmul.f32 %v447, %v385
    %v449 = vmul.f32 %v448, %v447
    %v450 = vmul.f32 0.5, %v449
    %v451 = vsub.f32 1.5, %v450
    %v452 = vmul.f32 %v447, %v451
    %vm453 = vweird.f32 %v385
    %vm454 = vweird.f32 %v447
    %vm455 = vmor %vm453, %vm454
    %v456 = vsel %vm455, %v447, %v452
    %v457 = vrsqrt.pop %v386
    %v458 = vmul.f32 %v457, %v386
    %v459 = vmul.f32 %v458, %v457
    %v460 = vmul.f32 0.5, %v459
    %v461 = vsub.f32 1.5, %v460
    %v462 = vmul.f32 %v457, %v461
    %vm463 = vweird.f32 %v386
    %vm464 = vweird.f32 %v457
    %vm465 = vmor %vm463, %vm464
    %v466 = vsel %vm465, %v457, %v462
    %v467 = vmul.f32 %v339, %v396
    %v468 = vmul.f32 %v340, %v406
    %v469 = vmul.f32 %v341, %v416
    %v470 = vmul.f32 %v342, %v426
    %v471 = vmul.f32 %v343, %v436
    %v472 = vmul.f32 %v344, %v446
    %v473 = vmul.f32 %v345, %v456
    %v474 = vmul.f32 %v346, %v466
    %v475 = vld [vmem:[%s4] sm:$0x1]
    %v477 = vperm.slane %v475, 0
    %v479 = vmul.f32 %v467, %v477
    %v480 = vmul.f32 %v468, %v477
    %v481 = vmul.f32 %v469, %v477
    %v482 = vmul.f32 %v470, %v477
    %v483 = vmul.f32 %v471, %v477
    %v484 = vmul.f32 %v472, %v477
    %v485 = vmul.f32 %v473, %v477
    %v486 = vmul.f32 %v474, %v477
    %v487 = vld [vmem:[%s5] sm:$0x1]
    %v489 = vperm.slane %v487, 0
    %v491 = vadd.f32 %v479, %v489
    %v492 = vadd.f32 %v480, %v489
    %v493 = vadd.f32 %v481, %v489
    %v494 = vadd.f32 %v482, %v489
    %v495 = vadd.f32 %v483, %v489
    %v496 = vadd.f32 %v484, %v489
    %v497 = vadd.f32 %v485, %v489
    %v498 = vadd.f32 %v486, %v489
    %499 = vst [vmem:[%s6] sm:$0xff] %v491
    %500 = vst [vmem:[%s6 + $0x8] sm:$0xff] %v492
    %501 = vst [vmem:[%s6 + $0x10] sm:$0xff] %v493
    %502 = vst [vmem:[%s6 + $0x18] sm:$0xff] %v494
    %503 = vst [vmem:[%s6 + $0x20] sm:$0xff] %v495
    %504 = vst [vmem:[%s6 + $0x28] sm:$0xff] %v496
    %505 = vst [vmem:[%s6 + $0x30] sm:$0xff] %v497
    %506 = vst [vmem:[%s6 + $0x38] sm:$0xff] %v498
  $region33: #{seq2seq_forward_pallas.37} parent=0 // pred_fallthru
    _
  // Predicated region
  $region34: #{seq2seq_forward_pallas.37} parent=0 // pred_check
    _
  $region35: #{seq2seq_forward_pallas.37} parent=0 // pred_check_branch
    %508 = sbr.rel (0) target = $region37
  $region36: #{seq2seq_forward_pallas.37} parent=0 // pred_region
    _
  $region37: #{seq2seq_forward_pallas.37} parent=0 // pred_fallthru
    _
  // Predicated region
  $region38: #{seq2seq_forward_pallas.37} parent=0 // pred_check
    _
  $region39: #{seq2seq_forward_pallas.37} parent=0 // pred_check_branch
    %510 = sbr.rel (0) target = $region41
  $region40: #{seq2seq_forward_pallas.37} parent=0 // pred_region
    _
  $region41: #{seq2seq_forward_pallas.37} parent=0 // pred_fallthru
    _

// kernel: seq2seq_forward_pallas.38
$region0: #{seq2seq_forward_pallas.38}
  #allocation0 [shape = 'u32[]', space=smem, size = 0x4, offset = 0x4, fixed_abs, tag = 'smem constant byte address 0x4 - core index']
  #allocation1 [shape = 'u32[72,128]{1,0:T(1,128)}', space=vmem, size = 0x9000, scoped, tag = 'internal scratch']
  %s0 = inlined_call_operand.vmem [shape: f32[64,128], index: 0, kind: input, shape index: {}]
  %s1 = inlined_call_operand.vmem [shape: bf16[128,384], index: 1, kind: input, shape index: {}]
  %s2 = inlined_call_operand.vmem [shape: f32[1,384], index: 2, kind: input, shape index: {}]
  %s3 = inlined_call_operand.vmem [shape: f32[64,384], index: 3, kind: output, shape index: {}]
  %s4 = sld [smem:[#allocation0]]
  $region30: #{seq2seq_forward_pallas.38} parent=0
    _
  %s6 = ssub.s32 1, %s4
  %s7 = scalar_select 0, %s6, %s4
  // Predicated region
  $region2: #{seq2seq_forward_pallas.38} parent=0 // pred_check
    _
  $region3: #{seq2seq_forward_pallas.38} parent=0 // pred_check_branch
    %9 = sbr.rel (0) target = $region5
  $region4: #{seq2seq_forward_pallas.38} parent=0 // pred_region
    _
  $region5: #{seq2seq_forward_pallas.38} parent=0 // pred_fallthru
    _
  // Predicated region
  $region6: #{seq2seq_forward_pallas.38} parent=0 // pred_check
    _
  $region7: #{seq2seq_forward_pallas.38} parent=0 // pred_check_branch
    %11 = sbr.rel (0) target = $region9
  $region8: #{seq2seq_forward_pallas.38} parent=0 // pred_region
    _
  $region9: #{seq2seq_forward_pallas.38} parent=0 // pred_fallthru
    _
  // Predicated region
  $region10: #{seq2seq_forward_pallas.38} parent=0 // pred_check
    _
  $region11: #{seq2seq_forward_pallas.38} parent=0 // pred_check_branch
    %13 = sbr.rel (0) target = $region13
  $region12: #{seq2seq_forward_pallas.38} parent=0 // pred_region
    _
  $region13: #{seq2seq_forward_pallas.38} parent=0 // pred_fallthru
    _
  %p14 = scmp.eq.s32.totalorder 0, 0
  // Predicated region
  $region14: #{seq2seq_forward_pallas.38} parent=0 // pred_check
    %p15 = pneg %p14
  $region15: #{seq2seq_forward_pallas.38} parent=0 // pred_check_branch
    %17 = sbr.rel (%p15) target = $region17
  $region16: #{seq2seq_forward_pallas.38} parent=0 // pred_region
    %18 = vst [vmem:[%s3] sm:$0xff] 0.0
    %19 = vst [vmem:[%s3 + $0x8] sm:$0xff] 0.0
    %20 = vst [vmem:[%s3 + $0x10] sm:$0xff] 0.0
    %21 = vst [vmem:[%s3 + $0x18] sm:$0xff] 0.0
    %22 = vst [vmem:[%s3 + $0x20] sm:$0xff] 0.0
    %23 = vst [vmem:[%s3 + $0x28] sm:$0xff] 0.0
    %24 = vst [vmem:[%s3 + $0x30] sm:$0xff] 0.0
    %25 = vst [vmem:[%s3 + $0x38] sm:$0xff] 0.0
    %26 = vst [vmem:[%s3 + $0x40] sm:$0xff] 0.0
    %27 = vst [vmem:[%s3 + $0x48] sm:$0xff] 0.0
    %28 = vst [vmem:[%s3 + $0x50] sm:$0xff] 0.0
    %29 = vst [vmem:[%s3 + $0x58] sm:$0xff] 0.0
    %30 = vst [vmem:[%s3 + $0x60] sm:$0xff] 0.0
    %31 = vst [vmem:[%s3 + $0x68] sm:$0xff] 0.0
    %32 = vst [vmem:[%s3 + $0x70] sm:$0xff] 0.0
    %33 = vst [vmem:[%s3 + $0x78] sm:$0xff] 0.0
    %34 = vst [vmem:[%s3 + $0x80] sm:$0xff] 0.0
    %35 = vst [vmem:[%s3 + $0x88] sm:$0xff] 0.0
    %36 = vst [vmem:[%s3 + $0x90] sm:$0xff] 0.0
    %37 = vst [vmem:[%s3 + $0x98] sm:$0xff] 0.0
    %38 = vst [vmem:[%s3 + $0xa0] sm:$0xff] 0.0
    %39 = vst [vmem:[%s3 + $0xa8] sm:$0xff] 0.0
    %40 = vst [vmem:[%s3 + $0xb0] sm:$0xff] 0.0
    %41 = vst [vmem:[%s3 + $0xb8] sm:$0xff] 0.0
  $region17: #{seq2seq_forward_pallas.38} parent=0 // pred_fallthru
    _
  %v42 = vld [vmem:[%s3] sm:$0xff]
  %v43 = vld [vmem:[%s3 + $0x8] sm:$0xff]
  %v44 = vld [vmem:[%s3 + $0x10] sm:$0xff]
  %v45 = vld [vmem:[%s3 + $0x18] sm:$0xff]
  %v46 = vld [vmem:[%s3 + $0x20] sm:$0xff]
  %v47 = vld [vmem:[%s3 + $0x28] sm:$0xff]
  %v48 = vld [vmem:[%s3 + $0x30] sm:$0xff]
  %v49 = vld [vmem:[%s3 + $0x38] sm:$0xff]
  %v50 = vld [vmem:[%s3 + $0x40] sm:$0xff]
  %v51 = vld [vmem:[%s3 + $0x48] sm:$0xff]
  %v52 = vld [vmem:[%s3 + $0x50] sm:$0xff]
  %v53 = vld [vmem:[%s3 + $0x58] sm:$0xff]
  %v54 = vld [vmem:[%s3 + $0x60] sm:$0xff]
  %v55 = vld [vmem:[%s3 + $0x68] sm:$0xff]
  %v56 = vld [vmem:[%s3 + $0x70] sm:$0xff]
  %v57 = vld [vmem:[%s3 + $0x78] sm:$0xff]
  %v58 = vld [vmem:[%s3 + $0x80] sm:$0xff]
  %v59 = vld [vmem:[%s3 + $0x88] sm:$0xff]
  %v60 = vld [vmem:[%s3 + $0x90] sm:$0xff]
  %v61 = vld [vmem:[%s3 + $0x98] sm:$0xff]
  %v62 = vld [vmem:[%s3 + $0xa0] sm:$0xff]
  %v63 = vld [vmem:[%s3 + $0xa8] sm:$0xff]
  %v64 = vld [vmem:[%s3 + $0xb0] sm:$0xff]
  %v65 = vld [vmem:[%s3 + $0xb8] sm:$0xff]
  %v66 = vld [vmem:[%s0] sm:$0xff]
  %v67 = vld [vmem:[%s0 + $0x8] sm:$0xff]
  %v68 = vld [vmem:[%s0 + $0x10] sm:$0xff]
  %v69 = vld [vmem:[%s0 + $0x18] sm:$0xff]
  %v70 = vld [vmem:[%s0 + $0x20] sm:$0xff]
  %v71 = vld [vmem:[%s0 + $0x28] sm:$0xff]
  %v72 = vld [vmem:[%s0 + $0x30] sm:$0xff]
  %v73 = vld [vmem:[%s0 + $0x38] sm:$0xff]
  %v74 = vpack.c.bf16 %v67, %v66
  %v75 = vpack.c.bf16 %v69, %v68
  %v76 = vpack.c.bf16 %v71, %v70
  %v77 = vpack.c.bf16 %v73, %v72
  %v78 = vld [vmem:[%s1] sm:$0xff]
  %v79 = vld [vmem:[%s1 + $0x8] sm:$0xf]
  %v80 = vld [vmem:[%s1 + $0xc] sm:$0xff]
  %v81 = vld [vmem:[%s1 + $0x14] sm:$0xf]
  %v82 = vld [vmem:[%s1 + $0x18] sm:$0xff]
  %v83 = vld [vmem:[%s1 + $0x20] sm:$0xf]
  %v84 = vld [vmem:[%s1 + $0x24] sm:$0xff]
  %v85 = vld [vmem:[%s1 + $0x2c] sm:$0xf]
  %v86 = vld [vmem:[%s1 + $0x30] sm:$0xff]
  %v87 = vld [vmem:[%s1 + $0x38] sm:$0xf]
  %v88 = vld [vmem:[%s1 + $0x3c] sm:$0xff]
  %v89 = vld [vmem:[%s1 + $0x44] sm:$0xf]
  %v90 = vld [vmem:[%s1 + $0x48] sm:$0xff]
  %v91 = vld [vmem:[%s1 + $0x50] sm:$0xf]
  %v92 = vld [vmem:[%s1 + $0x54] sm:$0xff]
  %v93 = vld [vmem:[%s1 + $0x5c] sm:$0xf]
  %v94 = vld [vmem:[%s1 + $0x60] sm:$0xff]
  %v95 = vld [vmem:[%s1 + $0x68] sm:$0xf]
  %v96 = vld [vmem:[%s1 + $0x6c] sm:$0xff]
  %v97 = vld [vmem:[%s1 + $0x74] sm:$0xf]
  %v98 = vld [vmem:[%s1 + $0x78] sm:$0xff]
  %v99 = vld [vmem:[%s1 + $0x80] sm:$0xf]
  %v100 = vld [vmem:[%s1 + $0x84] sm:$0xff]
  %v101 = vld [vmem:[%s1 + $0x8c] sm:$0xf]
  %v102 = vld [vmem:[%s1 + $0x90] sm:$0xff]
  %v103 = vld [vmem:[%s1 + $0x98] sm:$0xf]
  %v104 = vld [vmem:[%s1 + $0x9c] sm:$0xff]
  %v105 = vld [vmem:[%s1 + $0xa4] sm:$0xf]
  %v106 = vld [vmem:[%s1 + $0xa8] sm:$0xff]
  %v107 = vld [vmem:[%s1 + $0xb0] sm:$0xf]
  %v108 = vld [vmem:[%s1 + $0xb4] sm:$0xff]
  %v109 = vld [vmem:[%s1 + $0xbc] sm:$0xf]
  %v142 = vunpack.c.l.b16 %v78
  %v143 = vunpack.c.h.b16 %v78
  %v144 = vunpack.c.l.b16 %v79
  %v145 = vunpack.c.l.b16 %v80
  %v146 = vunpack.c.h.b16 %v80
  %v147 = vunpack.c.l.b16 %v81
  %v148 = vunpack.c.l.b16 %v82
  %v149 = vunpack.c.h.b16 %v82
  %v150 = vunpack.c.l.b16 %v83
  %v151 = vunpack.c.l.b16 %v84
  %v152 = vunpack.c.h.b16 %v84
  %v153 = vunpack.c.l.b16 %v85
  %v154 = vunpack.c.l.b16 %v86
  %v155 = vunpack.c.h.b16 %v86
  %v156 = vunpack.c.l.b16 %v87
  %v157 = vunpack.c.l.b16 %v88
  %v158 = vunpack.c.h.b16 %v88
  %v159 = vunpack.c.l.b16 %v89
  %v160 = vunpack.c.l.b16 %v90
  %v161 = vunpack.c.h.b16 %v90
  %v162 = vunpack.c.l.b16 %v91
  %v163 = vunpack.c.l.b16 %v92
  %v164 = vunpack.c.h.b16 %v92
  %v165 = vunpack.c.l.b16 %v93
  %v166 = vunpack.c.l.b16 %v94
  %v167 = vunpack.c.h.b16 %v94
  %v168 = vunpack.c.l.b16 %v95
  %v169 = vunpack.c.l.b16 %v96
  %v170 = vunpack.c.h.b16 %v96
  %v171 = vunpack.c.l.b16 %v97
  %v172 = vunpack.c.l.b16 %v98
  %v173 = vunpack.c.h.b16 %v98
  %v174 = vunpack.c.l.b16 %v99
  %v175 = vunpack.c.l.b16 %v100
  %v176 = vunpack.c.h.b16 %v100
  %v177 = vunpack.c.l.b16 %v101
  %v178 = vunpack.c.l.b16 %v102
  %v179 = vunpack.c.h.b16 %v102
  %v180 = vunpack.c.l.b16 %v103
  %v181 = vunpack.c.l.b16 %v104
  %v182 = vunpack.c.h.b16 %v104
  %v183 = vunpack.c.l.b16 %v105
  %v184 = vunpack.c.l.b16 %v106
  %v185 = vunpack.c.h.b16 %v106
  %v186 = vunpack.c.l.b16 %v107
  %v187 = vunpack.c.l.b16 %v108
  %v188 = vunpack.c.h.b16 %v108
  %v189 = vunpack.c.l.b16 %v109
  %v190 = vpack.c.b16 %v145, %v142
  %v191 = vpack.c.b16 %v146, %v143
  %v192 = vpack.c.b16 %v147, %v144
  %v193 = vpack.c.b16 %v151, %v148
  %v194 = vpack.c.b16 %v152, %v149
  %v195 = vpack.c.b16 %v153, %v150
  %v196 = vpack.c.b16 %v157, %v154
  %v197 = vpack.c.b16 %v158, %v155
  %v198 = vpack.c.b16 %v159, %v156
  %v199 = vpack.c.b16 %v163, %v160
  %v200 = vpack.c.b16 %v164, %v161
  %v201 = vpack.c.b16 %v165, %v162
  %v202 = vpack.c.b16 %v169, %v166
  %v203 = vpack.c.b16 %v170, %v167
  %v204 = vpack.c.b16 %v171, %v168
  %v205 = vpack.c.b16 %v175, %v172
  %v206 = vpack.c.b16 %v176, %v173
  %v207 = vpack.c.b16 %v177, %v174
  %v208 = vpack.c.b16 %v181, %v178
  %v209 = vpack.c.b16 %v182, %v179
  %v210 = vpack.c.b16 %v183, %v180
  %v211 = vpack.c.b16 %v187, %v184
  %v212 = vpack.c.b16 %v188, %v185
  %v213 = vpack.c.b16 %v189, %v186
  %238 = vmatpush.bf16.msra.mxu0 %v211
  %239 = vmatpush.bf16.msra.mxu0 %v208
  %240 = vmatpush.bf16.msra.mxu0 %v205
  %241 = vmatpush.bf16.msra.mxu0 %v202
  %242 = vmatpush.bf16.msra.mxu0 %v199
  %243 = vmatpush.bf16.msra.mxu0 %v196
  %244 = vmatpush.bf16.msra.mxu0 %v193
  %245 = vmatpush.bf16.msra.mxu0 %v190
  %246 = vmatmul.bf16.gmra.mxu0 %v74
  %v247 = vpop.f32.mrf.mxu0
  %v248 = vadd.f32 0.0, %v247
  %v249 = vpop.f32.mrf.mxu0
  %v250 = vadd.f32 0.0, %v249
  %251 = vmatmul.bf16.gmra.mxu0 %v75
  %v252 = vpop.f32.mrf.mxu0
  %v253 = vadd.f32 0.0, %v252
  %v254 = vpop.f32.mrf.mxu0
  %v255 = vadd.f32 0.0, %v254
  %256 = vmatmul.bf16.gmra.mxu0 %v76
  %v257 = vpop.f32.mrf.mxu0
  %v258 = vadd.f32 0.0, %v257
  %v259 = vpop.f32.mrf.mxu0
  %v260 = vadd.f32 0.0, %v259
  %261 = vmatmul.bf16.gmra.mxu0 %v77
  %v262 = vpop.f32.mrf.mxu0
  %v263 = vadd.f32 0.0, %v262
  %v264 = vpop.f32.mrf.mxu0
  %v265 = vadd.f32 0.0, %v264
  %266 = vdwg.mxu0
  %267 = vmatpush.bf16.msra.mxu0 %v212
  %268 = vmatpush.bf16.msra.mxu0 %v209
  %269 = vmatpush.bf16.msra.mxu0 %v206
  %270 = vmatpush.bf16.msra.mxu0 %v203
  %271 = vmatpush.bf16.msra.mxu0 %v200
  %272 = vmatpush.bf16.msra.mxu0 %v197
  %273 = vmatpush.bf16.msra.mxu0 %v194
  %274 = vmatpush.bf16.msra.mxu0 %v191
  %275 = vmatmul.bf16.gmra.mxu0 %v74
  %v276 = vpop.f32.mrf.mxu0
  %v277 = vadd.f32 0.0, %v276
  %v278 = vpop.f32.mrf.mxu0
  %v279 = vadd.f32 0.0, %v278
  %280 = vmatmul.bf16.gmra.mxu0 %v75
  %v281 = vpop.f32.mrf.mxu0
  %v282 = vadd.f32 0.0, %v281
  %v283 = vpop.f32.mrf.mxu0
  %v284 = vadd.f32 0.0, %v283
  %285 = vmatmul.bf16.gmra.mxu0 %v76
  %v286 = vpop.f32.mrf.mxu0
  %v287 = vadd.f32 0.0, %v286
  %v288 = vpop.f32.mrf.mxu0
  %v289 = vadd.f32 0.0, %v288
  %290 = vmatmul.bf16.gmra.mxu0 %v77
  %v291 = vpop.f32.mrf.mxu0
  %v292 = vadd.f32 0.0, %v291
  %v293 = vpop.f32.mrf.mxu0
  %v294 = vadd.f32 0.0, %v293
  %295 = vdwg.mxu0
  %296 = vmatpush.bf16.msra.mxu0 %v213
  %297 = vmatpush.bf16.msra.mxu0 %v210
  %298 = vmatpush.bf16.msra.mxu0 %v207
  %299 = vmatpush.bf16.msra.mxu0 %v204
  %300 = vmatpush.bf16.msra.mxu0 %v201
  %301 = vmatpush.bf16.msra.mxu0 %v198
  %302 = vmatpush.bf16.msra.mxu0 %v195
  %303 = vmatpush.bf16.msra.mxu0 %v192
  %304 = vmatmul.bf16.gmra.mxu0 %v74
  %v305 = vpop.f32.mrf.mxu0
  %v306 = vadd.f32 0.0, %v305
  %v307 = vpop.f32.mrf.mxu0
  %v308 = vadd.f32 0.0, %v307
  %309 = vmatmul.bf16.gmra.mxu0 %v75
  %v310 = vpop.f32.mrf.mxu0
  %v311 = vadd.f32 0.0, %v310
  %v312 = vpop.f32.mrf.mxu0
  %v313 = vadd.f32 0.0, %v312
  %314 = vmatmul.bf16.gmra.mxu0 %v76
  %v315 = vpop.f32.mrf.mxu0
  %v316 = vadd.f32 0.0, %v315
  %v317 = vpop.f32.mrf.mxu0
  %v318 = vadd.f32 0.0, %v317
  %319 = vmatmul.bf16.gmra.mxu0 %v77
  %v320 = vpop.f32.mrf.mxu0
  %v321 = vadd.f32 0.0, %v320
  %v322 = vpop.f32.mrf.mxu0
  %v323 = vadd.f32 0.0, %v322
  %324 = vdwg.mxu0
  %v325 = vadd.f32 %v42, %v248
  %v326 = vadd.f32 %v43, %v277
  %v327 = vadd.f32 %v44, %v306
  %v328 = vadd.f32 %v45, %v250
  %v329 = vadd.f32 %v46, %v279
  %v330 = vadd.f32 %v47, %v308
  %v331 = vadd.f32 %v48, %v253
  %v332 = vadd.f32 %v49, %v282
  %v333 = vadd.f32 %v50, %v311
  %v334 = vadd.f32 %v51, %v255
  %v335 = vadd.f32 %v52, %v284
  %v336 = vadd.f32 %v53, %v313
  %v337 = vadd.f32 %v54, %v258
  %v338 = vadd.f32 %v55, %v287
  %v339 = vadd.f32 %v56, %v316
  %v340 = vadd.f32 %v57, %v260
  %v341 = vadd.f32 %v58, %v289
  %v342 = vadd.f32 %v59, %v318
  %v343 = vadd.f32 %v60, %v263
  %v344 = vadd.f32 %v61, %v292
  %v345 = vadd.f32 %v62, %v321
  %v346 = vadd.f32 %v63, %v265
  %v347 = vadd.f32 %v64, %v294
  %v348 = vadd.f32 %v65, %v323
  %349 = vst [vmem:[%s3] sm:$0xff] %v325
  %350 = vst [vmem:[%s3 + $0x8] sm:$0xff] %v326
  %351 = vst [vmem:[%s3 + $0x10] sm:$0xff] %v327
  %352 = vst [vmem:[%s3 + $0x18] sm:$0xff] %v328
  %353 = vst [vmem:[%s3 + $0x20] sm:$0xff] %v329
  %354 = vst [vmem:[%s3 + $0x28] sm:$0xff] %v330
  %355 = vst [vmem:[%s3 + $0x30] sm:$0xff] %v331
  %356 = vst [vmem:[%s3 + $0x38] sm:$0xff] %v332
  %357 = vst [vmem:[%s3 + $0x40] sm:$0xff] %v333
  %358 = vst [vmem:[%s3 + $0x48] sm:$0xff] %v334
  %359 = vst [vmem:[%s3 + $0x50] sm:$0xff] %v335
  %360 = vst [vmem:[%s3 + $0x58] sm:$0xff] %v336
  %361 = vst [vmem:[%s3 + $0x60] sm:$0xff] %v337
  %362 = vst [vmem:[%s3 + $0x68] sm:$0xff] %v338
  %363 = vst [vmem:[%s3 + $0x70] sm:$0xff] %v339
  %364 = vst [vmem:[%s3 + $0x78] sm:$0xff] %v340
  %365 = vst [vmem:[%s3 + $0x80] sm:$0xff] %v341
  %366 = vst [vmem:[%s3 + $0x88] sm:$0xff] %v342
  %367 = vst [vmem:[%s3 + $0x90] sm:$0xff] %v343
  %368 = vst [vmem:[%s3 + $0x98] sm:$0xff] %v344
  %369 = vst [vmem:[%s3 + $0xa0] sm:$0xff] %v345
  %370 = vst [vmem:[%s3 + $0xa8] sm:$0xff] %v346
  %371 = vst [vmem:[%s3 + $0xb0] sm:$0xff] %v347
  %372 = vst [vmem:[%s3 + $0xb8] sm:$0xff] %v348
  // Predicated region
  $region18: #{seq2seq_forward_pallas.38} parent=0 // pred_check
    %p373 = pneg %p14
  $region19: #{seq2seq_forward_pallas.38} parent=0 // pred_check_branch
    %375 = sbr.rel (%p373) target = $region21
  $region20: #{seq2seq_forward_pallas.38} parent=0 // pred_region
    %v376 = vld [vmem:[%s3] sm:$0xff]
    %v377 = vld [vmem:[%s3 + $0x8] sm:$0xff]
    %v378 = vld [vmem:[%s3 + $0x10] sm:$0xff]
    %v379 = vld [vmem:[%s3 + $0x18] sm:$0xff]
    %v380 = vld [vmem:[%s3 + $0x20] sm:$0xff]
    %v381 = vld [vmem:[%s3 + $0x28] sm:$0xff]
    %v382 = vld [vmem:[%s3 + $0x30] sm:$0xff]
    %v383 = vld [vmem:[%s3 + $0x38] sm:$0xff]
    %v384 = vld [vmem:[%s3 + $0x40] sm:$0xff]
    %v385 = vld [vmem:[%s3 + $0x48] sm:$0xff]
    %v386 = vld [vmem:[%s3 + $0x50] sm:$0xff]
    %v387 = vld [vmem:[%s3 + $0x58] sm:$0xff]
    %v388 = vld [vmem:[%s3 + $0x60] sm:$0xff]
    %v389 = vld [vmem:[%s3 + $0x68] sm:$0xff]
    %v390 = vld [vmem:[%s3 + $0x70] sm:$0xff]
    %v391 = vld [vmem:[%s3 + $0x78] sm:$0xff]
    %v392 = vld [vmem:[%s3 + $0x80] sm:$0xff]
    %v393 = vld [vmem:[%s3 + $0x88] sm:$0xff]
    %v394 = vld [vmem:[%s3 + $0x90] sm:$0xff]
    %v395 = vld [vmem:[%s3 + $0x98] sm:$0xff]
    %v396 = vld [vmem:[%s3 + $0xa0] sm:$0xff]
    %v397 = vld [vmem:[%s3 + $0xa8] sm:$0xff]
    %v398 = vld [vmem:[%s3 + $0xb0] sm:$0xff]
    %v399 = vld [vmem:[%s3 + $0xb8] sm:$0xff]
    %v400 = vld [vmem:[%s2] sm:$0x7]
    %v402 = vperm.slane %v400, 0
    %v403 = vperm.slane %v400, 1
    %v404 = vperm.slane %v400, 2
    %v408 = vadd.f32 %v376, %v402
    %v409 = vadd.f32 %v377, %v403
    %v410 = vadd.f32 %v378, %v404
    %v411 = vadd.f32 %v379, %v402
    %v412 = vadd.f32 %v380, %v403
    %v413 = vadd.f32 %v381, %v404
    %v414 = vadd.f32 %v382, %v402
    %v415 = vadd.f32 %v383, %v403
    %v416 = vadd.f32 %v384, %v404
    %v417 = vadd.f32 %v385, %v402
    %v418 = vadd.f32 %v386, %v403
    %v419 = vadd.f32 %v387, %v404
    %v420 = vadd.f32 %v388, %v402
    %v421 = vadd.f32 %v389, %v403
    %v422 = vadd.f32 %v390, %v404
    %v423 = vadd.f32 %v391, %v402
    %v424 = vadd.f32 %v392, %v403
    %v425 = vadd.f32 %v393, %v404
    %v426 = vadd.f32 %v394, %v402
    %v427 = vadd.f32 %v395, %v403
    %v428 = vadd.f32 %v396, %v404
    %v429 = vadd.f32 %v397, %v402
    %v430 = vadd.f32 %v398, %v403
    %v431 = vadd.f32 %v399, %v404
    %432 = vst [vmem:[%s3] sm:$0xff] %v408
    %433 = vst [vmem:[%s3 + $0x8] sm:$0xff] %v409
    %434 = vst [vmem:[%s3 + $0x10] sm:$0xff] %v410
    %435 = vst [vmem:[%s3 + $0x18] sm:$0xff] %v411
    %436 = vst [vmem:[%s3 + $0x20] sm:$0xff] %v412
    %437 = vst [vmem:[%s3 + $0x28] sm:$0xff] %v413
    %438 = vst [vmem:[%s3 + $0x30] sm:$0xff] %v414
    %439 = vst [vmem:[%s3 + $0x38] sm:$0xff] %v415
    %440 = vst [vmem:[%s3 + $0x40] sm:$0xff] %v416
    %441 = vst [vmem:[%s3 + $0x48] sm:$0xff] %v417
    %442 = vst [vmem:[%s3 + $0x50] sm:$0xff] %v418
    %443 = vst [vmem:[%s3 + $0x58] sm:$0xff] %v419
    %444 = vst [vmem:[%s3 + $0x60] sm:$0xff] %v420
    %445 = vst [vmem:[%s3 + $0x68] sm:$0xff] %v421
    %446 = vst [vmem:[%s3 + $0x70] sm:$0xff] %v422
    %447 = vst [vmem:[%s3 + $0x78] sm:$0xff] %v423
    %448 = vst [vmem:[%s3 + $0x80] sm:$0xff] %v424
    %449 = vst [vmem:[%s3 + $0x88] sm:$0xff] %v425
    %450 = vst [vmem:[%s3 + $0x90] sm:$0xff] %v426
    %451 = vst [vmem:[%s3 + $0x98] sm:$0xff] %v427
    %452 = vst [vmem:[%s3 + $0xa0] sm:$0xff] %v428
    %453 = vst [vmem:[%s3 + $0xa8] sm:$0xff] %v429
    %454 = vst [vmem:[%s3 + $0xb0] sm:$0xff] %v430
    %455 = vst [vmem:[%s3 + $0xb8] sm:$0xff] %v431
  $region21: #{seq2seq_forward_pallas.38} parent=0 // pred_fallthru
    _
  // Predicated region
  $region22: #{seq2seq_forward_pallas.38} parent=0 // pred_check
    _
  $region23: #{seq2seq_forward_pallas.38} parent=0 // pred_check_branch
    %457 = sbr.rel (0) target = $region25
  $region24: #{seq2seq_forward_pallas.38} parent=0 // pred_region
    _
  $region25: #{seq2seq_forward_pallas.38} parent=0 // pred_fallthru
    _
  // Predicated region
  $region26: #{seq2seq_forward_pallas.38} parent=0 // pred_check
    _
  $region27: #{seq2seq_forward_pallas.38} parent=0 // pred_check_branch
    %459 = sbr.rel (0) target = $region29
  $region28: #{seq2seq_forward_pallas.38} parent=0 // pred_region
    _
  $region29: #{seq2seq_forward_pallas.38} parent=0 // pred_fallthru
    _

// kernel: seq2seq_forward_pallas.47
$region0: #{seq2seq_forward_pallas.47}
  #allocation0 [shape = 'u32[]', space=smem, size = 0x4, offset = 0x4, fixed_abs, tag = 'smem constant byte address 0x4 - core index']
  #allocation1 [shape = 'u32[72,128]{1,0:T(1,128)}', space=vmem, size = 0x9000, scoped, tag = 'internal scratch']
  %s0 = inlined_call_operand.vmem [shape: f32[64,128], index: 0, kind: input, shape index: {}]
  %s1 = inlined_call_operand.vmem [shape: bf16[128,256], index: 1, kind: input, shape index: {}]
  %s2 = inlined_call_operand.vmem [shape: f32[1,256], index: 2, kind: input, shape index: {}]
  %s3 = inlined_call_operand.vmem [shape: f32[64,256], index: 3, kind: output, shape index: {}]
  %s4 = sld [smem:[#allocation0]]
  $region30: #{seq2seq_forward_pallas.47} parent=0
    _
  %s6 = ssub.s32 1, %s4
  %s7 = scalar_select 0, %s6, %s4
  // Predicated region
  $region2: #{seq2seq_forward_pallas.47} parent=0 // pred_check
    _
  $region3: #{seq2seq_forward_pallas.47} parent=0 // pred_check_branch
    %9 = sbr.rel (0) target = $region5
  $region4: #{seq2seq_forward_pallas.47} parent=0 // pred_region
    _
  $region5: #{seq2seq_forward_pallas.47} parent=0 // pred_fallthru
    _
  // Predicated region
  $region6: #{seq2seq_forward_pallas.47} parent=0 // pred_check
    _
  $region7: #{seq2seq_forward_pallas.47} parent=0 // pred_check_branch
    %11 = sbr.rel (0) target = $region9
  $region8: #{seq2seq_forward_pallas.47} parent=0 // pred_region
    _
  $region9: #{seq2seq_forward_pallas.47} parent=0 // pred_fallthru
    _
  // Predicated region
  $region10: #{seq2seq_forward_pallas.47} parent=0 // pred_check
    _
  $region11: #{seq2seq_forward_pallas.47} parent=0 // pred_check_branch
    %13 = sbr.rel (0) target = $region13
  $region12: #{seq2seq_forward_pallas.47} parent=0 // pred_region
    _
  $region13: #{seq2seq_forward_pallas.47} parent=0 // pred_fallthru
    _
  %p14 = scmp.eq.s32.totalorder 0, 0
  // Predicated region
  $region14: #{seq2seq_forward_pallas.47} parent=0 // pred_check
    %p15 = pneg %p14
  $region15: #{seq2seq_forward_pallas.47} parent=0 // pred_check_branch
    %17 = sbr.rel (%p15) target = $region17
  $region16: #{seq2seq_forward_pallas.47} parent=0 // pred_region
    %18 = vst [vmem:[%s3] sm:$0xff] 0.0
    %19 = vst [vmem:[%s3 + $0x8] sm:$0xff] 0.0
    %20 = vst [vmem:[%s3 + $0x10] sm:$0xff] 0.0
    %21 = vst [vmem:[%s3 + $0x18] sm:$0xff] 0.0
    %22 = vst [vmem:[%s3 + $0x20] sm:$0xff] 0.0
    %23 = vst [vmem:[%s3 + $0x28] sm:$0xff] 0.0
    %24 = vst [vmem:[%s3 + $0x30] sm:$0xff] 0.0
    %25 = vst [vmem:[%s3 + $0x38] sm:$0xff] 0.0
    %26 = vst [vmem:[%s3 + $0x40] sm:$0xff] 0.0
    %27 = vst [vmem:[%s3 + $0x48] sm:$0xff] 0.0
    %28 = vst [vmem:[%s3 + $0x50] sm:$0xff] 0.0
    %29 = vst [vmem:[%s3 + $0x58] sm:$0xff] 0.0
    %30 = vst [vmem:[%s3 + $0x60] sm:$0xff] 0.0
    %31 = vst [vmem:[%s3 + $0x68] sm:$0xff] 0.0
    %32 = vst [vmem:[%s3 + $0x70] sm:$0xff] 0.0
    %33 = vst [vmem:[%s3 + $0x78] sm:$0xff] 0.0
  $region17: #{seq2seq_forward_pallas.47} parent=0 // pred_fallthru
    _
  %v34 = vld [vmem:[%s3] sm:$0xff]
  %v35 = vld [vmem:[%s3 + $0x8] sm:$0xff]
  %v36 = vld [vmem:[%s3 + $0x10] sm:$0xff]
  %v37 = vld [vmem:[%s3 + $0x18] sm:$0xff]
  %v38 = vld [vmem:[%s3 + $0x20] sm:$0xff]
  %v39 = vld [vmem:[%s3 + $0x28] sm:$0xff]
  %v40 = vld [vmem:[%s3 + $0x30] sm:$0xff]
  %v41 = vld [vmem:[%s3 + $0x38] sm:$0xff]
  %v42 = vld [vmem:[%s3 + $0x40] sm:$0xff]
  %v43 = vld [vmem:[%s3 + $0x48] sm:$0xff]
  %v44 = vld [vmem:[%s3 + $0x50] sm:$0xff]
  %v45 = vld [vmem:[%s3 + $0x58] sm:$0xff]
  %v46 = vld [vmem:[%s3 + $0x60] sm:$0xff]
  %v47 = vld [vmem:[%s3 + $0x68] sm:$0xff]
  %v48 = vld [vmem:[%s3 + $0x70] sm:$0xff]
  %v49 = vld [vmem:[%s3 + $0x78] sm:$0xff]
  %v50 = vld [vmem:[%s0] sm:$0xff]
  %v51 = vld [vmem:[%s0 + $0x8] sm:$0xff]
  %v52 = vld [vmem:[%s0 + $0x10] sm:$0xff]
  %v53 = vld [vmem:[%s0 + $0x18] sm:$0xff]
  %v54 = vld [vmem:[%s0 + $0x20] sm:$0xff]
  %v55 = vld [vmem:[%s0 + $0x28] sm:$0xff]
  %v56 = vld [vmem:[%s0 + $0x30] sm:$0xff]
  %v57 = vld [vmem:[%s0 + $0x38] sm:$0xff]
  %v58 = vpack.c.bf16 %v51, %v50
  %v59 = vpack.c.bf16 %v53, %v52
  %v60 = vpack.c.bf16 %v55, %v54
  %v61 = vpack.c.bf16 %v57, %v56
  %v62 = vld [vmem:[%s1] sm:$0xff]
  %v63 = vld [vmem:[%s1 + $0x8] sm:$0xff]
  %v64 = vld [vmem:[%s1 + $0x10] sm:$0xff]
  %v65 = vld [vmem:[%s1 + $0x18] sm:$0xff]
  %v66 = vld [vmem:[%s1 + $0x20] sm:$0xff]
  %v67 = vld [vmem:[%s1 + $0x28] sm:$0xff]
  %v68 = vld [vmem:[%s1 + $0x30] sm:$0xff]
  %v69 = vld [vmem:[%s1 + $0x38] sm:$0xff]
  %v70 = vld [vmem:[%s1 + $0x40] sm:$0xff]
  %v71 = vld [vmem:[%s1 + $0x48] sm:$0xff]
  %v72 = vld [vmem:[%s1 + $0x50] sm:$0xff]
  %v73 = vld [vmem:[%s1 + $0x58] sm:$0xff]
  %v74 = vld [vmem:[%s1 + $0x60] sm:$0xff]
  %v75 = vld [vmem:[%s1 + $0x68] sm:$0xff]
  %v76 = vld [vmem:[%s1 + $0x70] sm:$0xff]
  %v77 = vld [vmem:[%s1 + $0x78] sm:$0xff]
  %v94 = vunpack.c.l.b16 %v62
  %v95 = vunpack.c.h.b16 %v62
  %v96 = vunpack.c.l.b16 %v63
  %v97 = vunpack.c.h.b16 %v63
  %v98 = vunpack.c.l.b16 %v64
  %v99 = vunpack.c.h.b16 %v64
  %v100 = vunpack.c.l.b16 %v65
  %v101 = vunpack.c.h.b16 %v65
  %v102 = vunpack.c.l.b16 %v66
  %v103 = vunpack.c.h.b16 %v66
  %v104 = vunpack.c.l.b16 %v67
  %v105 = vunpack.c.h.b16 %v67
  %v106 = vunpack.c.l.b16 %v68
  %v107 = vunpack.c.h.b16 %v68
  %v108 = vunpack.c.l.b16 %v69
  %v109 = vunpack.c.h.b16 %v69
  %v110 = vunpack.c.l.b16 %v70
  %v111 = vunpack.c.h.b16 %v70
  %v112 = vunpack.c.l.b16 %v71
  %v113 = vunpack.c.h.b16 %v71
  %v114 = vunpack.c.l.b16 %v72
  %v115 = vunpack.c.h.b16 %v72
  %v116 = vunpack.c.l.b16 %v73
  %v117 = vunpack.c.h.b16 %v73
  %v118 = vunpack.c.l.b16 %v74
  %v119 = vunpack.c.h.b16 %v74
  %v120 = vunpack.c.l.b16 %v75
  %v121 = vunpack.c.h.b16 %v75
  %v122 = vunpack.c.l.b16 %v76
  %v123 = vunpack.c.h.b16 %v76
  %v124 = vunpack.c.l.b16 %v77
  %v125 = vunpack.c.h.b16 %v77
  %v126 = vpack.c.b16 %v96, %v94
  %v127 = vpack.c.b16 %v97, %v95
  %v128 = vpack.c.b16 %v100, %v98
  %v129 = vpack.c.b16 %v101, %v99
  %v130 = vpack.c.b16 %v104, %v102
  %v131 = vpack.c.b16 %v105, %v103
  %v132 = vpack.c.b16 %v108, %v106
  %v133 = vpack.c.b16 %v109, %v107
  %v134 = vpack.c.b16 %v112, %v110
  %v135 = vpack.c.b16 %v113, %v111
  %v136 = vpack.c.b16 %v116, %v114
  %v137 = vpack.c.b16 %v117, %v115
  %v138 = vpack.c.b16 %v120, %v118
  %v139 = vpack.c.b16 %v121, %v119
  %v140 = vpack.c.b16 %v124, %v122
  %v141 = vpack.c.b16 %v125, %v123
  %158 = vmatpush.bf16.msra.mxu0 %v140
  %159 = vmatpush.bf16.msra.mxu0 %v138
  %160 = vmatpush.bf16.msra.mxu0 %v136
  %161 = vmatpush.bf16.msra.mxu0 %v134
  %162 = vmatpush.bf16.msra.mxu0 %v132
  %163 = vmatpush.bf16.msra.mxu0 %v130
  %164 = vmatpush.bf16.msra.mxu0 %v128
  %165 = vmatpush.bf16.msra.mxu0 %v126
  %166 = vmatmul.bf16.gmra.mxu0 %v58
  %v167 = vpop.f32.mrf.mxu0
  %v168 = vadd.f32 0.0, %v167
  %v169 = vpop.f32.mrf.mxu0
  %v170 = vadd.f32 0.0, %v169
  %171 = vmatmul.bf16.gmra.mxu0 %v59
  %v172 = vpop.f32.mrf.mxu0
  %v173 = vadd.f32 0.0, %v172
  %v174 = vpop.f32.mrf.mxu0
  %v175 = vadd.f32 0.0, %v174
  %176 = vmatmul.bf16.gmra.mxu0 %v60
  %v177 = vpop.f32.mrf.mxu0
  %v178 = vadd.f32 0.0, %v177
  %v179 = vpop.f32.mrf.mxu0
  %v180 = vadd.f32 0.0, %v179
  %181 = vmatmul.bf16.gmra.mxu0 %v61
  %v182 = vpop.f32.mrf.mxu0
  %v183 = vadd.f32 0.0, %v182
  %v184 = vpop.f32.mrf.mxu0
  %v185 = vadd.f32 0.0, %v184
  %186 = vdwg.mxu0
  %187 = vmatpush.bf16.msra.mxu0 %v141
  %188 = vmatpush.bf16.msra.mxu0 %v139
  %189 = vmatpush.bf16.msra.mxu0 %v137
  %190 = vmatpush.bf16.msra.mxu0 %v135
  %191 = vmatpush.bf16.msra.mxu0 %v133
  %192 = vmatpush.bf16.msra.mxu0 %v131
  %193 = vmatpush.bf16.msra.mxu0 %v129
  %194 = vmatpush.bf16.msra.mxu0 %v127
  %195 = vmatmul.bf16.gmra.mxu0 %v58
  %v196 = vpop.f32.mrf.mxu0
  %v197 = vadd.f32 0.0, %v196
  %v198 = vpop.f32.mrf.mxu0
  %v199 = vadd.f32 0.0, %v198
  %200 = vmatmul.bf16.gmra.mxu0 %v59
  %v201 = vpop.f32.mrf.mxu0
  %v202 = vadd.f32 0.0, %v201
  %v203 = vpop.f32.mrf.mxu0
  %v204 = vadd.f32 0.0, %v203
  %205 = vmatmul.bf16.gmra.mxu0 %v60
  %v206 = vpop.f32.mrf.mxu0
  %v207 = vadd.f32 0.0, %v206
  %v208 = vpop.f32.mrf.mxu0
  %v209 = vadd.f32 0.0, %v208
  %210 = vmatmul.bf16.gmra.mxu0 %v61
  %v211 = vpop.f32.mrf.mxu0
  %v212 = vadd.f32 0.0, %v211
  %v213 = vpop.f32.mrf.mxu0
  %v214 = vadd.f32 0.0, %v213
  %215 = vdwg.mxu0
  %v216 = vadd.f32 %v34, %v168
  %v217 = vadd.f32 %v35, %v197
  %v218 = vadd.f32 %v36, %v170
  %v219 = vadd.f32 %v37, %v199
  %v220 = vadd.f32 %v38, %v173
  %v221 = vadd.f32 %v39, %v202
  %v222 = vadd.f32 %v40, %v175
  %v223 = vadd.f32 %v41, %v204
  %v224 = vadd.f32 %v42, %v178
  %v225 = vadd.f32 %v43, %v207
  %v226 = vadd.f32 %v44, %v180
  %v227 = vadd.f32 %v45, %v209
  %v228 = vadd.f32 %v46, %v183
  %v229 = vadd.f32 %v47, %v212
  %v230 = vadd.f32 %v48, %v185
  %v231 = vadd.f32 %v49, %v214
  %232 = vst [vmem:[%s3] sm:$0xff] %v216
  %233 = vst [vmem:[%s3 + $0x8] sm:$0xff] %v217
  %234 = vst [vmem:[%s3 + $0x10] sm:$0xff] %v218
  %235 = vst [vmem:[%s3 + $0x18] sm:$0xff] %v219
  %236 = vst [vmem:[%s3 + $0x20] sm:$0xff] %v220
  %237 = vst [vmem:[%s3 + $0x28] sm:$0xff] %v221
  %238 = vst [vmem:[%s3 + $0x30] sm:$0xff] %v222
  %239 = vst [vmem:[%s3 + $0x38] sm:$0xff] %v223
  %240 = vst [vmem:[%s3 + $0x40] sm:$0xff] %v224
  %241 = vst [vmem:[%s3 + $0x48] sm:$0xff] %v225
  %242 = vst [vmem:[%s3 + $0x50] sm:$0xff] %v226
  %243 = vst [vmem:[%s3 + $0x58] sm:$0xff] %v227
  %244 = vst [vmem:[%s3 + $0x60] sm:$0xff] %v228
  %245 = vst [vmem:[%s3 + $0x68] sm:$0xff] %v229
  %246 = vst [vmem:[%s3 + $0x70] sm:$0xff] %v230
  %247 = vst [vmem:[%s3 + $0x78] sm:$0xff] %v231
  // Predicated region
  $region18: #{seq2seq_forward_pallas.47} parent=0 // pred_check
    %p248 = pneg %p14
  $region19: #{seq2seq_forward_pallas.47} parent=0 // pred_check_branch
    %250 = sbr.rel (%p248) target = $region21
  $region20: #{seq2seq_forward_pallas.47} parent=0 // pred_region
    %v251 = vld [vmem:[%s3] sm:$0xff]
    %v252 = vld [vmem:[%s3 + $0x8] sm:$0xff]
    %v253 = vld [vmem:[%s3 + $0x10] sm:$0xff]
    %v254 = vld [vmem:[%s3 + $0x18] sm:$0xff]
    %v255 = vld [vmem:[%s3 + $0x20] sm:$0xff]
    %v256 = vld [vmem:[%s3 + $0x28] sm:$0xff]
    %v257 = vld [vmem:[%s3 + $0x30] sm:$0xff]
    %v258 = vld [vmem:[%s3 + $0x38] sm:$0xff]
    %v259 = vld [vmem:[%s3 + $0x40] sm:$0xff]
    %v260 = vld [vmem:[%s3 + $0x48] sm:$0xff]
    %v261 = vld [vmem:[%s3 + $0x50] sm:$0xff]
    %v262 = vld [vmem:[%s3 + $0x58] sm:$0xff]
    %v263 = vld [vmem:[%s3 + $0x60] sm:$0xff]
    %v264 = vld [vmem:[%s3 + $0x68] sm:$0xff]
    %v265 = vld [vmem:[%s3 + $0x70] sm:$0xff]
    %v266 = vld [vmem:[%s3 + $0x78] sm:$0xff]
    %v267 = vld [vmem:[%s2] sm:$0x3]
    %v269 = vperm.slane %v267, 0
    %v270 = vperm.slane %v267, 1
    %v273 = vadd.f32 %v251, %v269
    %v274 = vadd.f32 %v252, %v270
    %v275 = vadd.f32 %v253, %v269
    %v276 = vadd.f32 %v254, %v270
    %v277 = vadd.f32 %v255, %v269
    %v278 = vadd.f32 %v256, %v270
    %v279 = vadd.f32 %v257, %v269
    %v280 = vadd.f32 %v258, %v270
    %v281 = vadd.f32 %v259, %v269
    %v282 = vadd.f32 %v260, %v270
    %v283 = vadd.f32 %v261, %v269
    %v284 = vadd.f32 %v262, %v270
    %v285 = vadd.f32 %v263, %v269
    %v286 = vadd.f32 %v264, %v270
    %v287 = vadd.f32 %v265, %v269
    %v288 = vadd.f32 %v266, %v270
    %289 = vst [vmem:[%s3] sm:$0xff] %v273
    %290 = vst [vmem:[%s3 + $0x8] sm:$0xff] %v274
    %291 = vst [vmem:[%s3 + $0x10] sm:$0xff] %v275
    %292 = vst [vmem:[%s3 + $0x18] sm:$0xff] %v276
    %293 = vst [vmem:[%s3 + $0x20] sm:$0xff] %v277
    %294 = vst [vmem:[%s3 + $0x28] sm:$0xff] %v278
    %295 = vst [vmem:[%s3 + $0x30] sm:$0xff] %v279
    %296 = vst [vmem:[%s3 + $0x38] sm:$0xff] %v280
    %297 = vst [vmem:[%s3 + $0x40] sm:$0xff] %v281
    %298 = vst [vmem:[%s3 + $0x48] sm:$0xff] %v282
    %299 = vst [vmem:[%s3 + $0x50] sm:$0xff] %v283
    %300 = vst [vmem:[%s3 + $0x58] sm:$0xff] %v284
    %301 = vst [vmem:[%s3 + $0x60] sm:$0xff] %v285
    %302 = vst [vmem:[%s3 + $0x68] sm:$0xff] %v286
    %303 = vst [vmem:[%s3 + $0x70] sm:$0xff] %v287
    %304 = vst [vmem:[%s3 + $0x78] sm:$0xff] %v288
  $region21: #{seq2seq_forward_pallas.47} parent=0 // pred_fallthru
    _
  // Predicated region
  $region22: #{seq2seq_forward_pallas.47} parent=0 // pred_check
    _
  $region23: #{seq2seq_forward_pallas.47} parent=0 // pred_check_branch
    %306 = sbr.rel (0) target = $region25
  $region24: #{seq2seq_forward_pallas.47} parent=0 // pred_region
    _
  $region25: #{seq2seq_forward_pallas.47} parent=0 // pred_fallthru
    _
  // Predicated region
  $region26: #{seq2seq_forward_pallas.47} parent=0 // pred_check
    _
  $region27: #{seq2seq_forward_pallas.47} parent=0 // pred_check_branch
    %308 = sbr.rel (0) target = $region29
  $region28: #{seq2seq_forward_pallas.47} parent=0 // pred_region
    _
  $region29: #{seq2seq_forward_pallas.47} parent=0 // pred_fallthru
    _

// kernel: seq2seq_forward_pallas.46
$region0: #{seq2seq_forward_pallas.46}
  #allocation0 [shape = 'u32[]', space=smem, size = 0x4, offset = 0x4, fixed_abs, tag = 'smem constant byte address 0x4 - core index']
  #allocation1 [shape = 'u32[72,128]{1,0:T(1,128)}', space=vmem, size = 0x9000, scoped, tag = 'internal scratch']
  %s0 = inlined_call_operand.vmem [shape: f32[64,128], index: 0, kind: input, shape index: {}]
  %s1 = inlined_call_operand.vmem [shape: bf16[128,128], index: 1, kind: input, shape index: {}]
  %s2 = inlined_call_operand.vmem [shape: f32[1,128], index: 2, kind: input, shape index: {}]
  %s3 = inlined_call_operand.vmem [shape: f32[64,128], index: 3, kind: output, shape index: {}]
  %s4 = sld [smem:[#allocation0]]
  $region30: #{seq2seq_forward_pallas.46} parent=0
    _
  %s6 = ssub.s32 1, %s4
  %s7 = scalar_select 0, %s6, %s4
  // Predicated region
  $region2: #{seq2seq_forward_pallas.46} parent=0 // pred_check
    _
  $region3: #{seq2seq_forward_pallas.46} parent=0 // pred_check_branch
    %9 = sbr.rel (0) target = $region5
  $region4: #{seq2seq_forward_pallas.46} parent=0 // pred_region
    _
  $region5: #{seq2seq_forward_pallas.46} parent=0 // pred_fallthru
    _
  // Predicated region
  $region6: #{seq2seq_forward_pallas.46} parent=0 // pred_check
    _
  $region7: #{seq2seq_forward_pallas.46} parent=0 // pred_check_branch
    %11 = sbr.rel (0) target = $region9
  $region8: #{seq2seq_forward_pallas.46} parent=0 // pred_region
    _
  $region9: #{seq2seq_forward_pallas.46} parent=0 // pred_fallthru
    _
  // Predicated region
  $region10: #{seq2seq_forward_pallas.46} parent=0 // pred_check
    _
  $region11: #{seq2seq_forward_pallas.46} parent=0 // pred_check_branch
    %13 = sbr.rel (0) target = $region13
  $region12: #{seq2seq_forward_pallas.46} parent=0 // pred_region
    _
  $region13: #{seq2seq_forward_pallas.46} parent=0 // pred_fallthru
    _
  %p14 = scmp.eq.s32.totalorder 0, 0
  // Predicated region
  $region14: #{seq2seq_forward_pallas.46} parent=0 // pred_check
    %p15 = pneg %p14
  $region15: #{seq2seq_forward_pallas.46} parent=0 // pred_check_branch
    %17 = sbr.rel (%p15) target = $region17
  $region16: #{seq2seq_forward_pallas.46} parent=0 // pred_region
    %18 = vst [vmem:[%s3] sm:$0xff] 0.0
    %19 = vst [vmem:[%s3 + $0x8] sm:$0xff] 0.0
    %20 = vst [vmem:[%s3 + $0x10] sm:$0xff] 0.0
    %21 = vst [vmem:[%s3 + $0x18] sm:$0xff] 0.0
    %22 = vst [vmem:[%s3 + $0x20] sm:$0xff] 0.0
    %23 = vst [vmem:[%s3 + $0x28] sm:$0xff] 0.0
    %24 = vst [vmem:[%s3 + $0x30] sm:$0xff] 0.0
    %25 = vst [vmem:[%s3 + $0x38] sm:$0xff] 0.0
  $region17: #{seq2seq_forward_pallas.46} parent=0 // pred_fallthru
    _
  %v26 = vld [vmem:[%s3] sm:$0xff]
  %v27 = vld [vmem:[%s3 + $0x8] sm:$0xff]
  %v28 = vld [vmem:[%s3 + $0x10] sm:$0xff]
  %v29 = vld [vmem:[%s3 + $0x18] sm:$0xff]
  %v30 = vld [vmem:[%s3 + $0x20] sm:$0xff]
  %v31 = vld [vmem:[%s3 + $0x28] sm:$0xff]
  %v32 = vld [vmem:[%s3 + $0x30] sm:$0xff]
  %v33 = vld [vmem:[%s3 + $0x38] sm:$0xff]
  %v34 = vld [vmem:[%s0] sm:$0xff]
  %v35 = vld [vmem:[%s0 + $0x8] sm:$0xff]
  %v36 = vld [vmem:[%s0 + $0x10] sm:$0xff]
  %v37 = vld [vmem:[%s0 + $0x18] sm:$0xff]
  %v38 = vld [vmem:[%s0 + $0x20] sm:$0xff]
  %v39 = vld [vmem:[%s0 + $0x28] sm:$0xff]
  %v40 = vld [vmem:[%s0 + $0x30] sm:$0xff]
  %v41 = vld [vmem:[%s0 + $0x38] sm:$0xff]
  %v42 = vpack.c.bf16 %v35, %v34
  %v43 = vpack.c.bf16 %v37, %v36
  %v44 = vpack.c.bf16 %v39, %v38
  %v45 = vpack.c.bf16 %v41, %v40
  %v46 = vld [vmem:[%s1] sm:$0xf]
  %v47 = vld [vmem:[%s1 + $0x4] sm:$0xf]
  %v48 = vld [vmem:[%s1 + $0x8] sm:$0xf]
  %v49 = vld [vmem:[%s1 + $0xc] sm:$0xf]
  %v50 = vld [vmem:[%s1 + $0x10] sm:$0xf]
  %v51 = vld [vmem:[%s1 + $0x14] sm:$0xf]
  %v52 = vld [vmem:[%s1 + $0x18] sm:$0xf]
  %v53 = vld [vmem:[%s1 + $0x1c] sm:$0xf]
  %v54 = vld [vmem:[%s1 + $0x20] sm:$0xf]
  %v55 = vld [vmem:[%s1 + $0x24] sm:$0xf]
  %v56 = vld [vmem:[%s1 + $0x28] sm:$0xf]
  %v57 = vld [vmem:[%s1 + $0x2c] sm:$0xf]
  %v58 = vld [vmem:[%s1 + $0x30] sm:$0xf]
  %v59 = vld [vmem:[%s1 + $0x34] sm:$0xf]
  %v60 = vld [vmem:[%s1 + $0x38] sm:$0xf]
  %v61 = vld [vmem:[%s1 + $0x3c] sm:$0xf]
  %v78 = vunpack.c.l.b16 %v46
  %v79 = vunpack.c.l.b16 %v47
  %v80 = vunpack.c.l.b16 %v48
  %v81 = vunpack.c.l.b16 %v49
  %v82 = vunpack.c.l.b16 %v50
  %v83 = vunpack.c.l.b16 %v51
  %v84 = vunpack.c.l.b16 %v52
  %v85 = vunpack.c.l.b16 %v53
  %v86 = vunpack.c.l.b16 %v54
  %v87 = vunpack.c.l.b16 %v55
  %v88 = vunpack.c.l.b16 %v56
  %v89 = vunpack.c.l.b16 %v57
  %v90 = vunpack.c.l.b16 %v58
  %v91 = vunpack.c.l.b16 %v59
  %v92 = vunpack.c.l.b16 %v60
  %v93 = vunpack.c.l.b16 %v61
  %v94 = vpack.c.b16 %v79, %v78
  %v95 = vpack.c.b16 %v81, %v80
  %v96 = vpack.c.b16 %v83, %v82
  %v97 = vpack.c.b16 %v85, %v84
  %v98 = vpack.c.b16 %v87, %v86
  %v99 = vpack.c.b16 %v89, %v88
  %v100 = vpack.c.b16 %v91, %v90
  %v101 = vpack.c.b16 %v93, %v92
  %110 = vmatpush.bf16.msra.mxu0 %v101
  %111 = vmatpush.bf16.msra.mxu0 %v100
  %112 = vmatpush.bf16.msra.mxu0 %v99
  %113 = vmatpush.bf16.msra.mxu0 %v98
  %114 = vmatpush.bf16.msra.mxu0 %v97
  %115 = vmatpush.bf16.msra.mxu0 %v96
  %116 = vmatpush.bf16.msra.mxu0 %v95
  %117 = vmatpush.bf16.msra.mxu0 %v94
  %118 = vmatmul.bf16.gmra.mxu0 %v42
  %v119 = vpop.f32.mrf.mxu0
  %v120 = vadd.f32 0.0, %v119
  %v121 = vpop.f32.mrf.mxu0
  %v122 = vadd.f32 0.0, %v121
  %123 = vmatmul.bf16.gmra.mxu0 %v43
  %v124 = vpop.f32.mrf.mxu0
  %v125 = vadd.f32 0.0, %v124
  %v126 = vpop.f32.mrf.mxu0
  %v127 = vadd.f32 0.0, %v126
  %128 = vmatmul.bf16.gmra.mxu0 %v44
  %v129 = vpop.f32.mrf.mxu0
  %v130 = vadd.f32 0.0, %v129
  %v131 = vpop.f32.mrf.mxu0
  %v132 = vadd.f32 0.0, %v131
  %133 = vmatmul.bf16.gmra.mxu0 %v45
  %v134 = vpop.f32.mrf.mxu0
  %v135 = vadd.f32 0.0, %v134
  %v136 = vpop.f32.mrf.mxu0
  %v137 = vadd.f32 0.0, %v136
  %138 = vdwg.mxu0
  %v139 = vadd.f32 %v26, %v120
  %v140 = vadd.f32 %v27, %v122
  %v141 = vadd.f32 %v28, %v125
  %v142 = vadd.f32 %v29, %v127
  %v143 = vadd.f32 %v30, %v130
  %v144 = vadd.f32 %v31, %v132
  %v145 = vadd.f32 %v32, %v135
  %v146 = vadd.f32 %v33, %v137
  %147 = vst [vmem:[%s3] sm:$0xff] %v139
  %148 = vst [vmem:[%s3 + $0x8] sm:$0xff] %v140
  %149 = vst [vmem:[%s3 + $0x10] sm:$0xff] %v141
  %150 = vst [vmem:[%s3 + $0x18] sm:$0xff] %v142
  %151 = vst [vmem:[%s3 + $0x20] sm:$0xff] %v143
  %152 = vst [vmem:[%s3 + $0x28] sm:$0xff] %v144
  %153 = vst [vmem:[%s3 + $0x30] sm:$0xff] %v145
  %154 = vst [vmem:[%s3 + $0x38] sm:$0xff] %v146
  // Predicated region
  $region18: #{seq2seq_forward_pallas.46} parent=0 // pred_check
    %p155 = pneg %p14
  $region19: #{seq2seq_forward_pallas.46} parent=0 // pred_check_branch
    %157 = sbr.rel (%p155) target = $region21
  $region20: #{seq2seq_forward_pallas.46} parent=0 // pred_region
    %v158 = vld [vmem:[%s3] sm:$0xff]
    %v159 = vld [vmem:[%s3 + $0x8] sm:$0xff]
    %v160 = vld [vmem:[%s3 + $0x10] sm:$0xff]
    %v161 = vld [vmem:[%s3 + $0x18] sm:$0xff]
    %v162 = vld [vmem:[%s3 + $0x20] sm:$0xff]
    %v163 = vld [vmem:[%s3 + $0x28] sm:$0xff]
    %v164 = vld [vmem:[%s3 + $0x30] sm:$0xff]
    %v165 = vld [vmem:[%s3 + $0x38] sm:$0xff]
    %v166 = vld [vmem:[%s2] sm:$0x1]
    %v168 = vperm.slane %v166, 0
    %v170 = vadd.f32 %v158, %v168
    %v171 = vadd.f32 %v159, %v168
    %v172 = vadd.f32 %v160, %v168
    %v173 = vadd.f32 %v161, %v168
    %v174 = vadd.f32 %v162, %v168
    %v175 = vadd.f32 %v163, %v168
    %v176 = vadd.f32 %v164, %v168
    %v177 = vadd.f32 %v165, %v168
    %178 = vst [vmem:[%s3] sm:$0xff] %v170
    %179 = vst [vmem:[%s3 + $0x8] sm:$0xff] %v171
    %180 = vst [vmem:[%s3 + $0x10] sm:$0xff] %v172
    %181 = vst [vmem:[%s3 + $0x18] sm:$0xff] %v173
    %182 = vst [vmem:[%s3 + $0x20] sm:$0xff] %v174
    %183 = vst [vmem:[%s3 + $0x28] sm:$0xff] %v175
    %184 = vst [vmem:[%s3 + $0x30] sm:$0xff] %v176
    %185 = vst [vmem:[%s3 + $0x38] sm:$0xff] %v177
  $region21: #{seq2seq_forward_pallas.46} parent=0 // pred_fallthru
    _
  // Predicated region
  $region22: #{seq2seq_forward_pallas.46} parent=0 // pred_check
    _
  $region23: #{seq2seq_forward_pallas.46} parent=0 // pred_check_branch
    %187 = sbr.rel (0) target = $region25
  $region24: #{seq2seq_forward_pallas.46} parent=0 // pred_region
    _
  $region25: #{seq2seq_forward_pallas.46} parent=0 // pred_fallthru
    _
  // Predicated region
  $region26: #{seq2seq_forward_pallas.46} parent=0 // pred_check
    _
  $region27: #{seq2seq_forward_pallas.46} parent=0 // pred_check_branch
    %189 = sbr.rel (0) target = $region29
  $region28: #{seq2seq_forward_pallas.46} parent=0 // pred_region
    _
  $region29: #{seq2seq_forward_pallas.46} parent=0 // pred_fallthru
    _

// kernel: seq2seq_forward_pallas.32
$region0: #{seq2seq_forward_pallas.32}
  #allocation0 [shape = 'u32[]', space=smem, size = 0x4, offset = 0x4, fixed_abs, tag = 'smem constant byte address 0x4 - core index']
  #allocation1 [shape = 'u32[72,128]{1,0:T(1,128)}', space=vmem, size = 0x9000, scoped, tag = 'internal scratch']
  %s0 = inlined_call_operand.vmem [shape: s32[64,1], index: 0, kind: input, shape index: {}]
  %s1 = inlined_call_operand.vmem [shape: f32[256,128], index: 1, kind: input, shape index: {}]
  %s2 = inlined_call_operand.vmem [shape: f32[64,128], index: 2, kind: input, shape index: {}]
  %s3 = inlined_call_operand.vmem [shape: f32[64,128], index: 3, kind: output, shape index: {}]
  %s4 = sld [smem:[#allocation0]]
  $region30: #{seq2seq_forward_pallas.32} parent=0
    _
  %s6 = ssub.s32 1, %s4
  %s7 = scalar_select 0, %s6, %s4
  // Predicated region
  $region2: #{seq2seq_forward_pallas.32} parent=0 // pred_check
    _
  $region3: #{seq2seq_forward_pallas.32} parent=0 // pred_check_branch
    %9 = sbr.rel (0) target = $region5
  $region4: #{seq2seq_forward_pallas.32} parent=0 // pred_region
    _
  $region5: #{seq2seq_forward_pallas.32} parent=0 // pred_fallthru
    _
  // Predicated region
  $region6: #{seq2seq_forward_pallas.32} parent=0 // pred_check
    _
  $region7: #{seq2seq_forward_pallas.32} parent=0 // pred_check_branch
    %11 = sbr.rel (0) target = $region9
  $region8: #{seq2seq_forward_pallas.32} parent=0 // pred_region
    _
  $region9: #{seq2seq_forward_pallas.32} parent=0 // pred_fallthru
    _
  // Predicated region
  $region10: #{seq2seq_forward_pallas.32} parent=0 // pred_check
    _
  $region11: #{seq2seq_forward_pallas.32} parent=0 // pred_check_branch
    %13 = sbr.rel (0) target = $region13
  $region12: #{seq2seq_forward_pallas.32} parent=0 // pred_region
    _
  $region13: #{seq2seq_forward_pallas.32} parent=0 // pred_fallthru
    _
  %p14 = scmp.eq.s32.totalorder 0, 0
  // Predicated region
  $region14: #{seq2seq_forward_pallas.32} parent=0 // pred_check
    %p15 = pneg %p14
  $region15: #{seq2seq_forward_pallas.32} parent=0 // pred_check_branch
    %17 = sbr.rel (%p15) target = $region17
  $region16: #{seq2seq_forward_pallas.32} parent=0 // pred_region
    %18 = vst [vmem:[%s3] sm:$0xff] 0.0
    %19 = vst [vmem:[%s3 + $0x8] sm:$0xff] 0.0
    %20 = vst [vmem:[%s3 + $0x10] sm:$0xff] 0.0
    %21 = vst [vmem:[%s3 + $0x18] sm:$0xff] 0.0
    %22 = vst [vmem:[%s3 + $0x20] sm:$0xff] 0.0
    %23 = vst [vmem:[%s3 + $0x28] sm:$0xff] 0.0
    %24 = vst [vmem:[%s3 + $0x30] sm:$0xff] 0.0
    %25 = vst [vmem:[%s3 + $0x38] sm:$0xff] 0.0
  $region17: #{seq2seq_forward_pallas.32} parent=0 // pred_fallthru
    _
  %v26 = vld [vmem:[%s0] sm:$0xff]
  %v27 = vld [vmem:[%s0 + $0x8] sm:$0xff]
  %v28 = vld [vmem:[%s0 + $0x10] sm:$0xff]
  %v29 = vld [vmem:[%s0 + $0x18] sm:$0xff]
  %v30 = vld [vmem:[%s0 + $0x20] sm:$0xff]
  %v31 = vld [vmem:[%s0 + $0x28] sm:$0xff]
  %v32 = vld [vmem:[%s0 + $0x30] sm:$0xff]
  %v33 = vld [vmem:[%s0 + $0x38] sm:$0xff]
  %s34 = smul.u32 0, 256
  %v35 = vstv %s34
  %v36 = vsub.s32 %v26, %v35
  %v37 = vsub.s32 %v27, %v35
  %v38 = vsub.s32 %v28, %v35
  %v39 = vsub.s32 %v29, %v35
  %v40 = vsub.s32 %v30, %v35
  %v41 = vsub.s32 %v31, %v35
  %v42 = vsub.s32 %v32, %v35
  %v43 = vsub.s32 %v33, %v35
  %v44 = vlaneseq
  %v45 = vand.u32 %v44, 127
  %v46 = vadd.s32 %v45, 128
  %47 = vset.pattern.permute.xlu0 0
  %48 = vperm.xlu0 %47, %v36
  %v49 = vpop.permute.xlu0 %48
  %50 = vset.pattern.permute.xlu0 0
  %51 = vperm.xlu0 %50, %v37
  %v52 = vpop.permute.xlu0 %51
  %53 = vset.pattern.permute.xlu0 0
  %54 = vperm.xlu0 %53, %v38
  %v55 = vpop.permute.xlu0 %54
  %56 = vset.pattern.permute.xlu0 0
  %57 = vperm.xlu0 %56, %v39
  %v58 = vpop.permute.xlu0 %57
  %59 = vset.pattern.permute.xlu0 0
  %60 = vperm.xlu0 %59, %v40
  %v61 = vpop.permute.xlu0 %60
  %62 = vset.pattern.permute.xlu0 0
  %63 = vperm.xlu0 %62, %v41
  %v64 = vpop.permute.xlu0 %63
  %65 = vset.pattern.permute.xlu0 0
  %66 = vperm.xlu0 %65, %v42
  %v67 = vpop.permute.xlu0 %66
  %68 = vset.pattern.permute.xlu0 0
  %69 = vperm.xlu0 %68, %v43
  %v70 = vpop.permute.xlu0 %69
  %vm71 = vcmp.eq.s32.totalorder %v49, %v45
  %vm72 = vcmp.eq.s32.totalorder %v49, %v46
  %vm73 = vcmp.eq.s32.totalorder %v52, %v45
  %vm74 = vcmp.eq.s32.totalorder %v52, %v46
  %vm75 = vcmp.eq.s32.totalorder %v55, %v45
  %vm76 = vcmp.eq.s32.totalorder %v55, %v46
  %vm77 = vcmp.eq.s32.totalorder %v58, %v45
  %vm78 = vcmp.eq.s32.totalorder %v58, %v46
  %vm79 = vcmp.eq.s32.totalorder %v61, %v45
  %vm80 = vcmp.eq.s32.totalorder %v61, %v46
  %vm81 = vcmp.eq.s32.totalorder %v64, %v45
  %vm82 = vcmp.eq.s32.totalorder %v64, %v46
  %vm83 = vcmp.eq.s32.totalorder %v67, %v45
  %vm84 = vcmp.eq.s32.totalorder %v67, %v46
  %vm85 = vcmp.eq.s32.totalorder %v70, %v45
  %vm86 = vcmp.eq.s32.totalorder %v70, %v46
  %v87 = vsel %vm71, 1, 0
  %v88 = vsel %vm72, 1, 0
  %v89 = vsel %vm73, 1, 0
  %v90 = vsel %vm74, 1, 0
  %v91 = vsel %vm75, 1, 0
  %v92 = vsel %vm76, 1, 0
  %v93 = vsel %vm77, 1, 0
  %v94 = vsel %vm78, 1, 0
  %v95 = vsel %vm79, 1, 0
  %v96 = vsel %vm80, 1, 0
  %v97 = vsel %vm81, 1, 0
  %v98 = vsel %vm82, 1, 0
  %v99 = vsel %vm83, 1, 0
  %v100 = vsel %vm84, 1, 0
  %v101 = vsel %vm85, 1, 0
  %v102 = vsel %vm86, 1, 0
  %v103 = vcvt.s32.f32 %v87
  %v104 = vcvt.s32.f32 %v88
  %v105 = vcvt.s32.f32 %v89
  %v106 = vcvt.s32.f32 %v90
  %v107 = vcvt.s32.f32 %v91
  %v108 = vcvt.s32.f32 %v92
  %v109 = vcvt.s32.f32 %v93
  %v110 = vcvt.s32.f32 %v94
  %v111 = vcvt.s32.f32 %v95
  %v112 = vcvt.s32.f32 %v96
  %v113 = vcvt.s32.f32 %v97
  %v114 = vcvt.s32.f32 %v98
  %v115 = vcvt.s32.f32 %v99
  %v116 = vcvt.s32.f32 %v100
  %v117 = vcvt.s32.f32 %v101
  %v118 = vcvt.s32.f32 %v102
  %v119 = vld [vmem:[%s3] sm:$0xff]
  %v120 = vld [vmem:[%s3 + $0x8] sm:$0xff]
  %v121 = vld [vmem:[%s3 + $0x10] sm:$0xff]
  %v122 = vld [vmem:[%s3 + $0x18] sm:$0xff]
  %v123 = vld [vmem:[%s3 + $0x20] sm:$0xff]
  %v124 = vld [vmem:[%s3 + $0x28] sm:$0xff]
  %v125 = vld [vmem:[%s3 + $0x30] sm:$0xff]
  %v126 = vld [vmem:[%s3 + $0x38] sm:$0xff]
  %v127 = vld [vmem:[%s1] sm:$0xff]
  %v128 = vld [vmem:[%s1 + $0x8] sm:$0xff]
  %v129 = vld [vmem:[%s1 + $0x10] sm:$0xff]
  %v130 = vld [vmem:[%s1 + $0x18] sm:$0xff]
  %v131 = vld [vmem:[%s1 + $0x20] sm:$0xff]
  %v132 = vld [vmem:[%s1 + $0x28] sm:$0xff]
  %v133 = vld [vmem:[%s1 + $0x30] sm:$0xff]
  %v134 = vld [vmem:[%s1 + $0x38] sm:$0xff]
  %v135 = vld [vmem:[%s1 + $0x40] sm:$0xff]
  %v136 = vld [vmem:[%s1 + $0x48] sm:$0xff]
  %v137 = vld [vmem:[%s1 + $0x50] sm:$0xff]
  %v138 = vld [vmem:[%s1 + $0x58] sm:$0xff]
  %v139 = vld [vmem:[%s1 + $0x60] sm:$0xff]
  %v140 = vld [vmem:[%s1 + $0x68] sm:$0xff]
  %v141 = vld [vmem:[%s1 + $0x70] sm:$0xff]
  %v142 = vld [vmem:[%s1 + $0x78] sm:$0xff]
  %v143 = vld [vmem:[%s1 + $0x80] sm:$0xff]
  %v144 = vld [vmem:[%s1 + $0x88] sm:$0xff]
  %v145 = vld [vmem:[%s1 + $0x90] sm:$0xff]
  %v146 = vld [vmem:[%s1 + $0x98] sm:$0xff]
  %v147 = vld [vmem:[%s1 + $0xa0] sm:$0xff]
  %v148 = vld [vmem:[%s1 + $0xa8] sm:$0xff]
  %v149 = vld [vmem:[%s1 + $0xb0] sm:$0xff]
  %v150 = vld [vmem:[%s1 + $0xb8] sm:$0xff]
  %v151 = vld [vmem:[%s1 + $0xc0] sm:$0xff]
  %v152 = vld [vmem:[%s1 + $0xc8] sm:$0xff]
  %v153 = vld [vmem:[%s1 + $0xd0] sm:$0xff]
  %v154 = vld [vmem:[%s1 + $0xd8] sm:$0xff]
  %v155 = vld [vmem:[%s1 + $0xe0] sm:$0xff]
  %v156 = vld [vmem:[%s1 + $0xe8] sm:$0xff]
  %v157 = vld [vmem:[%s1 + $0xf0] sm:$0xff]
  %v158 = vld [vmem:[%s1 + $0xf8] sm:$0xff]
  %159 = vmatpush.msra.mxu0 %v142
  %160 = vmatpush.msra.mxu0 %v141
  %161 = vmatpush.msra.mxu0 %v140
  %162 = vmatpush.msra.mxu0 %v139
  %163 = vmatpush.msra.mxu0 %v138
  %164 = vmatpush.msra.mxu0 %v137
  %165 = vmatpush.msra.mxu0 %v136
  %166 = vmatpush.msra.mxu0 %v135
  %167 = vmatpush.msra.mxu0 %v134
  %168 = vmatpush.msra.mxu0 %v133
  %169 = vmatpush.msra.mxu0 %v132
  %170 = vmatpush.msra.mxu0 %v131
  %171 = vmatpush.msra.mxu0 %v130
  %172 = vmatpush.msra.mxu0 %v129
  %173 = vmatpush.msra.mxu0 %v128
  %174 = vmatpush.msra.mxu0 %v127
  %175 = vmatmul.f32.gmra.mxu0 %v103
  %v176 = vpop.f32.mrf.mxu0
  %v177 = vadd.f32 0.0, %v176
  %178 = vmatmul.f32.gmra.mxu0 %v105
  %v179 = vpop.f32.mrf.mxu0
  %v180 = vadd.f32 0.0, %v179
  %181 = vmatmul.f32.gmra.mxu0 %v107
  %v182 = vpop.f32.mrf.mxu0
  %v183 = vadd.f32 0.0, %v182
  %184 = vmatmul.f32.gmra.mxu0 %v109
  %v185 = vpop.f32.mrf.mxu0
  %v186 = vadd.f32 0.0, %v185
  %187 = vmatmul.f32.gmra.mxu0 %v111
  %v188 = vpop.f32.mrf.mxu0
  %v189 = vadd.f32 0.0, %v188
  %190 = vmatmul.f32.gmra.mxu0 %v113
  %v191 = vpop.f32.mrf.mxu0
  %v192 = vadd.f32 0.0, %v191
  %193 = vmatmul.f32.gmra.mxu0 %v115
  %v194 = vpop.f32.mrf.mxu0
  %v195 = vadd.f32 0.0, %v194
  %196 = vmatmul.f32.gmra.mxu0 %v117
  %v197 = vpop.f32.mrf.mxu0
  %v198 = vadd.f32 0.0, %v197
  %199 = vdwg.mxu0
  %200 = vmatpush.msra.mxu0 %v158
  %201 = vmatpush.msra.mxu0 %v157
  %202 = vmatpush.msra.mxu0 %v156
  %203 = vmatpush.msra.mxu0 %v155
  %204 = vmatpush.msra.mxu0 %v154
  %205 = vmatpush.msra.mxu0 %v153
  %206 = vmatpush.msra.mxu0 %v152
  %207 = vmatpush.msra.mxu0 %v151
  %208 = vmatpush.msra.mxu0 %v150
  %209 = vmatpush.msra.mxu0 %v149
  %210 = vmatpush.msra.mxu0 %v148
  %211 = vmatpush.msra.mxu0 %v147
  %212 = vmatpush.msra.mxu0 %v146
  %213 = vmatpush.msra.mxu0 %v145
  %214 = vmatpush.msra.mxu0 %v144
  %215 = vmatpush.msra.mxu0 %v143
  %216 = vmatmul.f32.gmra.mxu0 %v104
  %v217 = vpop.f32.mrf.mxu0
  %v218 = vadd.f32 %v177, %v217
  %219 = vmatmul.f32.gmra.mxu0 %v106
  %v220 = vpop.f32.mrf.mxu0
  %v221 = vadd.f32 %v180, %v220
  %222 = vmatmul.f32.gmra.mxu0 %v108
  %v223 = vpop.f32.mrf.mxu0
  %v224 = vadd.f32 %v183, %v223
  %225 = vmatmul.f32.gmra.mxu0 %v110
  %v226 = vpop.f32.mrf.mxu0
  %v227 = vadd.f32 %v186, %v226
  %228 = vmatmul.f32.gmra.mxu0 %v112
  %v229 = vpop.f32.mrf.mxu0
  %v230 = vadd.f32 %v189, %v229
  %231 = vmatmul.f32.gmra.mxu0 %v114
  %v232 = vpop.f32.mrf.mxu0
  %v233 = vadd.f32 %v192, %v232
  %234 = vmatmul.f32.gmra.mxu0 %v116
  %v235 = vpop.f32.mrf.mxu0
  %v236 = vadd.f32 %v195, %v235
  %237 = vmatmul.f32.gmra.mxu0 %v118
  %v238 = vpop.f32.mrf.mxu0
  %v239 = vadd.f32 %v198, %v238
  %240 = vdwg.mxu0
  %v241 = vadd.f32 %v119, %v218
  %v242 = vadd.f32 %v120, %v221
  %v243 = vadd.f32 %v121, %v224
  %v244 = vadd.f32 %v122, %v227
  %v245 = vadd.f32 %v123, %v230
  %v246 = vadd.f32 %v124, %v233
  %v247 = vadd.f32 %v125, %v236
  %v248 = vadd.f32 %v126, %v239
  %249 = vst [vmem:[%s3] sm:$0xff] %v241
  %250 = vst [vmem:[%s3 + $0x8] sm:$0xff] %v242
  %251 = vst [vmem:[%s3 + $0x10] sm:$0xff] %v243
  %252 = vst [vmem:[%s3 + $0x18] sm:$0xff] %v244
  %253 = vst [vmem:[%s3 + $0x20] sm:$0xff] %v245
  %254 = vst [vmem:[%s3 + $0x28] sm:$0xff] %v246
  %255 = vst [vmem:[%s3 + $0x30] sm:$0xff] %v247
  %256 = vst [vmem:[%s3 + $0x38] sm:$0xff] %v248
  // Predicated region
  $region18: #{seq2seq_forward_pallas.32} parent=0 // pred_check
    %p257 = pneg %p14
  $region19: #{seq2seq_forward_pallas.32} parent=0 // pred_check_branch
    %259 = sbr.rel (%p257) target = $region21
  $region20: #{seq2seq_forward_pallas.32} parent=0 // pred_region
    %v260 = vld [vmem:[%s3] sm:$0xff]
    %v261 = vld [vmem:[%s3 + $0x8] sm:$0xff]
    %v262 = vld [vmem:[%s3 + $0x10] sm:$0xff]
    %v263 = vld [vmem:[%s3 + $0x18] sm:$0xff]
    %v264 = vld [vmem:[%s3 + $0x20] sm:$0xff]
    %v265 = vld [vmem:[%s3 + $0x28] sm:$0xff]
    %v266 = vld [vmem:[%s3 + $0x30] sm:$0xff]
    %v267 = vld [vmem:[%s3 + $0x38] sm:$0xff]
    %v268 = vmul.f32 %v260, 11.313708
    %v269 = vmul.f32 %v261, 11.313708
    %v270 = vmul.f32 %v262, 11.313708
    %v271 = vmul.f32 %v263, 11.313708
    %v272 = vmul.f32 %v264, 11.313708
    %v273 = vmul.f32 %v265, 11.313708
    %v274 = vmul.f32 %v266, 11.313708
    %v275 = vmul.f32 %v267, 11.313708
    %v276 = vld [vmem:[%s2] sm:$0xff]
    %v277 = vld [vmem:[%s2 + $0x8] sm:$0xff]
    %v278 = vld [vmem:[%s2 + $0x10] sm:$0xff]
    %v279 = vld [vmem:[%s2 + $0x18] sm:$0xff]
    %v280 = vld [vmem:[%s2 + $0x20] sm:$0xff]
    %v281 = vld [vmem:[%s2 + $0x28] sm:$0xff]
    %v282 = vld [vmem:[%s2 + $0x30] sm:$0xff]
    %v283 = vld [vmem:[%s2 + $0x38] sm:$0xff]
    %v284 = vadd.f32 %v268, %v276
    %v285 = vadd.f32 %v269, %v277
    %v286 = vadd.f32 %v270, %v278
    %v287 = vadd.f32 %v271, %v279
    %v288 = vadd.f32 %v272, %v280
    %v289 = vadd.f32 %v273, %v281
    %v290 = vadd.f32 %v274, %v282
    %v291 = vadd.f32 %v275, %v283
    %292 = vst [vmem:[%s3] sm:$0xff] %v284
    %293 = vst [vmem:[%s3 + $0x8] sm:$0xff] %v285
    %294 = vst [vmem:[%s3 + $0x10] sm:$0xff] %v286
    %295 = vst [vmem:[%s3 + $0x18] sm:$0xff] %v287
    %296 = vst [vmem:[%s3 + $0x20] sm:$0xff] %v288
    %297 = vst [vmem:[%s3 + $0x28] sm:$0xff] %v289
    %298 = vst [vmem:[%s3 + $0x30] sm:$0xff] %v290
    %299 = vst [vmem:[%s3 + $0x38] sm:$0xff] %v291
  $region21: #{seq2seq_forward_pallas.32} parent=0 // pred_fallthru
    _
  // Predicated region
  $region22: #{seq2seq_forward_pallas.32} parent=0 // pred_check
    _
  $region23: #{seq2seq_forward_pallas.32} parent=0 // pred_check_branch
    %301 = sbr.rel (0) target = $region25
  $region24: #{seq2seq_forward_pallas.32} parent=0 // pred_region
    _
  $region25: #{seq2seq_forward_pallas.32} parent=0 // pred_fallthru
    _
  // Predicated region
  $region26: #{seq2seq_forward_pallas.32} parent=0 // pred_check
    _
  $region27: #{seq2seq_forward_pallas.32} parent=0 // pred_check_branch
    %303 = sbr.rel (0) target = $region29
  $region28: #{seq2seq_forward_pallas.32} parent=0 // pred_region
    _
  $region29: #{seq2seq_forward_pallas.32} parent=0 // pred_fallthru
    _

</llo_original>
